<compile_context>
chip_gen: v7x
topology: tpu7x:2x2x1
jax: 0.10.0
libtpu: 0.0.40
codegen_flags: <defaults>
</compile_context>

<pallas_src>
import numpy as np

import jax
import jax.numpy as jnp
from jax.experimental import pallas as pl
from jax.experimental.pallas import tpu as pltpu


_H = _W = 7          # spatial size required by fc1 (32 * 7 * 7 fan-in)
_S = _H * _W         # 49 spatial positions


# ----------------------------------------------------------------------------
# One fused kernel: conv1 -> conv2 -> fc1 -> fc2 as a VMEM-resident GEMM chain
# with f32 accumulation and f32 bias/ReLU epilogues.
# ----------------------------------------------------------------------------
def _convvaluenet_kernel(x_ref, w1_ref, b1_ref, w2_ref, b2_ref,
                         wfc1_ref, bfc1_ref, wfc2_ref, bfc2_ref, o_ref):
    f32 = jnp.float32
    cdt = w1_ref.dtype                       # compute dtype (bf16 by default)

    # conv1 as GEMM (+ bias + ReLU).  x columns are NCHW-flat (c*49 + s);
    # w1's rows were permuted offline to match.  Cast the x tile in-kernel.
    h = jnp.dot(x_ref[...].astype(cdt), w1_ref[...], preferred_element_type=f32)
    h = jnp.maximum(h + b1_ref[...], 0.0)                              # (tb, 784)

    # conv2 as GEMM (+ bias + ReLU).  column order (s*16 + c) -> (s*32 + c).
    h = jnp.dot(h.astype(cdt), w2_ref[...], preferred_element_type=f32)
    h = jnp.maximum(h + b2_ref[...], 0.0)                              # (tb, 1568)

    # fc1 (+ bias + ReLU); wfc1 rows were permuted offline so it consumes the
    # (s*32 + c) layout while matching torch's NCHW x.view(B, -1) flatten.
    h = jnp.dot(h.astype(cdt), wfc1_ref[...], preferred_element_type=f32)
    h = jnp.maximum(h + bfc1_ref[...], 0.0)                            # (tb, 128)

    # fc2: output width 1 -> VPU multiply + lane reduction epilogue.
    out = jnp.sum(h * wfc2_ref[...].astype(f32), axis=-1, keepdims=True)
    o_ref[...] = (out + bfc2_ref[...]).astype(o_ref.dtype)             # (tb, 1)


# ----------------------------------------------------------------------------
# Batch-tile selection: sublane-aligned, and >= 2 grid steps once B allows it
# (so dimension_semantics=("parallel",) can shard across v7x's 2 TensorCores).
# ----------------------------------------------------------------------------
def _round_up(n, m):
    return ((n + m - 1) // m) * m


def _choose_tile_b(B, block_b):
    SUB = 8                                  # f32 sublane multiple
    if B <= SUB:
        return SUB                           # single padded tile; rows 8..B-1
                                             # are garbage but masked on store
    half = _round_up(pl.cdiv(B, 2), SUB)     # guarantees grid >= 2
    return max(SUB, min(_round_up(block_b, SUB), half))


# ----------------------------------------------------------------------------
# Forward wrapper: one pallas_call, batch tiled on a "parallel" grid axis.
# ----------------------------------------------------------------------------
def conv_value_net_forward(x_nchw, gp, *, block_b=256):
    """x_nchw: (B, C_in, 7, 7); gp: output of preprocess_params()."""
    B, C, H, W = x_nchw.shape
    assert (H, W) == (_H, _W), "fc1 expects 32*7*7 features -> spatial must be 7x7"

    w1, b1 = gp["w1"], gp["b1"]
    w2, b2 = gp["w2"], gp["b2"]
    wfc1, bfc1 = gp["wfc1"], gp["bfc1"]
    wfc2, bfc2 = gp["wfc2"], gp["bfc2"]

    # Metadata-only flatten; NCHW element order is matched by w1's row order.
    # No wrapper-side dtype cast: the per-tile cast happens inside the kernel.
    x_flat = x_nchw.reshape(B, C * H * W)
    assert x_flat.shape[1] == w1.shape[0], (x_flat.shape, w1.shape)

    tile_b = _choose_tile_b(B, block_b)
    grid = (pl.cdiv(B, tile_b),)

    def rows(i):            # batch-tiled operands
        return (i, 0)

    def resident(i):        # weights/biases: same block every step -> no re-DMA
        return (0, 0)

    in_specs = [pl.BlockSpec((tile_b, x_flat.shape[1]), rows)]
    for arr in (w1, b1, w2, b2, wfc1, bfc1, wfc2, bfc2):
        # Constant block -> single-buffer (no dead second copy in VMEM).
        in_specs.append(
            pl.BlockSpec(arr.shape, resident, pipeline_mode=pl.Buffered(1)))

    return pl.pallas_call(
        _convvaluenet_kernel,
        out_shape=jax.ShapeDtypeStruct((B, 1), jnp.float32),
        grid=grid,
        in_specs=in_specs,
        out_specs=pl.BlockSpec((tile_b, 1), rows),
        compiler_params=pltpu.CompilerParams(
            dimension_semantics=("parallel",),   # shard batch tiles (v7x 2 TCs)
            vmem_limit_bytes=48 * 1024 * 1024,   # fits v7x's 64 MiB per-TC VMEM
        ),
    )(x_flat, w1, b1, w2, b2, wfc1, bfc1, wfc2, bfc2)


# ----------------------------------------------------------------------------
# One-time parameter preprocessing (host-side; NOT in the per-step path).
# ----------------------------------------------------------------------------
def preprocess_params(params, compute_dtype=jnp.bfloat16):
    """compute_dtype=bfloat16 (default) for MXU speed / half the weight DMA;
    pass jnp.float32 for tighter agreement with the f32 PyTorch reference."""

    def conv_to_gemm(w_oihw, nchw_row_order):
        # Dense (S*C_in, S*C_out) matrix implementing a 3x3 / pad=1 / stride=1
        # conv on a per-image flattened activation vector.
        w = np.asarray(w_oihw, dtype=np.float32)
        c_out, c_in = w.shape[0], w.shape[1]
        big = np.zeros((_S * c_in, _S * c_out), dtype=np.float32)
        for ti in range(_H):
            for tj in range(_W):
                t = ti * _W + tj
                for kh in range(3):
                    for kw in range(3):
                        si, sj = ti + kh - 1, tj + kw - 1
                        if 0 <= si < _H and 0 <= sj < _W:
                            s = si * _W + sj
                            big[s * c_in:(s + 1) * c_in,
                                t * c_out:(t + 1) * c_out] = w[:, :, kh, kw].T
        if nchw_row_order:
            # reorder rows from (s, c) to (c, s) so the kernel consumes the raw
            # NCHW-flattened input with no runtime transpose.
            big = (big.reshape(_S, c_in, _S * c_out)
                      .transpose(1, 0, 2)
                      .reshape(c_in * _S, _S * c_out))
        return big

    w1 = conv_to_gemm(params["conv1_w"], nchw_row_order=True)      # (C_in*49, 784)
    w2 = conv_to_gemm(params["conv2_w"], nchw_row_order=False)     # (784, 1568)
    b1 = np.tile(np.asarray(params["conv1_b"], np.float32), _S)[None, :]   # (1, 784)
    b2 = np.tile(np.asarray(params["conv2_b"], np.float32), _S)[None, :]   # (1, 1568)

    # fc1: permute so it consumes the conv2 output layout (s*32 + c) while
    # matching torch's NCHW x.view(B, -1) flatten (original index c*49 + s).
    fc1_w = np.asarray(params["fc1_w"], np.float32)                # (128, 32*49)
    n_out, n_in = fc1_w.shape
    c2 = n_in // _S                                                # 32
    wfc1 = (fc1_w.reshape(n_out, c2, _S)
                 .transpose(2, 1, 0)
                 .reshape(_S * c2, n_out))                         # (1568, 128)
    bfc1 = np.asarray(params["fc1_b"], np.float32)[None, :]        # (1, 128)

    wfc2 = np.asarray(params["fc2_w"], np.float32).reshape(1, -1)  # (1, 128)
    bfc2 = np.asarray(params["fc2_b"], np.float32).reshape(1, 1)   # (1, 1)

    return {
        "w1": jnp.asarray(w1, compute_dtype),
        "b1": jnp.asarray(b1, jnp.float32),
        "w2": jnp.asarray(w2, compute_dtype),
        "b2": jnp.asarray(b2, jnp.float32),
        "wfc1": jnp.asarray(wfc1, compute_dtype),
        "bfc1": jnp.asarray(bfc1, jnp.float32),
        "wfc2": jnp.asarray(wfc2, compute_dtype),
        "bfc2": jnp.asarray(bfc2, jnp.float32),
    }


# ----------------------------------------------------------------------------
# Deterministic synthetic parameters (PyTorch module shapes) + JAX reference.
# ----------------------------------------------------------------------------
def init_params(key, input_channels):
    ks = jax.random.split(key, 8)
    scale = 0.1
    return {
        "conv1_w": scale * jax.random.normal(ks[0], (16, input_channels, 3, 3), jnp.float32),
        "conv1_b": scale * jax.random.normal(ks[1], (16,), jnp.float32),
        "conv2_w": scale * jax.random.normal(ks[2], (32, 16, 3, 3), jnp.float32),
        "conv2_b": scale * jax.random.normal(ks[3], (32,), jnp.float32),
        "fc1_w":   scale * jax.random.normal(ks[4], (128, 32 * _H * _W), jnp.float32),
        "fc1_b":   scale * jax.random.normal(ks[5], (128,), jnp.float32),
        "fc2_w":   scale * jax.random.normal(ks[6], (1, 128), jnp.float32),
        "fc2_b":   scale * jax.random.normal(ks[7], (1,), jnp.float32),
    }


def reference_forward(x, params):
    """Plain-JAX replica of the PyTorch module (numerical cross-check only)."""
    dn = ("NCHW", "OIHW", "NCHW")
    h = jax.lax.conv_general_dilated(x, params["conv1_w"], window_strides=(1, 1),
                                     padding=((1, 1), (1, 1)), dimension_numbers=dn)
    h = jax.nn.relu(h + params["conv1_b"][None, :, None, None])
    h = jax.lax.conv_general_dilated(h, params["conv2_w"], window_strides=(1, 1),
                                     padding=((1, 1), (1, 1)), dimension_numbers=dn)
    h = jax.nn.relu(h + params["conv2_b"][None, :, None, None])
    flat = h.reshape(h.shape[0], -1)
    h = jax.nn.relu(flat @ params["fc1_w"].T + params["fc1_b"])
    return h @ params["fc2_w"].T + params["fc2_b"]


if __name__ == "__main__":
    key = jax.random.PRNGKey(0)
    k_x, k_p = jax.random.split(key)

    batch, input_channels = 2, 4
    # Spatial size must be 7x7 so the flatten matches fc1's 32*7*7 fan-in.
    x = jax.random.normal(k_x, (batch, input_channels, _H, _W), jnp.float32)

    params = init_params(k_p, input_channels)
    ref = jax.block_until_ready(reference_forward(x, params))

    fwd = jax.jit(conv_value_net_forward)

    # Default (bf16 compute) path -- the fast one.  Loose tolerance to absorb
    # bf16 weights / bf16 inter-layer casts (accumulation is still f32).
    gp_bf16 = preprocess_params(params)                       # one-time, host-side
    out_bf16 = jax.block_until_ready(fwd(x, gp_bf16))
    assert out_bf16.shape == (batch, 1), out_bf16.shape
    assert out_bf16.dtype == jnp.float32, out_bf16.dtype
    np.testing.assert_allclose(np.asarray(out_bf16), np.asarray(ref),
                               rtol=1e-1, atol=1e-1)

    # Precision knob: f32 weights for callers who need tighter agreement.
    gp_f32 = preprocess_params(params, compute_dtype=jnp.float32)
    out_f32 = jax.block_until_ready(fwd(x, gp_f32))
    np.testing.assert_allclose(np.asarray(out_f32), np.asarray(ref),
                               rtol=1e-1, atol=1e-1)

    print("KERNEL_OK")
</pallas_src>

<mosaic_0001>
module attributes {stable_mosaic.version = 11 : i64} {
  func.func @_convvaluenet_kernel(%arg0: i32, %arg1: memref<8x196xf32, #tpu.memory_space<vmem>>, %arg2: memref<196x784xbf16, #tpu.memory_space<vmem>>, %arg3: memref<1x784xf32, #tpu.memory_space<vmem>>, %arg4: memref<784x1568xbf16, #tpu.memory_space<vmem>>, %arg5: memref<1x1568xf32, #tpu.memory_space<vmem>>, %arg6: memref<1568x128xbf16, #tpu.memory_space<vmem>>, %arg7: memref<1x128xf32, #tpu.memory_space<vmem>>, %arg8: memref<1x128xbf16, #tpu.memory_space<vmem>>, %arg9: memref<1x1xf32, #tpu.memory_space<vmem>>, %arg10: memref<8x1xf32, #tpu.memory_space<vmem>>) attributes {dimension_semantics = [#tpu.dimension_semantics<parallel>], iteration_bounds = array<i64: 1>, scalar_prefetch = 0 : i64, scratch_operands = 0 : i64, tpu.core_type = #tpu.core_type<tc>, window_params = [{transform_indices = @transform_0, window_bounds = array<i64: 8, 196>}, {pipeline_mode = #tpu.pipeline_mode<synchronous>, transform_indices = @transform_1, window_bounds = array<i64: 196, 784>}, {pipeline_mode = #tpu.pipeline_mode<synchronous>, transform_indices = @transform_2, window_bounds = array<i64: 1, 784>}, {pipeline_mode = #tpu.pipeline_mode<synchronous>, transform_indices = @transform_3, window_bounds = array<i64: 784, 1568>}, {pipeline_mode = #tpu.pipeline_mode<synchronous>, transform_indices = @transform_4, window_bounds = array<i64: 1, 1568>}, {pipeline_mode = #tpu.pipeline_mode<synchronous>, transform_indices = @transform_5, window_bounds = array<i64: 1568, 128>}, {pipeline_mode = #tpu.pipeline_mode<synchronous>, transform_indices = @transform_6, window_bounds = array<i64: 1, 128>}, {pipeline_mode = #tpu.pipeline_mode<synchronous>, transform_indices = @transform_7, window_bounds = array<i64: 1, 128>}, {pipeline_mode = #tpu.pipeline_mode<synchronous>, transform_indices = @transform_8, window_bounds = array<i64: 1, 1>}, {transform_indices = @transform_9, window_bounds = array<i64: 8, 1>}]} {
    %c0 = arith.constant 0 : index
    %c0_0 = arith.constant 0 : index
    %0 = vector.load %arg1[%c0, %c0_0] : memref<8x196xf32, #tpu.memory_space<vmem>>, vector<8x196xf32>
    %1 = arith.truncf %0 : vector<8x196xf32> to vector<8x196xbf16>
    %c0_1 = arith.constant 0 : index
    %c0_2 = arith.constant 0 : index
    %2 = vector.load %arg2[%c0_1, %c0_2] : memref<196x784xbf16, #tpu.memory_space<vmem>>, vector<196x784xbf16>
    %cst = arith.constant dense<0.000000e+00> : vector<8x784xf32>
    %3 = tpu.matmul %1, %2, %cst {dimension_numbers = #tpu.dot_dimension_numbers<[1], [0], [0], [1], [0, 0, 1, 1], [], []>} : vector<8x196xbf16>, vector<196x784xbf16>, vector<8x784xf32> -> vector<8x784xf32>
    %c0_3 = arith.constant 0 : index
    %c0_4 = arith.constant 0 : index
    %4 = vector.load %arg3[%c0_3, %c0_4] : memref<1x784xf32, #tpu.memory_space<vmem>>, vector<1x784xf32>
    %5 = vector.broadcast %4 : vector<1x784xf32> to vector<8x784xf32>
    %6 = arith.addf %3, %5 : vector<8x784xf32>
    %cst_5 = arith.constant 0.000000e+00 : f32
    %7 = vector.broadcast %cst_5 : f32 to vector<8x784xf32>
    %8 = arith.maximumf %6, %7 : vector<8x784xf32>
    %9 = arith.truncf %8 : vector<8x784xf32> to vector<8x784xbf16>
    %c0_6 = arith.constant 0 : index
    %c0_7 = arith.constant 0 : index
    %10 = vector.load %arg4[%c0_6, %c0_7] : memref<784x1568xbf16, #tpu.memory_space<vmem>>, vector<784x1568xbf16>
    %cst_8 = arith.constant dense<0.000000e+00> : vector<8x1568xf32>
    %11 = tpu.matmul %9, %10, %cst_8 {dimension_numbers = #tpu.dot_dimension_numbers<[1], [0], [0], [1], [0, 0, 1, 1], [], []>} : vector<8x784xbf16>, vector<784x1568xbf16>, vector<8x1568xf32> -> vector<8x1568xf32>
    %c0_9 = arith.constant 0 : index
    %c0_10 = arith.constant 0 : index
    %12 = vector.load %arg5[%c0_9, %c0_10] : memref<1x1568xf32, #tpu.memory_space<vmem>>, vector<1x1568xf32>
    %13 = vector.broadcast %12 : vector<1x1568xf32> to vector<8x1568xf32>
    %14 = arith.addf %11, %13 : vector<8x1568xf32>
    %cst_11 = arith.constant 0.000000e+00 : f32
    %15 = vector.broadcast %cst_11 : f32 to vector<8x1568xf32>
    %16 = arith.maximumf %14, %15 : vector<8x1568xf32>
    %17 = arith.truncf %16 : vector<8x1568xf32> to vector<8x1568xbf16>
    %c0_12 = arith.constant 0 : index
    %c0_13 = arith.constant 0 : index
    %18 = vector.load %arg6[%c0_12, %c0_13] : memref<1568x128xbf16, #tpu.memory_space<vmem>>, vector<1568x128xbf16>
    %cst_14 = arith.constant dense<0.000000e+00> : vector<8x128xf32>
    %19 = tpu.matmul %17, %18, %cst_14 {dimension_numbers = #tpu.dot_dimension_numbers<[1], [0], [0], [1], [0, 0, 1, 1], [], []>} : vector<8x1568xbf16>, vector<1568x128xbf16>, vector<8x128xf32> -> vector<8x128xf32>
    %c0_15 = arith.constant 0 : index
    %c0_16 = arith.constant 0 : index
    %20 = vector.load %arg7[%c0_15, %c0_16] : memref<1x128xf32, #tpu.memory_space<vmem>>, vector<1x128xf32>
    %21 = vector.broadcast %20 : vector<1x128xf32> to vector<8x128xf32>
    %22 = arith.addf %19, %21 : vector<8x128xf32>
    %cst_17 = arith.constant 0.000000e+00 : f32
    %23 = vector.broadcast %cst_17 : f32 to vector<8x128xf32>
    %24 = arith.maximumf %22, %23 : vector<8x128xf32>
    %c0_18 = arith.constant 0 : index
    %c0_19 = arith.constant 0 : index
    %25 = vector.load %arg8[%c0_18, %c0_19] : memref<1x128xbf16, #tpu.memory_space<vmem>>, vector<1x128xbf16>
    %26 = arith.extf %25 : vector<1x128xbf16> to vector<1x128xf32>
    %27 = vector.broadcast %26 : vector<1x128xf32> to vector<8x128xf32>
    %28 = arith.mulf %24, %27 : vector<8x128xf32>
    %cst_20 = arith.constant dense<0.000000e+00> : vector<8xf32>
    %29 = vector.multi_reduction <add>, %28, %cst_20 [1] : vector<8x128xf32> to vector<8xf32>
    %30 = vector.shape_cast %29 : vector<8xf32> to vector<8x1xf32>
    %c0_21 = arith.constant 0 : index
    %c0_22 = arith.constant 0 : index
    %31 = vector.load %arg9[%c0_21, %c0_22] : memref<1x1xf32, #tpu.memory_space<vmem>>, vector<1x1xf32>
    %32 = vector.broadcast %31 : vector<1x1xf32> to vector<8x1xf32>
    %33 = arith.addf %30, %32 : vector<8x1xf32>
    %c0_23 = arith.constant 0 : index
    %c0_24 = arith.constant 0 : index
    %34 = vector.load %arg10[%c0_23, %c0_24] : memref<8x1xf32, #tpu.memory_space<vmem>>, vector<8x1xf32>
    tpu.vector_store %arg10[%c0_23, %c0_24], %33 {strides = array<i32>} : memref<8x1xf32, #tpu.memory_space<vmem>>, vector<8x1xf32>,
    return
  }
  func.func @transform_0(%arg0: i32) -> (i32, i32) {
    %c0_i32 = arith.constant 0 : i32
    %c0_i32_0 = arith.constant 0 : i32
    return %arg0, %c0_i32 : i32, i32
  }
  func.func @transform_1(%arg0: i32) -> (i32, i32) {
    %c0_i32 = arith.constant 0 : i32
    %c0_i32_0 = arith.constant 0 : i32
    %c0_i32_1 = arith.constant 0 : i32
    return %c0_i32, %c0_i32_0 : i32, i32
  }
  func.func @transform_2(%arg0: i32) -> (i32, i32) {
    %c0_i32 = arith.constant 0 : i32
    %c0_i32_0 = arith.constant 0 : i32
    %c0_i32_1 = arith.constant 0 : i32
    return %c0_i32, %c0_i32_0 : i32, i32
  }
  func.func @transform_3(%arg0: i32) -> (i32, i32) {
    %c0_i32 = arith.constant 0 : i32
    %c0_i32_0 = arith.constant 0 : i32
    %c0_i32_1 = arith.constant 0 : i32
    return %c0_i32, %c0_i32_0 : i32, i32
  }
  func.func @transform_4(%arg0: i32) -> (i32, i32) {
    %c0_i32 = arith.constant 0 : i32
    %c0_i32_0 = arith.constant 0 : i32
    %c0_i32_1 = arith.constant 0 : i32
    return %c0_i32, %c0_i32_0 : i32, i32
  }
  func.func @transform_5(%arg0: i32) -> (i32, i32) {
    %c0_i32 = arith.constant 0 : i32
    %c0_i32_0 = arith.constant 0 : i32
    %c0_i32_1 = arith.constant 0 : i32
    return %c0_i32, %c0_i32_0 : i32, i32
  }
  func.func @transform_6(%arg0: i32) -> (i32, i32) {
    %c0_i32 = arith.constant 0 : i32
    %c0_i32_0 = arith.constant 0 : i32
    %c0_i32_1 = arith.constant 0 : i32
    return %c0_i32, %c0_i32_0 : i32, i32
  }
  func.func @transform_7(%arg0: i32) -> (i32, i32) {
    %c0_i32 = arith.constant 0 : i32
    %c0_i32_0 = arith.constant 0 : i32
    %c0_i32_1 = arith.constant 0 : i32
    return %c0_i32, %c0_i32_0 : i32, i32
  }
  func.func @transform_8(%arg0: i32) -> (i32, i32) {
    %c0_i32 = arith.constant 0 : i32
    %c0_i32_0 = arith.constant 0 : i32
    %c0_i32_1 = arith.constant 0 : i32
    return %c0_i32, %c0_i32_0 : i32, i32
  }
  func.func @transform_9(%arg0: i32) -> (i32, i32) {
    %c0_i32 = arith.constant 0 : i32
    %c0_i32_0 = arith.constant 0 : i32
    return %arg0, %c0_i32 : i32, i32
  }
}

</mosaic_0001>

<llo_original>
// kernel: conv_value_net_forward.1
$region0: #{conv_value_net_forward.1}
  #allocation0 [shape = 'u32[]', space=smem, size = 0x4, offset = 0x4, fixed_abs, tag = 'smem constant byte address 0x4 - core index']
  #allocation1 [shape = 'u32[144,128]{1,0:T(1,128)}', space=vmem, size = 0x12000, scoped, tag = 'internal scratch']
  #allocation2 [shape = 'f32[1,1]{1,0:T(1,128)S(1)}', space=vmem, size = 0x200, scoped, tag = 'scoped memory for conv_value_net_forward.1']
  %s0 = inlined_call_operand.vmem [shape: f32[2,196], index: 0, kind: input, shape index: {}]
  %s1 = inlined_call_operand.hbm [shape: bf16[196,784], index: 1, kind: input, shape index: {}]
  %s2 = inlined_call_operand.hbm [shape: f32[1,784], index: 2, kind: input, shape index: {}]
  %s3 = inlined_call_operand.hbm [shape: bf16[784,1568], index: 3, kind: input, shape index: {}]
  %s4 = inlined_call_operand.hbm [shape: f32[1,1568], index: 4, kind: input, shape index: {}]
  %s5 = inlined_call_operand.hbm [shape: bf16[1568,128], index: 5, kind: input, shape index: {}]
  %s6 = inlined_call_operand.hbm [shape: f32[1,128], index: 6, kind: input, shape index: {}]
  %s7 = inlined_call_operand.hbm [shape: bf16[1,128], index: 7, kind: input, shape index: {}]
  %s8 = inlined_call_operand.<no memory space> [shape: f32[1,1], index: 8, kind: input, shape index: {}]
  %s9 = inlined_call_operand.vmem [shape: f32[2,1], index: 9, kind: output, shape index: {}]
  %s10 = sld [smem:[#allocation0]]
  $region104: #{conv_value_net_forward.1} parent=0
    _
  %s12 = ssub.s32 1, %s10
  %s13 = scalar_select 0, %s12, %s10
  %v14 = vstv %s8
  %15 = vst [vmem:[#allocation2] sm:$0x1] %v14
  $region1: #{conv_value_net_forward.1} parent=0
    #allocation3 [shape = 'u8[358400]{0}', space=vmem, size = 0x57800, scoped, tag = 'input window, operand 1, single buffered']
    #allocation4 [shape = 's32[1]{0}', space=sflag, size = 0x4, scoped, tag = 'scoped memory for conv_value_net_forward.1']
    #allocation5 [shape = 'u8[3584]{0}', space=vmem, size = 0x1000, scoped, tag = 'input window, operand 2, single buffered']
    #allocation6 [shape = 's32[1]{0}', space=sflag, size = 0x4, scoped, tag = 'scoped memory for conv_value_net_forward.1']
    #allocation7 [shape = 'u8[2609152]{0}', space=vmem, size = 0x27d000, scoped, tag = 'input window, operand 3, single buffered']
    #allocation8 [shape = 'u8[6656]{0}', space=vmem, size = 0x1c00, scoped, tag = 'input window, operand 4, single buffered']
    #allocation9 [shape = 's32[1]{0}', space=sflag, size = 0x4, scoped, tag = 'scoped memory for conv_value_net_forward.1']
    #allocation10 [shape = 'u8[401408]{0}', space=vmem, size = 0x62000, scoped, tag = 'input window, operand 5, single buffered']
    #allocation11 [shape = 'u8[512]{0}', space=vmem, size = 0x400, scoped, tag = 'input window, operand 6, single buffered']
    #allocation12 [shape = 's32[1]{0}', space=sflag, size = 0x4, scoped, tag = 'scoped memory for conv_value_net_forward.1']
    #allocation13 [shape = 'u8[512]{0}', space=vmem, size = 0x400, scoped, tag = 'input window, operand 7, single buffered']
    #allocation14 [shape = 'u8[4096]{0}', space=vmem, size = 0x1000, scoped, tag = 'output window, operand 0, single buffered']
    %16 = vsyncpa [#allocation4], 0
    %17 = vsyncpa [#allocation6], 0
    %18 = vsyncpa [#allocation9], 0
    %19 = vsyncpa [#allocation12], 0
    // Predicated region
    $region2: #{conv_value_net_forward.1} parent=1 // pred_check
      _
    $region3: #{conv_value_net_forward.1} parent=1 // pred_check_branch
      %21 = sbr.rel (0) target = $region5
    $region4: #{conv_value_net_forward.1} parent=1 // pred_region
      _
    $region5: #{conv_value_net_forward.1} parent=1 // pred_fallthru
      _
    // Predicated region
    $region6: #{conv_value_net_forward.1} parent=1 // pred_check
      _
    $region7: #{conv_value_net_forward.1} parent=1 // pred_check_branch
      %23 = sbr.rel (0) target = $region9
    $region8: #{conv_value_net_forward.1} parent=1 // pred_region
      %s25 = ssub.s32 11200, 11200
      %26 = vsyncadd [#allocation4], %s25
      %s27 = sshll.u32 [#allocation3], 4
      %s28 = int_to_ptr.vmem [resolvable:$true] %s27
      %33 = dma.hbm_to_vmem [thread:$0]  %s1, 11200, %s28, [#allocation4], 448, 448, 28
    $region9: #{conv_value_net_forward.1} parent=1 // pred_fallthru
      _
    // Predicated region
    $region10: #{conv_value_net_forward.1} parent=1 // pred_check
      _
    $region11: #{conv_value_net_forward.1} parent=1 // pred_check_branch
      %35 = sbr.rel (0) target = $region13
    $region12: #{conv_value_net_forward.1} parent=1 // pred_region
      %s37 = ssub.s32 112, 112
      %38 = vsyncadd [#allocation6], %s37
      %s40 = sshll.u32 [#allocation5], 4
      %s41 = int_to_ptr.vmem [resolvable:$true] %s40
      %43 = dma.hbm_to_vmem [thread:$0]  %s2, 112, %s41, [#allocation6]
    $region13: #{conv_value_net_forward.1} parent=1 // pred_fallthru
      _
    // Predicated region
    $region14: #{conv_value_net_forward.1} parent=1 // pred_check
      _
    $region15: #{conv_value_net_forward.1} parent=1 // pred_check_branch
      %45 = sbr.rel (0) target = $region17
    $region16: #{conv_value_net_forward.1} parent=1 // pred_region
      %s47 = ssub.s32 81536, 81536
      %48 = vsyncadd [#allocation6], %s47
      %s49 = sshll.u32 [#allocation7], 4
      %s50 = int_to_ptr.vmem [resolvable:$true] %s49
      %55 = dma.hbm_to_vmem [thread:$0]  %s3, 81536, %s50, [#allocation6], 832, 832, 52
    $region17: #{conv_value_net_forward.1} parent=1 // pred_fallthru
      _
    // Predicated region
    $region18: #{conv_value_net_forward.1} parent=1 // pred_check
      _
    $region19: #{conv_value_net_forward.1} parent=1 // pred_check_branch
      %57 = sbr.rel (0) target = $region21
    $region20: #{conv_value_net_forward.1} parent=1 // pred_region
      %s59 = ssub.s32 208, 208
      %60 = vsyncadd [#allocation9], %s59
      %s62 = sshll.u32 [#allocation8], 4
      %s63 = int_to_ptr.vmem [resolvable:$true] %s62
      %65 = dma.hbm_to_vmem [thread:$0]  %s4, 208, %s63, [#allocation9]
    $region21: #{conv_value_net_forward.1} parent=1 // pred_fallthru
      _
    // Predicated region
    $region22: #{conv_value_net_forward.1} parent=1 // pred_check
      _
    $region23: #{conv_value_net_forward.1} parent=1 // pred_check_branch
      %67 = sbr.rel (0) target = $region25
    $region24: #{conv_value_net_forward.1} parent=1 // pred_region
      %s69 = ssub.s32 12544, 12544
      %70 = vsyncadd [#allocation9], %s69
      %s71 = sshll.u32 [#allocation10], 4
      %s72 = int_to_ptr.vmem [resolvable:$true] %s71
      %77 = dma.hbm_to_vmem [thread:$0]  %s5, 12544, %s72, [#allocation9], 64, 64, 4
    $region25: #{conv_value_net_forward.1} parent=1 // pred_fallthru
      _
    // Predicated region
    $region26: #{conv_value_net_forward.1} parent=1 // pred_check
      _
    $region27: #{conv_value_net_forward.1} parent=1 // pred_check_branch
      %79 = sbr.rel (0) target = $region29
    $region28: #{conv_value_net_forward.1} parent=1 // pred_region
      %s81 = ssub.s32 16, 16
      %82 = vsyncadd [#allocation12], %s81
      %s84 = sshll.u32 [#allocation11], 4
      %s85 = int_to_ptr.vmem [resolvable:$true] %s84
      %87 = dma.hbm_to_vmem [thread:$0]  %s6, 16, %s85, [#allocation12]
    $region29: #{conv_value_net_forward.1} parent=1 // pred_fallthru
      _
    // Predicated region
    $region30: #{conv_value_net_forward.1} parent=1 // pred_check
      _
    $region31: #{conv_value_net_forward.1} parent=1 // pred_check_branch
      %89 = sbr.rel (0) target = $region33
    $region32: #{conv_value_net_forward.1} parent=1 // pred_region
      %s91 = ssub.s32 16, 16
      %92 = vsyncadd [#allocation12], %s91
      %s94 = sshll.u32 [#allocation13], 4
      %s95 = int_to_ptr.vmem [resolvable:$true] %s94
      %97 = dma.hbm_to_vmem [thread:$0]  %s7, 16, %s95, [#allocation12]
    $region33: #{conv_value_net_forward.1} parent=1 // pred_fallthru
      _
    // Predicated region
    $region34: #{conv_value_net_forward.1} parent=1 // pred_check
      _
    $region35: #{conv_value_net_forward.1} parent=1 // pred_check_branch
      %99 = sbr.rel (0) target = $region37
    $region36: #{conv_value_net_forward.1} parent=1 // pred_region
      _
    $region37: #{conv_value_net_forward.1} parent=1 // pred_fallthru
      _
    // Predicated region
    $region38: #{conv_value_net_forward.1} parent=1 // pred_check
      _
    $region39: #{conv_value_net_forward.1} parent=1 // pred_check_branch
      %101 = sbr.rel (0) target = $region41
    $region40: #{conv_value_net_forward.1} parent=1 // pred_region
      %102 = dma.done [#allocation4], 11200
    $region41: #{conv_value_net_forward.1} parent=1 // pred_fallthru
      _
    // Predicated region
    $region42: #{conv_value_net_forward.1} parent=1 // pred_check
      _
    $region43: #{conv_value_net_forward.1} parent=1 // pred_check_branch
      %104 = sbr.rel (0) target = $region45
    $region44: #{conv_value_net_forward.1} parent=1 // pred_region
      %105 = dma.done [#allocation6], 112
    $region45: #{conv_value_net_forward.1} parent=1 // pred_fallthru
      _
    // Predicated region
    $region46: #{conv_value_net_forward.1} parent=1 // pred_check
      _
    $region47: #{conv_value_net_forward.1} parent=1 // pred_check_branch
      %107 = sbr.rel (0) target = $region49
    $region48: #{conv_value_net_forward.1} parent=1 // pred_region
      %108 = dma.done [#allocation6], 81536
    $region49: #{conv_value_net_forward.1} parent=1 // pred_fallthru
      _
    // Predicated region
    $region50: #{conv_value_net_forward.1} parent=1 // pred_check
      _
    $region51: #{conv_value_net_forward.1} parent=1 // pred_check_branch
      %110 = sbr.rel (0) target = $region53
    $region52: #{conv_value_net_forward.1} parent=1 // pred_region
      %111 = dma.done [#allocation9], 208
    $region53: #{conv_value_net_forward.1} parent=1 // pred_fallthru
      _
    // Predicated region
    $region54: #{conv_value_net_forward.1} parent=1 // pred_check
      _
    $region55: #{conv_value_net_forward.1} parent=1 // pred_check_branch
      %113 = sbr.rel (0) target = $region57
    $region56: #{conv_value_net_forward.1} parent=1 // pred_region
      %114 = dma.done [#allocation9], 12544
    $region57: #{conv_value_net_forward.1} parent=1 // pred_fallthru
      _
    // Predicated region
    $region58: #{conv_value_net_forward.1} parent=1 // pred_check
      _
    $region59: #{conv_value_net_forward.1} parent=1 // pred_check_branch
      %116 = sbr.rel (0) target = $region61
    $region60: #{conv_value_net_forward.1} parent=1 // pred_region
      %117 = dma.done [#allocation12], 16
    $region61: #{conv_value_net_forward.1} parent=1 // pred_fallthru
      _
    // Predicated region
    $region62: #{conv_value_net_forward.1} parent=1 // pred_check
      _
    $region63: #{conv_value_net_forward.1} parent=1 // pred_check_branch
      %119 = sbr.rel (0) target = $region65
    $region64: #{conv_value_net_forward.1} parent=1 // pred_region
      %120 = dma.done [#allocation12], 16
    $region65: #{conv_value_net_forward.1} parent=1 // pred_fallthru
      _
    %v122 = vld [vmem:[%s0] sm:$0xf]
    %v123 = vld [vmem:[%s0 + $0x4] sm:$0xf]
    %v124 = vld [vmem:[%s0 + $0x8] sm:$0xf]
    %v125 = vld [vmem:[%s0 + $0xc] sm:$0xf]
    %v130 = vcombine.low %v122, %v123
    %v131 = vcombine.low %v124, %v125
    %v133 = vunpack.c.l.s4 1983009808
    %v134 = vunpack.c.0.s8 %v133
    %v135 = vlaneseq
    %v136 = vshrl.u32 %v135, 7
    %v137 = vsub.s32 %v134, %v136
    %v138 = vrot.slane %v130, %v137
    %v140 = vunpack.c.l.s4 1983009808
    %v141 = vunpack.c.0.s8 %v140
    %v142 = vlaneseq
    %v143 = vshrl.u32 %v142, 7
    %v144 = vsub.s32 %v141, %v143
    %v145 = vrot.slane %v131, %v144
    %v146 = vcombine.low %v138, %v145
    %v147 = vcombine.high %v138, %v145
    %v150 = vpack.c.bf16 %v146, %v146
    %v151 = vpack.c.bf16 %v147, %v147
    %v152 = vld [vmem:[#allocation3] sm:$0xff]
    %v153 = vld [vmem:[#allocation3 + $0x8] sm:$0xff]
    %v154 = vld [vmem:[#allocation3 + $0x10] sm:$0xff]
    %v155 = vld [vmem:[#allocation3 + $0x18] sm:$0xf]
    %v156 = vld [vmem:[#allocation3 + $0x1c] sm:$0xff]
    %v157 = vld [vmem:[#allocation3 + $0x24] sm:$0xff]
    %v158 = vld [vmem:[#allocation3 + $0x2c] sm:$0xff]
    %v159 = vld [vmem:[#allocation3 + $0x34] sm:$0xf]
    %v160 = vld [vmem:[#allocation3 + $0x38] sm:$0xff]
    %v161 = vld [vmem:[#allocation3 + $0x40] sm:$0xff]
    %v162 = vld [vmem:[#allocation3 + $0x48] sm:$0xff]
    %v163 = vld [vmem:[#allocation3 + $0x50] sm:$0xf]
    %v164 = vld [vmem:[#allocation3 + $0x54] sm:$0xff]
    %v165 = vld [vmem:[#allocation3 + $0x5c] sm:$0xff]
    %v166 = vld [vmem:[#allocation3 + $0x64] sm:$0xff]
    %v167 = vld [vmem:[#allocation3 + $0x6c] sm:$0xf]
    %v168 = vld [vmem:[#allocation3 + $0x70] sm:$0xff]
    %v169 = vld [vmem:[#allocation3 + $0x78] sm:$0xff]
    %v170 = vld [vmem:[#allocation3 + $0x80] sm:$0xff]
    %v171 = vld [vmem:[#allocation3 + $0x88] sm:$0xf]
    %v172 = vld [vmem:[#allocation3 + $0x8c] sm:$0xff]
    %v173 = vld [vmem:[#allocation3 + $0x94] sm:$0xff]
    %v174 = vld [vmem:[#allocation3 + $0x9c] sm:$0xff]
    %v175 = vld [vmem:[#allocation3 + $0xa4] sm:$0xf]
    %v176 = vld [vmem:[#allocation3 + $0xa8] sm:$0xff]
    %v177 = vld [vmem:[#allocation3 + $0xb0] sm:$0xff]
    %v178 = vld [vmem:[#allocation3 + $0xb8] sm:$0xff]
    %v179 = vld [vmem:[#allocation3 + $0xc0] sm:$0xf]
    %v180 = vld [vmem:[#allocation3 + $0xc4] sm:$0xff]
    %v181 = vld [vmem:[#allocation3 + $0xcc] sm:$0xff]
    %v182 = vld [vmem:[#allocation3 + $0xd4] sm:$0xff]
    %v183 = vld [vmem:[#allocation3 + $0xdc] sm:$0xf]
    %v184 = vld [vmem:[#allocation3 + $0xe0] sm:$0xff]
    %v185 = vld [vmem:[#allocation3 + $0xe8] sm:$0xff]
    %v186 = vld [vmem:[#allocation3 + $0xf0] sm:$0xff]
    %v187 = vld [vmem:[#allocation3 + $0xf8] sm:$0xf]
    %v188 = vld [vmem:[#allocation3 + $0xfc] sm:$0xff]
    %v189 = vld [vmem:[#allocation3 + $0x104] sm:$0xff]
    %v190 = vld [vmem:[#allocation3 + $0x10c] sm:$0xff]
    %v191 = vld [vmem:[#allocation3 + $0x114] sm:$0xf]
    %v192 = vld [vmem:[#allocation3 + $0x118] sm:$0xff]
    %v193 = vld [vmem:[#allocation3 + $0x120] sm:$0xff]
    %v194 = vld [vmem:[#allocation3 + $0x128] sm:$0xff]
    %v195 = vld [vmem:[#allocation3 + $0x130] sm:$0xf]
    %v196 = vld [vmem:[#allocation3 + $0x134] sm:$0xff]
    %v197 = vld [vmem:[#allocation3 + $0x13c] sm:$0xff]
    %v198 = vld [vmem:[#allocation3 + $0x144] sm:$0xff]
    %v199 = vld [vmem:[#allocation3 + $0x14c] sm:$0xf]
    %v200 = vld [vmem:[#allocation3 + $0x150] sm:$0xff]
    %v201 = vld [vmem:[#allocation3 + $0x158] sm:$0xff]
    %v202 = vld [vmem:[#allocation3 + $0x160] sm:$0xff]
    %v203 = vld [vmem:[#allocation3 + $0x168] sm:$0xf]
    %v204 = vld [vmem:[#allocation3 + $0x16c] sm:$0xff]
    %v205 = vld [vmem:[#allocation3 + $0x174] sm:$0xff]
    %v206 = vld [vmem:[#allocation3 + $0x17c] sm:$0xff]
    %v207 = vld [vmem:[#allocation3 + $0x184] sm:$0xf]
    %v208 = vld [vmem:[#allocation3 + $0x188] sm:$0xff]
    %v209 = vld [vmem:[#allocation3 + $0x190] sm:$0xff]
    %v210 = vld [vmem:[#allocation3 + $0x198] sm:$0xff]
    %v211 = vld [vmem:[#allocation3 + $0x1a0] sm:$0xf]
    %v212 = vld [vmem:[#allocation3 + $0x1a4] sm:$0xff]
    %v213 = vld [vmem:[#allocation3 + $0x1ac] sm:$0xff]
    %v214 = vld [vmem:[#allocation3 + $0x1b4] sm:$0xff]
    %v215 = vld [vmem:[#allocation3 + $0x1bc] sm:$0xf]
    %v216 = vld [vmem:[#allocation3 + $0x1c0] sm:$0xff]
    %v217 = vld [vmem:[#allocation3 + $0x1c8] sm:$0xff]
    %v218 = vld [vmem:[#allocation3 + $0x1d0] sm:$0xff]
    %v219 = vld [vmem:[#allocation3 + $0x1d8] sm:$0xf]
    %v220 = vld [vmem:[#allocation3 + $0x1dc] sm:$0xff]
    %v221 = vld [vmem:[#allocation3 + $0x1e4] sm:$0xff]
    %v222 = vld [vmem:[#allocation3 + $0x1ec] sm:$0xff]
    %v223 = vld [vmem:[#allocation3 + $0x1f4] sm:$0xf]
    %v224 = vld [vmem:[#allocation3 + $0x1f8] sm:$0xff]
    %v225 = vld [vmem:[#allocation3 + $0x200] sm:$0xff]
    %v226 = vld [vmem:[#allocation3 + $0x208] sm:$0xff]
    %v227 = vld [vmem:[#allocation3 + $0x210] sm:$0xf]
    %v228 = vld [vmem:[#allocation3 + $0x214] sm:$0xff]
    %v229 = vld [vmem:[#allocation3 + $0x21c] sm:$0xff]
    %v230 = vld [vmem:[#allocation3 + $0x224] sm:$0xff]
    %v231 = vld [vmem:[#allocation3 + $0x22c] sm:$0xf]
    %v232 = vld [vmem:[#allocation3 + $0x230] sm:$0xff]
    %v233 = vld [vmem:[#allocation3 + $0x238] sm:$0xff]
    %v234 = vld [vmem:[#allocation3 + $0x240] sm:$0xff]
    %v235 = vld [vmem:[#allocation3 + $0x248] sm:$0xf]
    %v236 = vld [vmem:[#allocation3 + $0x24c] sm:$0xff]
    %v237 = vld [vmem:[#allocation3 + $0x254] sm:$0xff]
    %v238 = vld [vmem:[#allocation3 + $0x25c] sm:$0xff]
    %v239 = vld [vmem:[#allocation3 + $0x264] sm:$0xf]
    %v240 = vld [vmem:[#allocation3 + $0x268] sm:$0xff]
    %v241 = vld [vmem:[#allocation3 + $0x270] sm:$0xff]
    %v242 = vld [vmem:[#allocation3 + $0x278] sm:$0xff]
    %v243 = vld [vmem:[#allocation3 + $0x280] sm:$0xf]
    %v244 = vld [vmem:[#allocation3 + $0x284] sm:$0xff]
    %v245 = vld [vmem:[#allocation3 + $0x28c] sm:$0xff]
    %v246 = vld [vmem:[#allocation3 + $0x294] sm:$0xff]
    %v247 = vld [vmem:[#allocation3 + $0x29c] sm:$0xf]
    %v248 = vld [vmem:[#allocation3 + $0x2a0] sm:$0x33]
    %v249 = vld [vmem:[#allocation3 + $0x2a8] sm:$0x33]
    %v250 = vld [vmem:[#allocation3 + $0x2b0] sm:$0x33]
    %v251 = vld [vmem:[#allocation3 + $0x2b8] sm:$0x3]
    %v252 = vld [vmem:[#allocation5] sm:$0x7f]
    %v254 = vlaneseq
    %v255 = vshrl.u32 %v254, 7
    %v256 = vsub.s32 0, %v255
    %v257 = vrot.slane %v252, %v256
    %v258 = vlaneseq
    %v259 = vshrl.u32 %v258, 7
    %v260 = vsub.s32 1, %v259
    %v261 = vrot.slane %v252, %v260
    %v262 = vlaneseq
    %v263 = vshrl.u32 %v262, 7
    %v264 = vsub.s32 2, %v263
    %v265 = vrot.slane %v252, %v264
    %v266 = vlaneseq
    %v267 = vshrl.u32 %v266, 7
    %v268 = vsub.s32 3, %v267
    %v269 = vrot.slane %v252, %v268
    %v270 = vlaneseq
    %v271 = vshrl.u32 %v270, 7
    %v272 = vsub.s32 4, %v271
    %v273 = vrot.slane %v252, %v272
    %v274 = vlaneseq
    %v275 = vshrl.u32 %v274, 7
    %v276 = vsub.s32 5, %v275
    %v277 = vrot.slane %v252, %v276
    %v278 = vlaneseq
    %v279 = vshrl.u32 %v278, 7
    %v280 = vsub.s32 6, %v279
    %v281 = vrot.slane %v252, %v280
    %v389 = vunpack.c.l.b16 %v152
    %v390 = vunpack.c.h.b16 %v152
    %v391 = vunpack.c.l.b16 %v153
    %v392 = vunpack.c.h.b16 %v153
    %v393 = vunpack.c.l.b16 %v154
    %v394 = vunpack.c.h.b16 %v154
    %v395 = vunpack.c.l.b16 %v155
    %v396 = vunpack.c.l.b16 %v156
    %v397 = vunpack.c.h.b16 %v156
    %v398 = vunpack.c.l.b16 %v157
    %v399 = vunpack.c.h.b16 %v157
    %v400 = vunpack.c.l.b16 %v158
    %v401 = vunpack.c.h.b16 %v158
    %v402 = vunpack.c.l.b16 %v159
    %v403 = vunpack.c.l.b16 %v160
    %v404 = vunpack.c.h.b16 %v160
    %v405 = vunpack.c.l.b16 %v161
    %v406 = vunpack.c.h.b16 %v161
    %v407 = vunpack.c.l.b16 %v162
    %v408 = vunpack.c.h.b16 %v162
    %v409 = vunpack.c.l.b16 %v163
    %v410 = vunpack.c.l.b16 %v164
    %v411 = vunpack.c.h.b16 %v164
    %v412 = vunpack.c.l.b16 %v165
    %v413 = vunpack.c.h.b16 %v165
    %v414 = vunpack.c.l.b16 %v166
    %v415 = vunpack.c.h.b16 %v166
    %v416 = vunpack.c.l.b16 %v167
    %v417 = vunpack.c.l.b16 %v168
    %v418 = vunpack.c.h.b16 %v168
    %v419 = vunpack.c.l.b16 %v169
    %v420 = vunpack.c.h.b16 %v169
    %v421 = vunpack.c.l.b16 %v170
    %v422 = vunpack.c.h.b16 %v170
    %v423 = vunpack.c.l.b16 %v171
    %v424 = vunpack.c.l.b16 %v172
    %v425 = vunpack.c.h.b16 %v172
    %v426 = vunpack.c.l.b16 %v173
    %v427 = vunpack.c.h.b16 %v173
    %v428 = vunpack.c.l.b16 %v174
    %v429 = vunpack.c.h.b16 %v174
    %v430 = vunpack.c.l.b16 %v175
    %v431 = vunpack.c.l.b16 %v176
    %v432 = vunpack.c.h.b16 %v176
    %v433 = vunpack.c.l.b16 %v177
    %v434 = vunpack.c.h.b16 %v177
    %v435 = vunpack.c.l.b16 %v178
    %v436 = vunpack.c.h.b16 %v178
    %v437 = vunpack.c.l.b16 %v179
    %v438 = vunpack.c.l.b16 %v180
    %v439 = vunpack.c.h.b16 %v180
    %v440 = vunpack.c.l.b16 %v181
    %v441 = vunpack.c.h.b16 %v181
    %v442 = vunpack.c.l.b16 %v182
    %v443 = vunpack.c.h.b16 %v182
    %v444 = vunpack.c.l.b16 %v183
    %v445 = vunpack.c.l.b16 %v184
    %v446 = vunpack.c.h.b16 %v184
    %v447 = vunpack.c.l.b16 %v185
    %v448 = vunpack.c.h.b16 %v185
    %v449 = vunpack.c.l.b16 %v186
    %v450 = vunpack.c.h.b16 %v186
    %v451 = vunpack.c.l.b16 %v187
    %v452 = vunpack.c.l.b16 %v188
    %v453 = vunpack.c.h.b16 %v188
    %v454 = vunpack.c.l.b16 %v189
    %v455 = vunpack.c.h.b16 %v189
    %v456 = vunpack.c.l.b16 %v190
    %v457 = vunpack.c.h.b16 %v190
    %v458 = vunpack.c.l.b16 %v191
    %v459 = vunpack.c.l.b16 %v192
    %v460 = vunpack.c.h.b16 %v192
    %v461 = vunpack.c.l.b16 %v193
    %v462 = vunpack.c.h.b16 %v193
    %v463 = vunpack.c.l.b16 %v194
    %v464 = vunpack.c.h.b16 %v194
    %v465 = vunpack.c.l.b16 %v195
    %v466 = vunpack.c.l.b16 %v196
    %v467 = vunpack.c.h.b16 %v196
    %v468 = vunpack.c.l.b16 %v197
    %v469 = vunpack.c.h.b16 %v197
    %v470 = vunpack.c.l.b16 %v198
    %v471 = vunpack.c.h.b16 %v198
    %v472 = vunpack.c.l.b16 %v199
    %v473 = vunpack.c.l.b16 %v200
    %v474 = vunpack.c.h.b16 %v200
    %v475 = vunpack.c.l.b16 %v201
    %v476 = vunpack.c.h.b16 %v201
    %v477 = vunpack.c.l.b16 %v202
    %v478 = vunpack.c.h.b16 %v202
    %v479 = vunpack.c.l.b16 %v203
    %v480 = vunpack.c.l.b16 %v204
    %v481 = vunpack.c.h.b16 %v204
    %v482 = vunpack.c.l.b16 %v205
    %v483 = vunpack.c.h.b16 %v205
    %v484 = vunpack.c.l.b16 %v206
    %v485 = vunpack.c.h.b16 %v206
    %v486 = vunpack.c.l.b16 %v207
    %v487 = vunpack.c.l.b16 %v208
    %v488 = vunpack.c.h.b16 %v208
    %v489 = vunpack.c.l.b16 %v209
    %v490 = vunpack.c.h.b16 %v209
    %v491 = vunpack.c.l.b16 %v210
    %v492 = vunpack.c.h.b16 %v210
    %v493 = vunpack.c.l.b16 %v211
    %v494 = vunpack.c.l.b16 %v212
    %v495 = vunpack.c.h.b16 %v212
    %v496 = vunpack.c.l.b16 %v213
    %v497 = vunpack.c.h.b16 %v213
    %v498 = vunpack.c.l.b16 %v214
    %v499 = vunpack.c.h.b16 %v214
    %v500 = vunpack.c.l.b16 %v215
    %v501 = vunpack.c.l.b16 %v216
    %v502 = vunpack.c.h.b16 %v216
    %v503 = vunpack.c.l.b16 %v217
    %v504 = vunpack.c.h.b16 %v217
    %v505 = vunpack.c.l.b16 %v218
    %v506 = vunpack.c.h.b16 %v218
    %v507 = vunpack.c.l.b16 %v219
    %v508 = vunpack.c.l.b16 %v220
    %v509 = vunpack.c.h.b16 %v220
    %v510 = vunpack.c.l.b16 %v221
    %v511 = vunpack.c.h.b16 %v221
    %v512 = vunpack.c.l.b16 %v222
    %v513 = vunpack.c.h.b16 %v222
    %v514 = vunpack.c.l.b16 %v223
    %v515 = vunpack.c.l.b16 %v224
    %v516 = vunpack.c.h.b16 %v224
    %v517 = vunpack.c.l.b16 %v225
    %v518 = vunpack.c.h.b16 %v225
    %v519 = vunpack.c.l.b16 %v226
    %v520 = vunpack.c.h.b16 %v226
    %v521 = vunpack.c.l.b16 %v227
    %v522 = vunpack.c.l.b16 %v228
    %v523 = vunpack.c.h.b16 %v228
    %v524 = vunpack.c.l.b16 %v229
    %v525 = vunpack.c.h.b16 %v229
    %v526 = vunpack.c.l.b16 %v230
    %v527 = vunpack.c.h.b16 %v230
    %v528 = vunpack.c.l.b16 %v231
    %v529 = vunpack.c.l.b16 %v232
    %v530 = vunpack.c.h.b16 %v232
    %v531 = vunpack.c.l.b16 %v233
    %v532 = vunpack.c.h.b16 %v233
    %v533 = vunpack.c.l.b16 %v234
    %v534 = vunpack.c.h.b16 %v234
    %v535 = vunpack.c.l.b16 %v235
    %v536 = vunpack.c.l.b16 %v236
    %v537 = vunpack.c.h.b16 %v236
    %v538 = vunpack.c.l.b16 %v237
    %v539 = vunpack.c.h.b16 %v237
    %v540 = vunpack.c.l.b16 %v238
    %v541 = vunpack.c.h.b16 %v238
    %v542 = vunpack.c.l.b16 %v239
    %v543 = vunpack.c.l.b16 %v240
    %v544 = vunpack.c.h.b16 %v240
    %v545 = vunpack.c.l.b16 %v241
    %v546 = vunpack.c.h.b16 %v241
    %v547 = vunpack.c.l.b16 %v242
    %v548 = vunpack.c.h.b16 %v242
    %v549 = vunpack.c.l.b16 %v243
    %v550 = vunpack.c.l.b16 %v244
    %v551 = vunpack.c.h.b16 %v244
    %v552 = vunpack.c.l.b16 %v245
    %v553 = vunpack.c.h.b16 %v245
    %v554 = vunpack.c.l.b16 %v246
    %v555 = vunpack.c.h.b16 %v246
    %v556 = vunpack.c.l.b16 %v247
    %v557 = vunpack.c.l.b16 %v248
    %v558 = vunpack.c.h.b16 %v248
    %v559 = vunpack.c.l.b16 %v249
    %v560 = vunpack.c.h.b16 %v249
    %v561 = vunpack.c.l.b16 %v250
    %v562 = vunpack.c.h.b16 %v250
    %v563 = vunpack.c.l.b16 %v251
    %v564 = vpack.c.b16 %v396, %v389
    %v565 = vpack.c.b16 %v397, %v390
    %v566 = vpack.c.b16 %v398, %v391
    %v567 = vpack.c.b16 %v399, %v392
    %v568 = vpack.c.b16 %v400, %v393
    %v569 = vpack.c.b16 %v401, %v394
    %v570 = vpack.c.b16 %v402, %v395
    %v571 = vpack.c.b16 %v410, %v403
    %v572 = vpack.c.b16 %v411, %v404
    %v573 = vpack.c.b16 %v412, %v405
    %v574 = vpack.c.b16 %v413, %v406
    %v575 = vpack.c.b16 %v414, %v407
    %v576 = vpack.c.b16 %v415, %v408
    %v577 = vpack.c.b16 %v416, %v409
    %v578 = vpack.c.b16 %v424, %v417
    %v579 = vpack.c.b16 %v425, %v418
    %v580 = vpack.c.b16 %v426, %v419
    %v581 = vpack.c.b16 %v427, %v420
    %v582 = vpack.c.b16 %v428, %v421
    %v583 = vpack.c.b16 %v429, %v422
    %v584 = vpack.c.b16 %v430, %v423
    %v585 = vpack.c.b16 %v438, %v431
    %v586 = vpack.c.b16 %v439, %v432
    %v587 = vpack.c.b16 %v440, %v433
    %v588 = vpack.c.b16 %v441, %v434
    %v589 = vpack.c.b16 %v442, %v435
    %v590 = vpack.c.b16 %v443, %v436
    %v591 = vpack.c.b16 %v444, %v437
    %v592 = vpack.c.b16 %v452, %v445
    %v593 = vpack.c.b16 %v453, %v446
    %v594 = vpack.c.b16 %v454, %v447
    %v595 = vpack.c.b16 %v455, %v448
    %v596 = vpack.c.b16 %v456, %v449
    %v597 = vpack.c.b16 %v457, %v450
    %v598 = vpack.c.b16 %v458, %v451
    %v599 = vpack.c.b16 %v466, %v459
    %v600 = vpack.c.b16 %v467, %v460
    %v601 = vpack.c.b16 %v468, %v461
    %v602 = vpack.c.b16 %v469, %v462
    %v603 = vpack.c.b16 %v470, %v463
    %v604 = vpack.c.b16 %v471, %v464
    %v605 = vpack.c.b16 %v472, %v465
    %v606 = vpack.c.b16 %v480, %v473
    %v607 = vpack.c.b16 %v481, %v474
    %v608 = vpack.c.b16 %v482, %v475
    %v609 = vpack.c.b16 %v483, %v476
    %v610 = vpack.c.b16 %v484, %v477
    %v611 = vpack.c.b16 %v485, %v478
    %v612 = vpack.c.b16 %v486, %v479
    %v613 = vpack.c.b16 %v494, %v487
    %v614 = vpack.c.b16 %v495, %v488
    %v615 = vpack.c.b16 %v496, %v489
    %v616 = vpack.c.b16 %v497, %v490
    %v617 = vpack.c.b16 %v498, %v491
    %v618 = vpack.c.b16 %v499, %v492
    %v619 = vpack.c.b16 %v500, %v493
    %v620 = vpack.c.b16 %v508, %v501
    %v621 = vpack.c.b16 %v509, %v502
    %v622 = vpack.c.b16 %v510, %v503
    %v623 = vpack.c.b16 %v511, %v504
    %v624 = vpack.c.b16 %v512, %v505
    %v625 = vpack.c.b16 %v513, %v506
    %v626 = vpack.c.b16 %v514, %v507
    %v627 = vpack.c.b16 %v522, %v515
    %v628 = vpack.c.b16 %v523, %v516
    %v629 = vpack.c.b16 %v524, %v517
    %v630 = vpack.c.b16 %v525, %v518
    %v631 = vpack.c.b16 %v526, %v519
    %v632 = vpack.c.b16 %v527, %v520
    %v633 = vpack.c.b16 %v528, %v521
    %v634 = vpack.c.b16 %v536, %v529
    %v635 = vpack.c.b16 %v537, %v530
    %v636 = vpack.c.b16 %v538, %v531
    %v637 = vpack.c.b16 %v539, %v532
    %v638 = vpack.c.b16 %v540, %v533
    %v639 = vpack.c.b16 %v541, %v534
    %v640 = vpack.c.b16 %v542, %v535
    %v641 = vpack.c.b16 %v550, %v543
    %v642 = vpack.c.b16 %v551, %v544
    %v643 = vpack.c.b16 %v552, %v545
    %v644 = vpack.c.b16 %v553, %v546
    %v645 = vpack.c.b16 %v554, %v547
    %v646 = vpack.c.b16 %v555, %v548
    %v647 = vpack.c.b16 %v556, %v549
    %v648 = vpack.c.b16 %v557, %v557
    %v649 = vpack.c.b16 %v558, %v558
    %v650 = vpack.c.b16 %v559, %v559
    %v651 = vpack.c.b16 %v560, %v560
    %v652 = vpack.c.b16 %v561, %v561
    %v653 = vpack.c.b16 %v562, %v562
    %v654 = vpack.c.b16 %v563, %v563
    %vm739 = vcmask 556032
    %v741 = vsel %vm739, %v151, 0
    %vm743 = vcmask 1041408
    %v745 = vsel %vm743, %v648, 0
    %v748 = vsel %vm743, %v649, 0
    %v751 = vsel %vm743, %v650, 0
    %v754 = vsel %vm743, %v651, 0
    %v757 = vsel %vm743, %v652, 0
    %v760 = vsel %vm743, %v653, 0
    %v763 = vsel %vm743, %v654, 0
    %765 = vmatprep.subr.bf16.mxu0 %v565
    %766 = vmatpush1.bf16.msra.mxu0 %v564
    %767 = vmatprep.subr.bf16.mxu0 %v572
    %768 = vmatpush1.bf16.msra.mxu0 %v571
    %769 = vmatprep.subr.bf16.mxu0 %v579
    %770 = vmatpush1.bf16.msra.mxu0 %v578
    %771 = vmatprep.subr.bf16.mxu0 %v586
    %772 = vmatpush1.bf16.msra.mxu0 %v585
    %773 = vmatprep.subr.bf16.mxu0 %v593
    %774 = vmatpush1.bf16.msra.mxu0 %v592
    %775 = vmatprep.subr.bf16.mxu0 %v600
    %776 = vmatpush1.bf16.msra.mxu0 %v599
    %777 = vmatprep.subr.bf16.mxu0 %v607
    %778 = vmatpush1.bf16.msra.mxu0 %v606
    %779 = vmatprep.subr.bf16.mxu0 %v614
    %780 = vmatpush1.bf16.msra.mxu0 %v613
    %781 = vmatprep.subr.bf16.mxu0 %v621
    %782 = vmatpush1.bf16.msra.mxu0 %v620
    %783 = vmatprep.subr.bf16.mxu0 %v628
    %784 = vmatpush1.bf16.msra.mxu0 %v627
    %785 = vmatprep.subr.bf16.mxu0 %v635
    %786 = vmatpush1.bf16.msra.mxu0 %v634
    %787 = vmatprep.subr.bf16.mxu0 %v642
    %788 = vmatpush1.bf16.msra.mxu0 %v641
    %789 = vmatprep.subr.bf16.mxu0 %v748
    %790 = vmatpush1.bf16.msra.mxu0 %v745
    %791 = vmatprep.subr.bf16.mxu0 0
    %792 = vmatpush1.bf16.msra.mxu0 0
    %793 = vmatprep.subr.bf16.mxu0 0
    %794 = vmatpush1.bf16.msra.mxu0 0
    %795 = vmatprep.subr.bf16.mxu0 0
    %796 = vmatpush1.bf16.msra.mxu0 0
    %797 = vmatprep.mubr.bf16.mxu0 %v741
    %798 = vmatmul.mubr.bf16.gmra.mrb[0].mxu0 %v150
    %v799 = vpop.f32.mrb[0].mxu0
    %v800 = vadd.f32 %v257, %v799
    %v801 = vpop.f32.mrb[0].mxu0
    %v802 = vadd.f32 %v261, %v801
    %v803 = vpop.f32.mrb[0].mxu0
    %v804 = vpop.f32.mrb[0].mxu0
    %805 = vdwg.mxu0
    %806 = vmatprep.subr.bf16.mxu0 %v567
    %807 = vmatpush1.bf16.msra.mxu0 %v566
    %808 = vmatprep.subr.bf16.mxu0 %v574
    %809 = vmatpush1.bf16.msra.mxu0 %v573
    %810 = vmatprep.subr.bf16.mxu0 %v581
    %811 = vmatpush1.bf16.msra.mxu0 %v580
    %812 = vmatprep.subr.bf16.mxu0 %v588
    %813 = vmatpush1.bf16.msra.mxu0 %v587
    %814 = vmatprep.subr.bf16.mxu0 %v595
    %815 = vmatpush1.bf16.msra.mxu0 %v594
    %816 = vmatprep.subr.bf16.mxu0 %v602
    %817 = vmatpush1.bf16.msra.mxu0 %v601
    %818 = vmatprep.subr.bf16.mxu0 %v609
    %819 = vmatpush1.bf16.msra.mxu0 %v608
    %820 = vmatprep.subr.bf16.mxu0 %v616
    %821 = vmatpush1.bf16.msra.mxu0 %v615
    %822 = vmatprep.subr.bf16.mxu0 %v623
    %823 = vmatpush1.bf16.msra.mxu0 %v622
    %824 = vmatprep.subr.bf16.mxu0 %v630
    %825 = vmatpush1.bf16.msra.mxu0 %v629
    %826 = vmatprep.subr.bf16.mxu0 %v637
    %827 = vmatpush1.bf16.msra.mxu0 %v636
    %828 = vmatprep.subr.bf16.mxu0 %v644
    %829 = vmatpush1.bf16.msra.mxu0 %v643
    %830 = vmatprep.subr.bf16.mxu0 %v754
    %831 = vmatpush1.bf16.msra.mxu0 %v751
    %832 = vmatprep.subr.bf16.mxu0 0
    %833 = vmatpush1.bf16.msra.mxu0 0
    %834 = vmatprep.subr.bf16.mxu0 0
    %835 = vmatpush1.bf16.msra.mxu0 0
    %836 = vmatprep.subr.bf16.mxu0 0
    %837 = vmatpush1.bf16.msra.mxu0 0
    %838 = vmatprep.mubr.bf16.mxu0 %v741
    %839 = vmatmul.mubr.bf16.gmra.mrb[0].mxu0 %v150
    %v840 = vpop.f32.mrb[0].mxu0
    %v841 = vadd.f32 %v265, %v840
    %v842 = vpop.f32.mrb[0].mxu0
    %v843 = vadd.f32 %v269, %v842
    %v844 = vpop.f32.mrb[0].mxu0
    %v845 = vpop.f32.mrb[0].mxu0
    %846 = vdwg.mxu0
    %847 = vmatprep.subr.bf16.mxu0 %v569
    %848 = vmatpush1.bf16.msra.mxu0 %v568
    %849 = vmatprep.subr.bf16.mxu0 %v576
    %850 = vmatpush1.bf16.msra.mxu0 %v575
    %851 = vmatprep.subr.bf16.mxu0 %v583
    %852 = vmatpush1.bf16.msra.mxu0 %v582
    %853 = vmatprep.subr.bf16.mxu0 %v590
    %854 = vmatpush1.bf16.msra.mxu0 %v589
    %855 = vmatprep.subr.bf16.mxu0 %v597
    %856 = vmatpush1.bf16.msra.mxu0 %v596
    %857 = vmatprep.subr.bf16.mxu0 %v604
    %858 = vmatpush1.bf16.msra.mxu0 %v603
    %859 = vmatprep.subr.bf16.mxu0 %v611
    %860 = vmatpush1.bf16.msra.mxu0 %v610
    %861 = vmatprep.subr.bf16.mxu0 %v618
    %862 = vmatpush1.bf16.msra.mxu0 %v617
    %863 = vmatprep.subr.bf16.mxu0 %v625
    %864 = vmatpush1.bf16.msra.mxu0 %v624
    %865 = vmatprep.subr.bf16.mxu0 %v632
    %866 = vmatpush1.bf16.msra.mxu0 %v631
    %867 = vmatprep.subr.bf16.mxu0 %v639
    %868 = vmatpush1.bf16.msra.mxu0 %v638
    %869 = vmatprep.subr.bf16.mxu0 %v646
    %870 = vmatpush1.bf16.msra.mxu0 %v645
    %871 = vmatprep.subr.bf16.mxu0 %v760
    %872 = vmatpush1.bf16.msra.mxu0 %v757
    %873 = vmatprep.subr.bf16.mxu0 0
    %874 = vmatpush1.bf16.msra.mxu0 0
    %875 = vmatprep.subr.bf16.mxu0 0
    %876 = vmatpush1.bf16.msra.mxu0 0
    %877 = vmatprep.subr.bf16.mxu0 0
    %878 = vmatpush1.bf16.msra.mxu0 0
    %879 = vmatprep.mubr.bf16.mxu0 %v741
    %880 = vmatmul.mubr.bf16.gmra.mrb[0].mxu0 %v150
    %v881 = vpop.f32.mrb[0].mxu0
    %v882 = vadd.f32 %v273, %v881
    %v883 = vpop.f32.mrb[0].mxu0
    %v884 = vadd.f32 %v277, %v883
    %v885 = vpop.f32.mrb[0].mxu0
    %v886 = vpop.f32.mrb[0].mxu0
    %887 = vdwg.mxu0
    %888 = vmatprep.subr.bf16.mxu0 0
    %889 = vmatpush1.bf16.msra.mxu0 %v570
    %890 = vmatprep.subr.bf16.mxu0 0
    %891 = vmatpush1.bf16.msra.mxu0 %v577
    %892 = vmatprep.subr.bf16.mxu0 0
    %893 = vmatpush1.bf16.msra.mxu0 %v584
    %894 = vmatprep.subr.bf16.mxu0 0
    %895 = vmatpush1.bf16.msra.mxu0 %v591
    %896 = vmatprep.subr.bf16.mxu0 0
    %897 = vmatpush1.bf16.msra.mxu0 %v598
    %898 = vmatprep.subr.bf16.mxu0 0
    %899 = vmatpush1.bf16.msra.mxu0 %v605
    %900 = vmatprep.subr.bf16.mxu0 0
    %901 = vmatpush1.bf16.msra.mxu0 %v612
    %902 = vmatprep.subr.bf16.mxu0 0
    %903 = vmatpush1.bf16.msra.mxu0 %v619
    %904 = vmatprep.subr.bf16.mxu0 0
    %905 = vmatpush1.bf16.msra.mxu0 %v626
    %906 = vmatprep.subr.bf16.mxu0 0
    %907 = vmatpush1.bf16.msra.mxu0 %v633
    %908 = vmatprep.subr.bf16.mxu0 0
    %909 = vmatpush1.bf16.msra.mxu0 %v640
    %910 = vmatprep.subr.bf16.mxu0 0
    %911 = vmatpush1.bf16.msra.mxu0 %v647
    %912 = vmatprep.subr.bf16.mxu0 0
    %913 = vmatpush1.bf16.msra.mxu0 %v763
    %914 = vmatprep.subr.bf16.mxu0 0
    %915 = vmatpush1.bf16.msra.mxu0 0
    %916 = vmatprep.subr.bf16.mxu0 0
    %917 = vmatpush1.bf16.msra.mxu0 0
    %918 = vmatprep.subr.bf16.mxu0 0
    %919 = vmatpush1.bf16.msra.mxu0 0
    %920 = vmatprep.mubr.bf16.mxu0 %v741
    %921 = vmatmul.mubr.bf16.gmra.mrb[0].mxu0 %v150
    %v922 = vpop.f32.mrb[0].mxu0
    %v923 = vadd.f32 %v281, %v922
    %v924 = vpop.f32.mrb[0].mxu0
    %v925 = vpop.f32.mrb[0].mxu0
    %v926 = vpop.f32.mrb[0].mxu0
    %927 = vdwg.mxu0
    %v928 = vmax.f32 %v800, 0.0
    %v929 = vmax.f32 %v802, 0.0
    %v930 = vmax.f32 %v841, 0.0
    %v931 = vmax.f32 %v843, 0.0
    %v932 = vmax.f32 %v882, 0.0
    %v933 = vmax.f32 %v884, 0.0
    %v934 = vmax.f32 %v923, 0.0
    %v935 = vpack.c.bf16 %v928, %v928
    %v936 = vpack.c.bf16 %v929, %v929
    %v937 = vpack.c.bf16 %v930, %v930
    %v938 = vpack.c.bf16 %v931, %v931
    %v939 = vpack.c.bf16 %v932, %v932
    %v940 = vpack.c.bf16 %v933, %v933
    %v941 = vpack.c.bf16 %v934, %v934
    %v942 = vld [vmem:[#allocation7] sm:$0xff]
    %v943 = vld [vmem:[#allocation7 + $0x8] sm:$0xff]
    %v944 = vld [vmem:[#allocation7 + $0x10] sm:$0xff]
    %v945 = vld [vmem:[#allocation7 + $0x18] sm:$0xff]
    %v946 = vld [vmem:[#allocation7 + $0x20] sm:$0xff]
    %v947 = vld [vmem:[#allocation7 + $0x28] sm:$0xff]
    %v948 = vld [vmem:[#allocation7 + $0x30] sm:$0xf]
    %v949 = vld [vmem:[#allocation7 + $0x34] sm:$0xff]
    %v950 = vld [vmem:[#allocation7 + $0x3c] sm:$0xff]
    %v951 = vld [vmem:[#allocation7 + $0x44] sm:$0xff]
    %v952 = vld [vmem:[#allocation7 + $0x4c] sm:$0xff]
    %v953 = vld [vmem:[#allocation7 + $0x54] sm:$0xff]
    %v954 = vld [vmem:[#allocation7 + $0x5c] sm:$0xff]
    %v955 = vld [vmem:[#allocation7 + $0x64] sm:$0xf]
    %v956 = vld [vmem:[#allocation7 + $0x68] sm:$0xff]
    %v957 = vld [vmem:[#allocation7 + $0x70] sm:$0xff]
    %v958 = vld [vmem:[#allocation7 + $0x78] sm:$0xff]
    %v959 = vld [vmem:[#allocation7 + $0x80] sm:$0xff]
    %v960 = vld [vmem:[#allocation7 + $0x88] sm:$0xff]
    %v961 = vld [vmem:[#allocation7 + $0x90] sm:$0xff]
    %v962 = vld [vmem:[#allocation7 + $0x98] sm:$0xf]
    %v963 = vld [vmem:[#allocation7 + $0x9c] sm:$0xff]
    %v964 = vld [vmem:[#allocation7 + $0xa4] sm:$0xff]
    %v965 = vld [vmem:[#allocation7 + $0xac] sm:$0xff]
    %v966 = vld [vmem:[#allocation7 + $0xb4] sm:$0xff]
    %v967 = vld [vmem:[#allocation7 + $0xbc] sm:$0xff]
    %v968 = vld [vmem:[#allocation7 + $0xc4] sm:$0xff]
    %v969 = vld [vmem:[#allocation7 + $0xcc] sm:$0xf]
    %v970 = vld [vmem:[#allocation7 + $0xd0] sm:$0xff]
    %v971 = vld [vmem:[#allocation7 + $0xd8] sm:$0xff]
    %v972 = vld [vmem:[#allocation7 + $0xe0] sm:$0xff]
    %v973 = vld [vmem:[#allocation7 + $0xe8] sm:$0xff]
    %v974 = vld [vmem:[#allocation7 + $0xf0] sm:$0xff]
    %v975 = vld [vmem:[#allocation7 + $0xf8] sm:$0xff]
    %v976 = vld [vmem:[#allocation7 + $0x100] sm:$0xf]
    %v977 = vld [vmem:[#allocation7 + $0x104] sm:$0xff]
    %v978 = vld [vmem:[#allocation7 + $0x10c] sm:$0xff]
    %v979 = vld [vmem:[#allocation7 + $0x114] sm:$0xff]
    %v980 = vld [vmem:[#allocation7 + $0x11c] sm:$0xff]
    %v981 = vld [vmem:[#allocation7 + $0x124] sm:$0xff]
    %v982 = vld [vmem:[#allocation7 + $0x12c] sm:$0xff]
    %v983 = vld [vmem:[#allocation7 + $0x134] sm:$0xf]
    %v984 = vld [vmem:[#allocation7 + $0x138] sm:$0xff]
    %v985 = vld [vmem:[#allocation7 + $0x140] sm:$0xff]
    %v986 = vld [vmem:[#allocation7 + $0x148] sm:$0xff]
    %v987 = vld [vmem:[#allocation7 + $0x150] sm:$0xff]
    %v988 = vld [vmem:[#allocation7 + $0x158] sm:$0xff]
    %v989 = vld [vmem:[#allocation7 + $0x160] sm:$0xff]
    %v990 = vld [vmem:[#allocation7 + $0x168] sm:$0xf]
    %v991 = vld [vmem:[#allocation7 + $0x16c] sm:$0xff]
    %v992 = vld [vmem:[#allocation7 + $0x174] sm:$0xff]
    %v993 = vld [vmem:[#allocation7 + $0x17c] sm:$0xff]
    %v994 = vld [vmem:[#allocation7 + $0x184] sm:$0xff]
    %v995 = vld [vmem:[#allocation7 + $0x18c] sm:$0xff]
    %v996 = vld [vmem:[#allocation7 + $0x194] sm:$0xff]
    %v997 = vld [vmem:[#allocation7 + $0x19c] sm:$0xf]
    %v998 = vld [vmem:[#allocation7 + $0x1a0] sm:$0xff]
    %v999 = vld [vmem:[#allocation7 + $0x1a8] sm:$0xff]
    %v1000 = vld [vmem:[#allocation7 + $0x1b0] sm:$0xff]
    %v1001 = vld [vmem:[#allocation7 + $0x1b8] sm:$0xff]
    %v1002 = vld [vmem:[#allocation7 + $0x1c0] sm:$0xff]
    %v1003 = vld [vmem:[#allocation7 + $0x1c8] sm:$0xff]
    %v1004 = vld [vmem:[#allocation7 + $0x1d0] sm:$0xf]
    %v1005 = vld [vmem:[#allocation7 + $0x1d4] sm:$0xff]
    %v1006 = vld [vmem:[#allocation7 + $0x1dc] sm:$0xff]
    %v1007 = vld [vmem:[#allocation7 + $0x1e4] sm:$0xff]
    %v1008 = vld [vmem:[#allocation7 + $0x1ec] sm:$0xff]
    %v1009 = vld [vmem:[#allocation7 + $0x1f4] sm:$0xff]
    %v1010 = vld [vmem:[#allocation7 + $0x1fc] sm:$0xff]
    %v1011 = vld [vmem:[#allocation7 + $0x204] sm:$0xf]
    %v1012 = vld [vmem:[#allocation7 + $0x208] sm:$0xff]
    %v1013 = vld [vmem:[#allocation7 + $0x210] sm:$0xff]
    %v1014 = vld [vmem:[#allocation7 + $0x218] sm:$0xff]
    %v1015 = vld [vmem:[#allocation7 + $0x220] sm:$0xff]
    %v1016 = vld [vmem:[#allocation7 + $0x228] sm:$0xff]
    %v1017 = vld [vmem:[#allocation7 + $0x230] sm:$0xff]
    %v1018 = vld [vmem:[#allocation7 + $0x238] sm:$0xf]
    %v1019 = vld [vmem:[#allocation7 + $0x23c] sm:$0xff]
    %v1020 = vld [vmem:[#allocation7 + $0x244] sm:$0xff]
    %v1021 = vld [vmem:[#allocation7 + $0x24c] sm:$0xff]
    %v1022 = vld [vmem:[#allocation7 + $0x254] sm:$0xff]
    %v1023 = vld [vmem:[#allocation7 + $0x25c] sm:$0xff]
    %v1024 = vld [vmem:[#allocation7 + $0x264] sm:$0xff]
    %v1025 = vld [vmem:[#allocation7 + $0x26c] sm:$0xf]
    %v1026 = vld [vmem:[#allocation7 + $0x270] sm:$0xff]
    %v1027 = vld [vmem:[#allocation7 + $0x278] sm:$0xff]
    %v1028 = vld [vmem:[#allocation7 + $0x280] sm:$0xff]
    %v1029 = vld [vmem:[#allocation7 + $0x288] sm:$0xff]
    %v1030 = vld [vmem:[#allocation7 + $0x290] sm:$0xff]
    %v1031 = vld [vmem:[#allocation7 + $0x298] sm:$0xff]
    %v1032 = vld [vmem:[#allocation7 + $0x2a0] sm:$0xf]
    %v1033 = vld [vmem:[#allocation7 + $0x2a4] sm:$0xff]
    %v1034 = vld [vmem:[#allocation7 + $0x2ac] sm:$0xff]
    %v1035 = vld [vmem:[#allocation7 + $0x2b4] sm:$0xff]
    %v1036 = vld [vmem:[#allocation7 + $0x2bc] sm:$0xff]
    %v1037 = vld [vmem:[#allocation7 + $0x2c4] sm:$0xff]
    %v1038 = vld [vmem:[#allocation7 + $0x2cc] sm:$0xff]
    %v1039 = vld [vmem:[#allocation7 + $0x2d4] sm:$0xf]
    %v1040 = vld [vmem:[#allocation7 + $0x2d8] sm:$0xff]
    %v1041 = vld [vmem:[#allocation7 + $0x2e0] sm:$0xff]
    %v1042 = vld [vmem:[#allocation7 + $0x2e8] sm:$0xff]
    %v1043 = vld [vmem:[#allocation7 + $0x2f0] sm:$0xff]
    %v1044 = vld [vmem:[#allocation7 + $0x2f8] sm:$0xff]
    %v1045 = vld [vmem:[#allocation7 + $0x300] sm:$0xff]
    %v1046 = vld [vmem:[#allocation7 + $0x308] sm:$0xf]
    %v1047 = vld [vmem:[#allocation7 + $0x30c] sm:$0xff]
    %v1048 = vld [vmem:[#allocation7 + $0x314] sm:$0xff]
    %v1049 = vld [vmem:[#allocation7 + $0x31c] sm:$0xff]
    %v1050 = vld [vmem:[#allocation7 + $0x324] sm:$0xff]
    %v1051 = vld [vmem:[#allocation7 + $0x32c] sm:$0xff]
    %v1052 = vld [vmem:[#allocation7 + $0x334] sm:$0xff]
    %v1053 = vld [vmem:[#allocation7 + $0x33c] sm:$0xf]
    %v1054 = vld [vmem:[#allocation7 + $0x340] sm:$0xff]
    %v1055 = vld [vmem:[#allocation7 + $0x348] sm:$0xff]
    %v1056 = vld [vmem:[#allocation7 + $0x350] sm:$0xff]
    %v1057 = vld [vmem:[#allocation7 + $0x358] sm:$0xff]
    %v1058 = vld [vmem:[#allocation7 + $0x360] sm:$0xff]
    %v1059 = vld [vmem:[#allocation7 + $0x368] sm:$0xff]
    %v1060 = vld [vmem:[#allocation7 + $0x370] sm:$0xf]
    %v1061 = vld [vmem:[#allocation7 + $0x374] sm:$0xff]
    %v1062 = vld [vmem:[#allocation7 + $0x37c] sm:$0xff]
    %v1063 = vld [vmem:[#allocation7 + $0x384] sm:$0xff]
    %v1064 = vld [vmem:[#allocation7 + $0x38c] sm:$0xff]
    %v1065 = vld [vmem:[#allocation7 + $0x394] sm:$0xff]
    %v1066 = vld [vmem:[#allocation7 + $0x39c] sm:$0xff]
    %v1067 = vld [vmem:[#allocation7 + $0x3a4] sm:$0xf]
    %v1068 = vld [vmem:[#allocation7 + $0x3a8] sm:$0xff]
    %v1069 = vld [vmem:[#allocation7 + $0x3b0] sm:$0xff]
    %v1070 = vld [vmem:[#allocation7 + $0x3b8] sm:$0xff]
    %v1071 = vld [vmem:[#allocation7 + $0x3c0] sm:$0xff]
    %v1072 = vld [vmem:[#allocation7 + $0x3c8] sm:$0xff]
    %v1073 = vld [vmem:[#allocation7 + $0x3d0] sm:$0xff]
    %v1074 = vld [vmem:[#allocation7 + $0x3d8] sm:$0xf]
    %v1075 = vld [vmem:[#allocation7 + $0x3dc] sm:$0xff]
    %v1076 = vld [vmem:[#allocation7 + $0x3e4] sm:$0xff]
    %v1077 = vld [vmem:[#allocation7 + $0x3ec] sm:$0xff]
    %v1078 = vld [vmem:[#allocation7 + $0x3f4] sm:$0xff]
    %v1079 = vld [vmem:[#allocation7 + $0x3fc] sm:$0xff]
    %v1080 = vld [vmem:[#allocation7 + $0x404] sm:$0xff]
    %v1081 = vld [vmem:[#allocation7 + $0x40c] sm:$0xf]
    %v1082 = vld [vmem:[#allocation7 + $0x410] sm:$0xff]
    %v1083 = vld [vmem:[#allocation7 + $0x418] sm:$0xff]
    %v1084 = vld [vmem:[#allocation7 + $0x420] sm:$0xff]
    %v1085 = vld [vmem:[#allocation7 + $0x428] sm:$0xff]
    %v1086 = vld [vmem:[#allocation7 + $0x430] sm:$0xff]
    %v1087 = vld [vmem:[#allocation7 + $0x438] sm:$0xff]
    %v1088 = vld [vmem:[#allocation7 + $0x440] sm:$0xf]
    %v1089 = vld [vmem:[#allocation7 + $0x444] sm:$0xff]
    %v1090 = vld [vmem:[#allocation7 + $0x44c] sm:$0xff]
    %v1091 = vld [vmem:[#allocation7 + $0x454] sm:$0xff]
    %v1092 = vld [vmem:[#allocation7 + $0x45c] sm:$0xff]
    %v1093 = vld [vmem:[#allocation7 + $0x464] sm:$0xff]
    %v1094 = vld [vmem:[#allocation7 + $0x46c] sm:$0xff]
    %v1095 = vld [vmem:[#allocation7 + $0x474] sm:$0xf]
    %v1096 = vld [vmem:[#allocation7 + $0x478] sm:$0xff]
    %v1097 = vld [vmem:[#allocation7 + $0x480] sm:$0xff]
    %v1098 = vld [vmem:[#allocation7 + $0x488] sm:$0xff]
    %v1099 = vld [vmem:[#allocation7 + $0x490] sm:$0xff]
    %v1100 = vld [vmem:[#allocation7 + $0x498] sm:$0xff]
    %v1101 = vld [vmem:[#allocation7 + $0x4a0] sm:$0xff]
    %v1102 = vld [vmem:[#allocation7 + $0x4a8] sm:$0xf]
    %v1103 = vld [vmem:[#allocation7 + $0x4ac] sm:$0xff]
    %v1104 = vld [vmem:[#allocation7 + $0x4b4] sm:$0xff]
    %v1105 = vld [vmem:[#allocation7 + $0x4bc] sm:$0xff]
    %v1106 = vld [vmem:[#allocation7 + $0x4c4] sm:$0xff]
    %v1107 = vld [vmem:[#allocation7 + $0x4cc] sm:$0xff]
    %v1108 = vld [vmem:[#allocation7 + $0x4d4] sm:$0xff]
    %v1109 = vld [vmem:[#allocation7 + $0x4dc] sm:$0xf]
    %v1110 = vld [vmem:[#allocation7 + $0x4e0] sm:$0xff]
    %v1111 = vld [vmem:[#allocation7 + $0x4e8] sm:$0xff]
    %v1112 = vld [vmem:[#allocation7 + $0x4f0] sm:$0xff]
    %v1113 = vld [vmem:[#allocation7 + $0x4f8] sm:$0xff]
    %v1114 = vld [vmem:[#allocation7 + $0x500] sm:$0xff]
    %v1115 = vld [vmem:[#allocation7 + $0x508] sm:$0xff]
    %v1116 = vld [vmem:[#allocation7 + $0x510] sm:$0xf]
    %v1117 = vld [vmem:[#allocation7 + $0x514] sm:$0xff]
    %v1118 = vld [vmem:[#allocation7 + $0x51c] sm:$0xff]
    %v1119 = vld [vmem:[#allocation7 + $0x524] sm:$0xff]
    %v1120 = vld [vmem:[#allocation7 + $0x52c] sm:$0xff]
    %v1121 = vld [vmem:[#allocation7 + $0x534] sm:$0xff]
    %v1122 = vld [vmem:[#allocation7 + $0x53c] sm:$0xff]
    %v1123 = vld [vmem:[#allocation7 + $0x544] sm:$0xf]
    %v1124 = vld [vmem:[#allocation7 + $0x548] sm:$0xff]
    %v1125 = vld [vmem:[#allocation7 + $0x550] sm:$0xff]
    %v1126 = vld [vmem:[#allocation7 + $0x558] sm:$0xff]
    %v1127 = vld [vmem:[#allocation7 + $0x560] sm:$0xff]
    %v1128 = vld [vmem:[#allocation7 + $0x568] sm:$0xff]
    %v1129 = vld [vmem:[#allocation7 + $0x570] sm:$0xff]
    %v1130 = vld [vmem:[#allocation7 + $0x578] sm:$0xf]
    %v1131 = vld [vmem:[#allocation7 + $0x57c] sm:$0xff]
    %v1132 = vld [vmem:[#allocation7 + $0x584] sm:$0xff]
    %v1133 = vld [vmem:[#allocation7 + $0x58c] sm:$0xff]
    %v1134 = vld [vmem:[#allocation7 + $0x594] sm:$0xff]
    %v1135 = vld [vmem:[#allocation7 + $0x59c] sm:$0xff]
    %v1136 = vld [vmem:[#allocation7 + $0x5a4] sm:$0xff]
    %v1137 = vld [vmem:[#allocation7 + $0x5ac] sm:$0xf]
    %v1138 = vld [vmem:[#allocation7 + $0x5b0] sm:$0xff]
    %v1139 = vld [vmem:[#allocation7 + $0x5b8] sm:$0xff]
    %v1140 = vld [vmem:[#allocation7 + $0x5c0] sm:$0xff]
    %v1141 = vld [vmem:[#allocation7 + $0x5c8] sm:$0xff]
    %v1142 = vld [vmem:[#allocation7 + $0x5d0] sm:$0xff]
    %v1143 = vld [vmem:[#allocation7 + $0x5d8] sm:$0xff]
    %v1144 = vld [vmem:[#allocation7 + $0x5e0] sm:$0xf]
    %v1145 = vld [vmem:[#allocation7 + $0x5e4] sm:$0xff]
    %v1146 = vld [vmem:[#allocation7 + $0x5ec] sm:$0xff]
    %v1147 = vld [vmem:[#allocation7 + $0x5f4] sm:$0xff]
    %v1148 = vld [vmem:[#allocation7 + $0x5fc] sm:$0xff]
    %v1149 = vld [vmem:[#allocation7 + $0x604] sm:$0xff]
    %v1150 = vld [vmem:[#allocation7 + $0x60c] sm:$0xff]
    %v1151 = vld [vmem:[#allocation7 + $0x614] sm:$0xf]
    %v1152 = vld [vmem:[#allocation7 + $0x618] sm:$0xff]
    %v1153 = vld [vmem:[#allocation7 + $0x620] sm:$0xff]
    %v1154 = vld [vmem:[#allocation7 + $0x628] sm:$0xff]
    %v1155 = vld [vmem:[#allocation7 + $0x630] sm:$0xff]
    %v1156 = vld [vmem:[#allocation7 + $0x638] sm:$0xff]
    %v1157 = vld [vmem:[#allocation7 + $0x640] sm:$0xff]
    %v1158 = vld [vmem:[#allocation7 + $0x648] sm:$0xf]
    %v1159 = vld [vmem:[#allocation7 + $0x64c] sm:$0xff]
    %v1160 = vld [vmem:[#allocation7 + $0x654] sm:$0xff]
    %v1161 = vld [vmem:[#allocation7 + $0x65c] sm:$0xff]
    %v1162 = vld [vmem:[#allocation7 + $0x664] sm:$0xff]
    %v1163 = vld [vmem:[#allocation7 + $0x66c] sm:$0xff]
    %v1164 = vld [vmem:[#allocation7 + $0x674] sm:$0xff]
    %v1165 = vld [vmem:[#allocation7 + $0x67c] sm:$0xf]
    %v1166 = vld [vmem:[#allocation7 + $0x680] sm:$0xff]
    %v1167 = vld [vmem:[#allocation7 + $0x688] sm:$0xff]
    %v1168 = vld [vmem:[#allocation7 + $0x690] sm:$0xff]
    %v1169 = vld [vmem:[#allocation7 + $0x698] sm:$0xff]
    %v1170 = vld [vmem:[#allocation7 + $0x6a0] sm:$0xff]
    %v1171 = vld [vmem:[#allocation7 + $0x6a8] sm:$0xff]
    %v1172 = vld [vmem:[#allocation7 + $0x6b0] sm:$0xf]
    %v1173 = vld [vmem:[#allocation7 + $0x6b4] sm:$0xff]
    %v1174 = vld [vmem:[#allocation7 + $0x6bc] sm:$0xff]
    %v1175 = vld [vmem:[#allocation7 + $0x6c4] sm:$0xff]
    %v1176 = vld [vmem:[#allocation7 + $0x6cc] sm:$0xff]
    %v1177 = vld [vmem:[#allocation7 + $0x6d4] sm:$0xff]
    %v1178 = vld [vmem:[#allocation7 + $0x6dc] sm:$0xff]
    %v1179 = vld [vmem:[#allocation7 + $0x6e4] sm:$0xf]
    %v1180 = vld [vmem:[#allocation7 + $0x6e8] sm:$0xff]
    %v1181 = vld [vmem:[#allocation7 + $0x6f0] sm:$0xff]
    %v1182 = vld [vmem:[#allocation7 + $0x6f8] sm:$0xff]
    %v1183 = vld [vmem:[#allocation7 + $0x700] sm:$0xff]
    %v1184 = vld [vmem:[#allocation7 + $0x708] sm:$0xff]
    %v1185 = vld [vmem:[#allocation7 + $0x710] sm:$0xff]
    %v1186 = vld [vmem:[#allocation7 + $0x718] sm:$0xf]
    %v1187 = vld [vmem:[#allocation7 + $0x71c] sm:$0xff]
    %v1188 = vld [vmem:[#allocation7 + $0x724] sm:$0xff]
    %v1189 = vld [vmem:[#allocation7 + $0x72c] sm:$0xff]
    %v1190 = vld [vmem:[#allocation7 + $0x734] sm:$0xff]
    %v1191 = vld [vmem:[#allocation7 + $0x73c] sm:$0xff]
    %v1192 = vld [vmem:[#allocation7 + $0x744] sm:$0xff]
    %v1193 = vld [vmem:[#allocation7 + $0x74c] sm:$0xf]
    %v1194 = vld [vmem:[#allocation7 + $0x750] sm:$0xff]
    %v1195 = vld [vmem:[#allocation7 + $0x758] sm:$0xff]
    %v1196 = vld [vmem:[#allocation7 + $0x760] sm:$0xff]
    %v1197 = vld [vmem:[#allocation7 + $0x768] sm:$0xff]
    %v1198 = vld [vmem:[#allocation7 + $0x770] sm:$0xff]
    %v1199 = vld [vmem:[#allocation7 + $0x778] sm:$0xff]
    %v1200 = vld [vmem:[#allocation7 + $0x780] sm:$0xf]
    %v1201 = vld [vmem:[#allocation7 + $0x784] sm:$0xff]
    %v1202 = vld [vmem:[#allocation7 + $0x78c] sm:$0xff]
    %v1203 = vld [vmem:[#allocation7 + $0x794] sm:$0xff]
    %v1204 = vld [vmem:[#allocation7 + $0x79c] sm:$0xff]
    %v1205 = vld [vmem:[#allocation7 + $0x7a4] sm:$0xff]
    %v1206 = vld [vmem:[#allocation7 + $0x7ac] sm:$0xff]
    %v1207 = vld [vmem:[#allocation7 + $0x7b4] sm:$0xf]
    %v1208 = vld [vmem:[#allocation7 + $0x7b8] sm:$0xff]
    %v1209 = vld [vmem:[#allocation7 + $0x7c0] sm:$0xff]
    %v1210 = vld [vmem:[#allocation7 + $0x7c8] sm:$0xff]
    %v1211 = vld [vmem:[#allocation7 + $0x7d0] sm:$0xff]
    %v1212 = vld [vmem:[#allocation7 + $0x7d8] sm:$0xff]
    %v1213 = vld [vmem:[#allocation7 + $0x7e0] sm:$0xff]
    %v1214 = vld [vmem:[#allocation7 + $0x7e8] sm:$0xf]
    %v1215 = vld [vmem:[#allocation7 + $0x7ec] sm:$0xff]
    %v1216 = vld [vmem:[#allocation7 + $0x7f4] sm:$0xff]
    %v1217 = vld [vmem:[#allocation7 + $0x7fc] sm:$0xff]
    %v1218 = vld [vmem:[#allocation7 + $0x804] sm:$0xff]
    %v1219 = vld [vmem:[#allocation7 + $0x80c] sm:$0xff]
    %v1220 = vld [vmem:[#allocation7 + $0x814] sm:$0xff]
    %v1221 = vld [vmem:[#allocation7 + $0x81c] sm:$0xf]
    %v1222 = vld [vmem:[#allocation7 + $0x820] sm:$0xff]
    %v1223 = vld [vmem:[#allocation7 + $0x828] sm:$0xff]
    %v1224 = vld [vmem:[#allocation7 + $0x830] sm:$0xff]
    %v1225 = vld [vmem:[#allocation7 + $0x838] sm:$0xff]
    %v1226 = vld [vmem:[#allocation7 + $0x840] sm:$0xff]
    %v1227 = vld [vmem:[#allocation7 + $0x848] sm:$0xff]
    %v1228 = vld [vmem:[#allocation7 + $0x850] sm:$0xf]
    %v1229 = vld [vmem:[#allocation7 + $0x854] sm:$0xff]
    %v1230 = vld [vmem:[#allocation7 + $0x85c] sm:$0xff]
    %v1231 = vld [vmem:[#allocation7 + $0x864] sm:$0xff]
    %v1232 = vld [vmem:[#allocation7 + $0x86c] sm:$0xff]
    %v1233 = vld [vmem:[#allocation7 + $0x874] sm:$0xff]
    %v1234 = vld [vmem:[#allocation7 + $0x87c] sm:$0xff]
    %v1235 = vld [vmem:[#allocation7 + $0x884] sm:$0xf]
    %v1236 = vld [vmem:[#allocation7 + $0x888] sm:$0xff]
    %v1237 = vld [vmem:[#allocation7 + $0x890] sm:$0xff]
    %v1238 = vld [vmem:[#allocation7 + $0x898] sm:$0xff]
    %v1239 = vld [vmem:[#allocation7 + $0x8a0] sm:$0xff]
    %v1240 = vld [vmem:[#allocation7 + $0x8a8] sm:$0xff]
    %v1241 = vld [vmem:[#allocation7 + $0x8b0] sm:$0xff]
    %v1242 = vld [vmem:[#allocation7 + $0x8b8] sm:$0xf]
    %v1243 = vld [vmem:[#allocation7 + $0x8bc] sm:$0xff]
    %v1244 = vld [vmem:[#allocation7 + $0x8c4] sm:$0xff]
    %v1245 = vld [vmem:[#allocation7 + $0x8cc] sm:$0xff]
    %v1246 = vld [vmem:[#allocation7 + $0x8d4] sm:$0xff]
    %v1247 = vld [vmem:[#allocation7 + $0x8dc] sm:$0xff]
    %v1248 = vld [vmem:[#allocation7 + $0x8e4] sm:$0xff]
    %v1249 = vld [vmem:[#allocation7 + $0x8ec] sm:$0xf]
    %v1250 = vld [vmem:[#allocation7 + $0x8f0] sm:$0xff]
    %v1251 = vld [vmem:[#allocation7 + $0x8f8] sm:$0xff]
    %v1252 = vld [vmem:[#allocation7 + $0x900] sm:$0xff]
    %v1253 = vld [vmem:[#allocation7 + $0x908] sm:$0xff]
    %v1254 = vld [vmem:[#allocation7 + $0x910] sm:$0xff]
    %v1255 = vld [vmem:[#allocation7 + $0x918] sm:$0xff]
    %v1256 = vld [vmem:[#allocation7 + $0x920] sm:$0xf]
    %v1257 = vld [vmem:[#allocation7 + $0x924] sm:$0xff]
    %v1258 = vld [vmem:[#allocation7 + $0x92c] sm:$0xff]
    %v1259 = vld [vmem:[#allocation7 + $0x934] sm:$0xff]
    %v1260 = vld [vmem:[#allocation7 + $0x93c] sm:$0xff]
    %v1261 = vld [vmem:[#allocation7 + $0x944] sm:$0xff]
    %v1262 = vld [vmem:[#allocation7 + $0x94c] sm:$0xff]
    %v1263 = vld [vmem:[#allocation7 + $0x954] sm:$0xf]
    %v1264 = vld [vmem:[#allocation7 + $0x958] sm:$0xff]
    %v1265 = vld [vmem:[#allocation7 + $0x960] sm:$0xff]
    %v1266 = vld [vmem:[#allocation7 + $0x968] sm:$0xff]
    %v1267 = vld [vmem:[#allocation7 + $0x970] sm:$0xff]
    %v1268 = vld [vmem:[#allocation7 + $0x978] sm:$0xff]
    %v1269 = vld [vmem:[#allocation7 + $0x980] sm:$0xff]
    %v1270 = vld [vmem:[#allocation7 + $0x988] sm:$0xf]
    %v1271 = vld [vmem:[#allocation7 + $0x98c] sm:$0xff]
    %v1272 = vld [vmem:[#allocation7 + $0x994] sm:$0xff]
    %v1273 = vld [vmem:[#allocation7 + $0x99c] sm:$0xff]
    %v1274 = vld [vmem:[#allocation7 + $0x9a4] sm:$0xff]
    %v1275 = vld [vmem:[#allocation7 + $0x9ac] sm:$0xff]
    %v1276 = vld [vmem:[#allocation7 + $0x9b4] sm:$0xff]
    %v1277 = vld [vmem:[#allocation7 + $0x9bc] sm:$0xf]
    %v1278 = vld [vmem:[#allocation7 + $0x9c0] sm:$0xff]
    %v1279 = vld [vmem:[#allocation7 + $0x9c8] sm:$0xff]
    %v1280 = vld [vmem:[#allocation7 + $0x9d0] sm:$0xff]
    %v1281 = vld [vmem:[#allocation7 + $0x9d8] sm:$0xff]
    %v1282 = vld [vmem:[#allocation7 + $0x9e0] sm:$0xff]
    %v1283 = vld [vmem:[#allocation7 + $0x9e8] sm:$0xff]
    %v1284 = vld [vmem:[#allocation7 + $0x9f0] sm:$0xf]
    %v1285 = vld [vmem:[#allocation7 + $0x9f4] sm:$0xff]
    %v1286 = vld [vmem:[#allocation7 + $0x9fc] sm:$0xff]
    %v1287 = vld [vmem:[#allocation7 + $0xa04] sm:$0xff]
    %v1288 = vld [vmem:[#allocation7 + $0xa0c] sm:$0xff]
    %v1289 = vld [vmem:[#allocation7 + $0xa14] sm:$0xff]
    %v1290 = vld [vmem:[#allocation7 + $0xa1c] sm:$0xff]
    %v1291 = vld [vmem:[#allocation7 + $0xa24] sm:$0xf]
    %v1292 = vld [vmem:[#allocation7 + $0xa28] sm:$0xff]
    %v1293 = vld [vmem:[#allocation7 + $0xa30] sm:$0xff]
    %v1294 = vld [vmem:[#allocation7 + $0xa38] sm:$0xff]
    %v1295 = vld [vmem:[#allocation7 + $0xa40] sm:$0xff]
    %v1296 = vld [vmem:[#allocation7 + $0xa48] sm:$0xff]
    %v1297 = vld [vmem:[#allocation7 + $0xa50] sm:$0xff]
    %v1298 = vld [vmem:[#allocation7 + $0xa58] sm:$0xf]
    %v1299 = vld [vmem:[#allocation7 + $0xa5c] sm:$0xff]
    %v1300 = vld [vmem:[#allocation7 + $0xa64] sm:$0xff]
    %v1301 = vld [vmem:[#allocation7 + $0xa6c] sm:$0xff]
    %v1302 = vld [vmem:[#allocation7 + $0xa74] sm:$0xff]
    %v1303 = vld [vmem:[#allocation7 + $0xa7c] sm:$0xff]
    %v1304 = vld [vmem:[#allocation7 + $0xa84] sm:$0xff]
    %v1305 = vld [vmem:[#allocation7 + $0xa8c] sm:$0xf]
    %v1306 = vld [vmem:[#allocation7 + $0xa90] sm:$0xff]
    %v1307 = vld [vmem:[#allocation7 + $0xa98] sm:$0xff]
    %v1308 = vld [vmem:[#allocation7 + $0xaa0] sm:$0xff]
    %v1309 = vld [vmem:[#allocation7 + $0xaa8] sm:$0xff]
    %v1310 = vld [vmem:[#allocation7 + $0xab0] sm:$0xff]
    %v1311 = vld [vmem:[#allocation7 + $0xab8] sm:$0xff]
    %v1312 = vld [vmem:[#allocation7 + $0xac0] sm:$0xf]
    %v1313 = vld [vmem:[#allocation7 + $0xac4] sm:$0xff]
    %v1314 = vld [vmem:[#allocation7 + $0xacc] sm:$0xff]
    %v1315 = vld [vmem:[#allocation7 + $0xad4] sm:$0xff]
    %v1316 = vld [vmem:[#allocation7 + $0xadc] sm:$0xff]
    %v1317 = vld [vmem:[#allocation7 + $0xae4] sm:$0xff]
    %v1318 = vld [vmem:[#allocation7 + $0xaec] sm:$0xff]
    %v1319 = vld [vmem:[#allocation7 + $0xaf4] sm:$0xf]
    %v1320 = vld [vmem:[#allocation7 + $0xaf8] sm:$0xff]
    %v1321 = vld [vmem:[#allocation7 + $0xb00] sm:$0xff]
    %v1322 = vld [vmem:[#allocation7 + $0xb08] sm:$0xff]
    %v1323 = vld [vmem:[#allocation7 + $0xb10] sm:$0xff]
    %v1324 = vld [vmem:[#allocation7 + $0xb18] sm:$0xff]
    %v1325 = vld [vmem:[#allocation7 + $0xb20] sm:$0xff]
    %v1326 = vld [vmem:[#allocation7 + $0xb28] sm:$0xf]
    %v1327 = vld [vmem:[#allocation7 + $0xb2c] sm:$0xff]
    %v1328 = vld [vmem:[#allocation7 + $0xb34] sm:$0xff]
    %v1329 = vld [vmem:[#allocation7 + $0xb3c] sm:$0xff]
    %v1330 = vld [vmem:[#allocation7 + $0xb44] sm:$0xff]
    %v1331 = vld [vmem:[#allocation7 + $0xb4c] sm:$0xff]
    %v1332 = vld [vmem:[#allocation7 + $0xb54] sm:$0xff]
    %v1333 = vld [vmem:[#allocation7 + $0xb5c] sm:$0xf]
    %v1334 = vld [vmem:[#allocation7 + $0xb60] sm:$0xff]
    %v1335 = vld [vmem:[#allocation7 + $0xb68] sm:$0xff]
    %v1336 = vld [vmem:[#allocation7 + $0xb70] sm:$0xff]
    %v1337 = vld [vmem:[#allocation7 + $0xb78] sm:$0xff]
    %v1338 = vld [vmem:[#allocation7 + $0xb80] sm:$0xff]
    %v1339 = vld [vmem:[#allocation7 + $0xb88] sm:$0xff]
    %v1340 = vld [vmem:[#allocation7 + $0xb90] sm:$0xf]
    %v1341 = vld [vmem:[#allocation7 + $0xb94] sm:$0xff]
    %v1342 = vld [vmem:[#allocation7 + $0xb9c] sm:$0xff]
    %v1343 = vld [vmem:[#allocation7 + $0xba4] sm:$0xff]
    %v1344 = vld [vmem:[#allocation7 + $0xbac] sm:$0xff]
    %v1345 = vld [vmem:[#allocation7 + $0xbb4] sm:$0xff]
    %v1346 = vld [vmem:[#allocation7 + $0xbbc] sm:$0xff]
    %v1347 = vld [vmem:[#allocation7 + $0xbc4] sm:$0xf]
    %v1348 = vld [vmem:[#allocation7 + $0xbc8] sm:$0xff]
    %v1349 = vld [vmem:[#allocation7 + $0xbd0] sm:$0xff]
    %v1350 = vld [vmem:[#allocation7 + $0xbd8] sm:$0xff]
    %v1351 = vld [vmem:[#allocation7 + $0xbe0] sm:$0xff]
    %v1352 = vld [vmem:[#allocation7 + $0xbe8] sm:$0xff]
    %v1353 = vld [vmem:[#allocation7 + $0xbf0] sm:$0xff]
    %v1354 = vld [vmem:[#allocation7 + $0xbf8] sm:$0xf]
    %v1355 = vld [vmem:[#allocation7 + $0xbfc] sm:$0xff]
    %v1356 = vld [vmem:[#allocation7 + $0xc04] sm:$0xff]
    %v1357 = vld [vmem:[#allocation7 + $0xc0c] sm:$0xff]
    %v1358 = vld [vmem:[#allocation7 + $0xc14] sm:$0xff]
    %v1359 = vld [vmem:[#allocation7 + $0xc1c] sm:$0xff]
    %v1360 = vld [vmem:[#allocation7 + $0xc24] sm:$0xff]
    %v1361 = vld [vmem:[#allocation7 + $0xc2c] sm:$0xf]
    %v1362 = vld [vmem:[#allocation7 + $0xc30] sm:$0xff]
    %v1363 = vld [vmem:[#allocation7 + $0xc38] sm:$0xff]
    %v1364 = vld [vmem:[#allocation7 + $0xc40] sm:$0xff]
    %v1365 = vld [vmem:[#allocation7 + $0xc48] sm:$0xff]
    %v1366 = vld [vmem:[#allocation7 + $0xc50] sm:$0xff]
    %v1367 = vld [vmem:[#allocation7 + $0xc58] sm:$0xff]
    %v1368 = vld [vmem:[#allocation7 + $0xc60] sm:$0xf]
    %v1369 = vld [vmem:[#allocation7 + $0xc64] sm:$0xff]
    %v1370 = vld [vmem:[#allocation7 + $0xc6c] sm:$0xff]
    %v1371 = vld [vmem:[#allocation7 + $0xc74] sm:$0xff]
    %v1372 = vld [vmem:[#allocation7 + $0xc7c] sm:$0xff]
    %v1373 = vld [vmem:[#allocation7 + $0xc84] sm:$0xff]
    %v1374 = vld [vmem:[#allocation7 + $0xc8c] sm:$0xff]
    %v1375 = vld [vmem:[#allocation7 + $0xc94] sm:$0xf]
    %v1376 = vld [vmem:[#allocation7 + $0xc98] sm:$0xff]
    %v1377 = vld [vmem:[#allocation7 + $0xca0] sm:$0xff]
    %v1378 = vld [vmem:[#allocation7 + $0xca8] sm:$0xff]
    %v1379 = vld [vmem:[#allocation7 + $0xcb0] sm:$0xff]
    %v1380 = vld [vmem:[#allocation7 + $0xcb8] sm:$0xff]
    %v1381 = vld [vmem:[#allocation7 + $0xcc0] sm:$0xff]
    %v1382 = vld [vmem:[#allocation7 + $0xcc8] sm:$0xf]
    %v1383 = vld [vmem:[#allocation7 + $0xccc] sm:$0xff]
    %v1384 = vld [vmem:[#allocation7 + $0xcd4] sm:$0xff]
    %v1385 = vld [vmem:[#allocation7 + $0xcdc] sm:$0xff]
    %v1386 = vld [vmem:[#allocation7 + $0xce4] sm:$0xff]
    %v1387 = vld [vmem:[#allocation7 + $0xcec] sm:$0xff]
    %v1388 = vld [vmem:[#allocation7 + $0xcf4] sm:$0xff]
    %v1389 = vld [vmem:[#allocation7 + $0xcfc] sm:$0xf]
    %v1390 = vld [vmem:[#allocation7 + $0xd00] sm:$0xff]
    %v1391 = vld [vmem:[#allocation7 + $0xd08] sm:$0xff]
    %v1392 = vld [vmem:[#allocation7 + $0xd10] sm:$0xff]
    %v1393 = vld [vmem:[#allocation7 + $0xd18] sm:$0xff]
    %v1394 = vld [vmem:[#allocation7 + $0xd20] sm:$0xff]
    %v1395 = vld [vmem:[#allocation7 + $0xd28] sm:$0xff]
    %v1396 = vld [vmem:[#allocation7 + $0xd30] sm:$0xf]
    %v1397 = vld [vmem:[#allocation7 + $0xd34] sm:$0xff]
    %v1398 = vld [vmem:[#allocation7 + $0xd3c] sm:$0xff]
    %v1399 = vld [vmem:[#allocation7 + $0xd44] sm:$0xff]
    %v1400 = vld [vmem:[#allocation7 + $0xd4c] sm:$0xff]
    %v1401 = vld [vmem:[#allocation7 + $0xd54] sm:$0xff]
    %v1402 = vld [vmem:[#allocation7 + $0xd5c] sm:$0xff]
    %v1403 = vld [vmem:[#allocation7 + $0xd64] sm:$0xf]
    %v1404 = vld [vmem:[#allocation7 + $0xd68] sm:$0xff]
    %v1405 = vld [vmem:[#allocation7 + $0xd70] sm:$0xff]
    %v1406 = vld [vmem:[#allocation7 + $0xd78] sm:$0xff]
    %v1407 = vld [vmem:[#allocation7 + $0xd80] sm:$0xff]
    %v1408 = vld [vmem:[#allocation7 + $0xd88] sm:$0xff]
    %v1409 = vld [vmem:[#allocation7 + $0xd90] sm:$0xff]
    %v1410 = vld [vmem:[#allocation7 + $0xd98] sm:$0xf]
    %v1411 = vld [vmem:[#allocation7 + $0xd9c] sm:$0xff]
    %v1412 = vld [vmem:[#allocation7 + $0xda4] sm:$0xff]
    %v1413 = vld [vmem:[#allocation7 + $0xdac] sm:$0xff]
    %v1414 = vld [vmem:[#allocation7 + $0xdb4] sm:$0xff]
    %v1415 = vld [vmem:[#allocation7 + $0xdbc] sm:$0xff]
    %v1416 = vld [vmem:[#allocation7 + $0xdc4] sm:$0xff]
    %v1417 = vld [vmem:[#allocation7 + $0xdcc] sm:$0xf]
    %v1418 = vld [vmem:[#allocation7 + $0xdd0] sm:$0xff]
    %v1419 = vld [vmem:[#allocation7 + $0xdd8] sm:$0xff]
    %v1420 = vld [vmem:[#allocation7 + $0xde0] sm:$0xff]
    %v1421 = vld [vmem:[#allocation7 + $0xde8] sm:$0xff]
    %v1422 = vld [vmem:[#allocation7 + $0xdf0] sm:$0xff]
    %v1423 = vld [vmem:[#allocation7 + $0xdf8] sm:$0xff]
    %v1424 = vld [vmem:[#allocation7 + $0xe00] sm:$0xf]
    %v1425 = vld [vmem:[#allocation7 + $0xe04] sm:$0xff]
    %v1426 = vld [vmem:[#allocation7 + $0xe0c] sm:$0xff]
    %v1427 = vld [vmem:[#allocation7 + $0xe14] sm:$0xff]
    %v1428 = vld [vmem:[#allocation7 + $0xe1c] sm:$0xff]
    %v1429 = vld [vmem:[#allocation7 + $0xe24] sm:$0xff]
    %v1430 = vld [vmem:[#allocation7 + $0xe2c] sm:$0xff]
    %v1431 = vld [vmem:[#allocation7 + $0xe34] sm:$0xf]
    %v1432 = vld [vmem:[#allocation7 + $0xe38] sm:$0xff]
    %v1433 = vld [vmem:[#allocation7 + $0xe40] sm:$0xff]
    %v1434 = vld [vmem:[#allocation7 + $0xe48] sm:$0xff]
    %v1435 = vld [vmem:[#allocation7 + $0xe50] sm:$0xff]
    %v1436 = vld [vmem:[#allocation7 + $0xe58] sm:$0xff]
    %v1437 = vld [vmem:[#allocation7 + $0xe60] sm:$0xff]
    %v1438 = vld [vmem:[#allocation7 + $0xe68] sm:$0xf]
    %v1439 = vld [vmem:[#allocation7 + $0xe6c] sm:$0xff]
    %v1440 = vld [vmem:[#allocation7 + $0xe74] sm:$0xff]
    %v1441 = vld [vmem:[#allocation7 + $0xe7c] sm:$0xff]
    %v1442 = vld [vmem:[#allocation7 + $0xe84] sm:$0xff]
    %v1443 = vld [vmem:[#allocation7 + $0xe8c] sm:$0xff]
    %v1444 = vld [vmem:[#allocation7 + $0xe94] sm:$0xff]
    %v1445 = vld [vmem:[#allocation7 + $0xe9c] sm:$0xf]
    %v1446 = vld [vmem:[#allocation7 + $0xea0] sm:$0xff]
    %v1447 = vld [vmem:[#allocation7 + $0xea8] sm:$0xff]
    %v1448 = vld [vmem:[#allocation7 + $0xeb0] sm:$0xff]
    %v1449 = vld [vmem:[#allocation7 + $0xeb8] sm:$0xff]
    %v1450 = vld [vmem:[#allocation7 + $0xec0] sm:$0xff]
    %v1451 = vld [vmem:[#allocation7 + $0xec8] sm:$0xff]
    %v1452 = vld [vmem:[#allocation7 + $0xed0] sm:$0xf]
    %v1453 = vld [vmem:[#allocation7 + $0xed4] sm:$0xff]
    %v1454 = vld [vmem:[#allocation7 + $0xedc] sm:$0xff]
    %v1455 = vld [vmem:[#allocation7 + $0xee4] sm:$0xff]
    %v1456 = vld [vmem:[#allocation7 + $0xeec] sm:$0xff]
    %v1457 = vld [vmem:[#allocation7 + $0xef4] sm:$0xff]
    %v1458 = vld [vmem:[#allocation7 + $0xefc] sm:$0xff]
    %v1459 = vld [vmem:[#allocation7 + $0xf04] sm:$0xf]
    %v1460 = vld [vmem:[#allocation7 + $0xf08] sm:$0xff]
    %v1461 = vld [vmem:[#allocation7 + $0xf10] sm:$0xff]
    %v1462 = vld [vmem:[#allocation7 + $0xf18] sm:$0xff]
    %v1463 = vld [vmem:[#allocation7 + $0xf20] sm:$0xff]
    %v1464 = vld [vmem:[#allocation7 + $0xf28] sm:$0xff]
    %v1465 = vld [vmem:[#allocation7 + $0xf30] sm:$0xff]
    %v1466 = vld [vmem:[#allocation7 + $0xf38] sm:$0xf]
    %v1467 = vld [vmem:[#allocation7 + $0xf3c] sm:$0xff]
    %v1468 = vld [vmem:[#allocation7 + $0xf44] sm:$0xff]
    %v1469 = vld [vmem:[#allocation7 + $0xf4c] sm:$0xff]
    %v1470 = vld [vmem:[#allocation7 + $0xf54] sm:$0xff]
    %v1471 = vld [vmem:[#allocation7 + $0xf5c] sm:$0xff]
    %v1472 = vld [vmem:[#allocation7 + $0xf64] sm:$0xff]
    %v1473 = vld [vmem:[#allocation7 + $0xf6c] sm:$0xf]
    %v1474 = vld [vmem:[#allocation7 + $0xf70] sm:$0xff]
    %v1475 = vld [vmem:[#allocation7 + $0xf78] sm:$0xff]
    %v1476 = vld [vmem:[#allocation7 + $0xf80] sm:$0xff]
    %v1477 = vld [vmem:[#allocation7 + $0xf88] sm:$0xff]
    %v1478 = vld [vmem:[#allocation7 + $0xf90] sm:$0xff]
    %v1479 = vld [vmem:[#allocation7 + $0xf98] sm:$0xff]
    %v1480 = vld [vmem:[#allocation7 + $0xfa0] sm:$0xf]
    %v1481 = vld [vmem:[#allocation7 + $0xfa4] sm:$0xff]
    %v1482 = vld [vmem:[#allocation7 + $0xfac] sm:$0xff]
    %v1483 = vld [vmem:[#allocation7 + $0xfb4] sm:$0xff]
    %v1484 = vld [vmem:[#allocation7 + $0xfbc] sm:$0xff]
    %v1485 = vld [vmem:[#allocation7 + $0xfc4] sm:$0xff]
    %v1486 = vld [vmem:[#allocation7 + $0xfcc] sm:$0xff]
    %v1487 = vld [vmem:[#allocation7 + $0xfd4] sm:$0xf]
    %v1488 = vld [vmem:[#allocation7 + $0xfd8] sm:$0xff]
    %v1489 = vld [vmem:[#allocation7 + $0xfe0] sm:$0xff]
    %v1490 = vld [vmem:[#allocation7 + $0xfe8] sm:$0xff]
    %v1491 = vld [vmem:[#allocation7 + $0xff0] sm:$0xff]
    %v1492 = vld [vmem:[#allocation7 + $0xff8] sm:$0xff]
    %v1493 = vld [vmem:[#allocation7 + $0x1000] sm:$0xff]
    %v1494 = vld [vmem:[#allocation7 + $0x1008] sm:$0xf]
    %v1495 = vld [vmem:[#allocation7 + $0x100c] sm:$0xff]
    %v1496 = vld [vmem:[#allocation7 + $0x1014] sm:$0xff]
    %v1497 = vld [vmem:[#allocation7 + $0x101c] sm:$0xff]
    %v1498 = vld [vmem:[#allocation7 + $0x1024] sm:$0xff]
    %v1499 = vld [vmem:[#allocation7 + $0x102c] sm:$0xff]
    %v1500 = vld [vmem:[#allocation7 + $0x1034] sm:$0xff]
    %v1501 = vld [vmem:[#allocation7 + $0x103c] sm:$0xf]
    %v1502 = vld [vmem:[#allocation7 + $0x1040] sm:$0xff]
    %v1503 = vld [vmem:[#allocation7 + $0x1048] sm:$0xff]
    %v1504 = vld [vmem:[#allocation7 + $0x1050] sm:$0xff]
    %v1505 = vld [vmem:[#allocation7 + $0x1058] sm:$0xff]
    %v1506 = vld [vmem:[#allocation7 + $0x1060] sm:$0xff]
    %v1507 = vld [vmem:[#allocation7 + $0x1068] sm:$0xff]
    %v1508 = vld [vmem:[#allocation7 + $0x1070] sm:$0xf]
    %v1509 = vld [vmem:[#allocation7 + $0x1074] sm:$0xff]
    %v1510 = vld [vmem:[#allocation7 + $0x107c] sm:$0xff]
    %v1511 = vld [vmem:[#allocation7 + $0x1084] sm:$0xff]
    %v1512 = vld [vmem:[#allocation7 + $0x108c] sm:$0xff]
    %v1513 = vld [vmem:[#allocation7 + $0x1094] sm:$0xff]
    %v1514 = vld [vmem:[#allocation7 + $0x109c] sm:$0xff]
    %v1515 = vld [vmem:[#allocation7 + $0x10a4] sm:$0xf]
    %v1516 = vld [vmem:[#allocation7 + $0x10a8] sm:$0xff]
    %v1517 = vld [vmem:[#allocation7 + $0x10b0] sm:$0xff]
    %v1518 = vld [vmem:[#allocation7 + $0x10b8] sm:$0xff]
    %v1519 = vld [vmem:[#allocation7 + $0x10c0] sm:$0xff]
    %v1520 = vld [vmem:[#allocation7 + $0x10c8] sm:$0xff]
    %v1521 = vld [vmem:[#allocation7 + $0x10d0] sm:$0xff]
    %v1522 = vld [vmem:[#allocation7 + $0x10d8] sm:$0xf]
    %v1523 = vld [vmem:[#allocation7 + $0x10dc] sm:$0xff]
    %v1524 = vld [vmem:[#allocation7 + $0x10e4] sm:$0xff]
    %v1525 = vld [vmem:[#allocation7 + $0x10ec] sm:$0xff]
    %v1526 = vld [vmem:[#allocation7 + $0x10f4] sm:$0xff]
    %v1527 = vld [vmem:[#allocation7 + $0x10fc] sm:$0xff]
    %v1528 = vld [vmem:[#allocation7 + $0x1104] sm:$0xff]
    %v1529 = vld [vmem:[#allocation7 + $0x110c] sm:$0xf]
    %v1530 = vld [vmem:[#allocation7 + $0x1110] sm:$0xff]
    %v1531 = vld [vmem:[#allocation7 + $0x1118] sm:$0xff]
    %v1532 = vld [vmem:[#allocation7 + $0x1120] sm:$0xff]
    %v1533 = vld [vmem:[#allocation7 + $0x1128] sm:$0xff]
    %v1534 = vld [vmem:[#allocation7 + $0x1130] sm:$0xff]
    %v1535 = vld [vmem:[#allocation7 + $0x1138] sm:$0xff]
    %v1536 = vld [vmem:[#allocation7 + $0x1140] sm:$0xf]
    %v1537 = vld [vmem:[#allocation7 + $0x1144] sm:$0xff]
    %v1538 = vld [vmem:[#allocation7 + $0x114c] sm:$0xff]
    %v1539 = vld [vmem:[#allocation7 + $0x1154] sm:$0xff]
    %v1540 = vld [vmem:[#allocation7 + $0x115c] sm:$0xff]
    %v1541 = vld [vmem:[#allocation7 + $0x1164] sm:$0xff]
    %v1542 = vld [vmem:[#allocation7 + $0x116c] sm:$0xff]
    %v1543 = vld [vmem:[#allocation7 + $0x1174] sm:$0xf]
    %v1544 = vld [vmem:[#allocation7 + $0x1178] sm:$0xff]
    %v1545 = vld [vmem:[#allocation7 + $0x1180] sm:$0xff]
    %v1546 = vld [vmem:[#allocation7 + $0x1188] sm:$0xff]
    %v1547 = vld [vmem:[#allocation7 + $0x1190] sm:$0xff]
    %v1548 = vld [vmem:[#allocation7 + $0x1198] sm:$0xff]
    %v1549 = vld [vmem:[#allocation7 + $0x11a0] sm:$0xff]
    %v1550 = vld [vmem:[#allocation7 + $0x11a8] sm:$0xf]
    %v1551 = vld [vmem:[#allocation7 + $0x11ac] sm:$0xff]
    %v1552 = vld [vmem:[#allocation7 + $0x11b4] sm:$0xff]
    %v1553 = vld [vmem:[#allocation7 + $0x11bc] sm:$0xff]
    %v1554 = vld [vmem:[#allocation7 + $0x11c4] sm:$0xff]
    %v1555 = vld [vmem:[#allocation7 + $0x11cc] sm:$0xff]
    %v1556 = vld [vmem:[#allocation7 + $0x11d4] sm:$0xff]
    %v1557 = vld [vmem:[#allocation7 + $0x11dc] sm:$0xf]
    %v1558 = vld [vmem:[#allocation7 + $0x11e0] sm:$0xff]
    %v1559 = vld [vmem:[#allocation7 + $0x11e8] sm:$0xff]
    %v1560 = vld [vmem:[#allocation7 + $0x11f0] sm:$0xff]
    %v1561 = vld [vmem:[#allocation7 + $0x11f8] sm:$0xff]
    %v1562 = vld [vmem:[#allocation7 + $0x1200] sm:$0xff]
    %v1563 = vld [vmem:[#allocation7 + $0x1208] sm:$0xff]
    %v1564 = vld [vmem:[#allocation7 + $0x1210] sm:$0xf]
    %v1565 = vld [vmem:[#allocation7 + $0x1214] sm:$0xff]
    %v1566 = vld [vmem:[#allocation7 + $0x121c] sm:$0xff]
    %v1567 = vld [vmem:[#allocation7 + $0x1224] sm:$0xff]
    %v1568 = vld [vmem:[#allocation7 + $0x122c] sm:$0xff]
    %v1569 = vld [vmem:[#allocation7 + $0x1234] sm:$0xff]
    %v1570 = vld [vmem:[#allocation7 + $0x123c] sm:$0xff]
    %v1571 = vld [vmem:[#allocation7 + $0x1244] sm:$0xf]
    %v1572 = vld [vmem:[#allocation7 + $0x1248] sm:$0xff]
    %v1573 = vld [vmem:[#allocation7 + $0x1250] sm:$0xff]
    %v1574 = vld [vmem:[#allocation7 + $0x1258] sm:$0xff]
    %v1575 = vld [vmem:[#allocation7 + $0x1260] sm:$0xff]
    %v1576 = vld [vmem:[#allocation7 + $0x1268] sm:$0xff]
    %v1577 = vld [vmem:[#allocation7 + $0x1270] sm:$0xff]
    %v1578 = vld [vmem:[#allocation7 + $0x1278] sm:$0xf]
    %v1579 = vld [vmem:[#allocation7 + $0x127c] sm:$0xff]
    %v1580 = vld [vmem:[#allocation7 + $0x1284] sm:$0xff]
    %v1581 = vld [vmem:[#allocation7 + $0x128c] sm:$0xff]
    %v1582 = vld [vmem:[#allocation7 + $0x1294] sm:$0xff]
    %v1583 = vld [vmem:[#allocation7 + $0x129c] sm:$0xff]
    %v1584 = vld [vmem:[#allocation7 + $0x12a4] sm:$0xff]
    %v1585 = vld [vmem:[#allocation7 + $0x12ac] sm:$0xf]
    %v1586 = vld [vmem:[#allocation7 + $0x12b0] sm:$0xff]
    %v1587 = vld [vmem:[#allocation7 + $0x12b8] sm:$0xff]
    %v1588 = vld [vmem:[#allocation7 + $0x12c0] sm:$0xff]
    %v1589 = vld [vmem:[#allocation7 + $0x12c8] sm:$0xff]
    %v1590 = vld [vmem:[#allocation7 + $0x12d0] sm:$0xff]
    %v1591 = vld [vmem:[#allocation7 + $0x12d8] sm:$0xff]
    %v1592 = vld [vmem:[#allocation7 + $0x12e0] sm:$0xf]
    %v1593 = vld [vmem:[#allocation7 + $0x12e4] sm:$0xff]
    %v1594 = vld [vmem:[#allocation7 + $0x12ec] sm:$0xff]
    %v1595 = vld [vmem:[#allocation7 + $0x12f4] sm:$0xff]
    %v1596 = vld [vmem:[#allocation7 + $0x12fc] sm:$0xff]
    %v1597 = vld [vmem:[#allocation7 + $0x1304] sm:$0xff]
    %v1598 = vld [vmem:[#allocation7 + $0x130c] sm:$0xff]
    %v1599 = vld [vmem:[#allocation7 + $0x1314] sm:$0xf]
    %v1600 = vld [vmem:[#allocation7 + $0x1318] sm:$0xff]
    %v1601 = vld [vmem:[#allocation7 + $0x1320] sm:$0xff]
    %v1602 = vld [vmem:[#allocation7 + $0x1328] sm:$0xff]
    %v1603 = vld [vmem:[#allocation7 + $0x1330] sm:$0xff]
    %v1604 = vld [vmem:[#allocation7 + $0x1338] sm:$0xff]
    %v1605 = vld [vmem:[#allocation7 + $0x1340] sm:$0xff]
    %v1606 = vld [vmem:[#allocation7 + $0x1348] sm:$0xf]
    %v1607 = vld [vmem:[#allocation7 + $0x134c] sm:$0xff]
    %v1608 = vld [vmem:[#allocation7 + $0x1354] sm:$0xff]
    %v1609 = vld [vmem:[#allocation7 + $0x135c] sm:$0xff]
    %v1610 = vld [vmem:[#allocation7 + $0x1364] sm:$0xff]
    %v1611 = vld [vmem:[#allocation7 + $0x136c] sm:$0xff]
    %v1612 = vld [vmem:[#allocation7 + $0x1374] sm:$0xff]
    %v1613 = vld [vmem:[#allocation7 + $0x137c] sm:$0xf]
    %v1614 = vld [vmem:[#allocation7 + $0x1380] sm:$0xff]
    %v1615 = vld [vmem:[#allocation7 + $0x1388] sm:$0xff]
    %v1616 = vld [vmem:[#allocation7 + $0x1390] sm:$0xff]
    %v1617 = vld [vmem:[#allocation7 + $0x1398] sm:$0xff]
    %v1618 = vld [vmem:[#allocation7 + $0x13a0] sm:$0xff]
    %v1619 = vld [vmem:[#allocation7 + $0x13a8] sm:$0xff]
    %v1620 = vld [vmem:[#allocation7 + $0x13b0] sm:$0xf]
    %v1621 = vld [vmem:[#allocation7 + $0x13b4] sm:$0xff]
    %v1622 = vld [vmem:[#allocation7 + $0x13bc] sm:$0xff]
    %v1623 = vld [vmem:[#allocation7 + $0x13c4] sm:$0xff]
    %v1624 = vld [vmem:[#allocation7 + $0x13cc] sm:$0xff]
    %v1625 = vld [vmem:[#allocation7 + $0x13d4] sm:$0xff]
    %v1626 = vld [vmem:[#allocation7 + $0x13dc] sm:$0xff]
    %v1627 = vld [vmem:[#allocation7 + $0x13e4] sm:$0xf]
    %v1628 = vld [vmem:[#allocation8] sm:$0xff]
    %v1629 = vld [vmem:[#allocation8 + $0x8] sm:$0x1f]
    %v1632 = vlaneseq
    %v1633 = vshrl.u32 %v1632, 7
    %v1634 = vsub.s32 0, %v1633
    %v1635 = vrot.slane %v1628, %v1634
    %v1636 = vlaneseq
    %v1637 = vshrl.u32 %v1636, 7
    %v1638 = vsub.s32 1, %v1637
    %v1639 = vrot.slane %v1628, %v1638
    %v1640 = vlaneseq
    %v1641 = vshrl.u32 %v1640, 7
    %v1642 = vsub.s32 2, %v1641
    %v1643 = vrot.slane %v1628, %v1642
    %v1644 = vlaneseq
    %v1645 = vshrl.u32 %v1644, 7
    %v1646 = vsub.s32 3, %v1645
    %v1647 = vrot.slane %v1628, %v1646
    %v1648 = vlaneseq
    %v1649 = vshrl.u32 %v1648, 7
    %v1650 = vsub.s32 4, %v1649
    %v1651 = vrot.slane %v1628, %v1650
    %v1652 = vlaneseq
    %v1653 = vshrl.u32 %v1652, 7
    %v1654 = vsub.s32 5, %v1653
    %v1655 = vrot.slane %v1628, %v1654
    %v1656 = vlaneseq
    %v1657 = vshrl.u32 %v1656, 7
    %v1658 = vsub.s32 6, %v1657
    %v1659 = vrot.slane %v1628, %v1658
    %v1660 = vlaneseq
    %v1661 = vshrl.u32 %v1660, 7
    %v1662 = vsub.s32 7, %v1661
    %v1663 = vrot.slane %v1628, %v1662
    %v1664 = vlaneseq
    %v1665 = vshrl.u32 %v1664, 7
    %v1666 = vsub.s32 0, %v1665
    %v1667 = vrot.slane %v1629, %v1666
    %v1668 = vlaneseq
    %v1669 = vshrl.u32 %v1668, 7
    %v1670 = vsub.s32 1, %v1669
    %v1671 = vrot.slane %v1629, %v1670
    %v1672 = vlaneseq
    %v1673 = vshrl.u32 %v1672, 7
    %v1674 = vsub.s32 2, %v1673
    %v1675 = vrot.slane %v1629, %v1674
    %v1676 = vlaneseq
    %v1677 = vshrl.u32 %v1676, 7
    %v1678 = vsub.s32 3, %v1677
    %v1679 = vrot.slane %v1629, %v1678
    %v1680 = vlaneseq
    %v1681 = vshrl.u32 %v1680, 7
    %v1682 = vsub.s32 4, %v1681
    %v1683 = vrot.slane %v1629, %v1682
    %v2383 = vunpack.c.l.b16 %v942
    %v2384 = vunpack.c.h.b16 %v942
    %v2385 = vunpack.c.l.b16 %v943
    %v2386 = vunpack.c.h.b16 %v943
    %v2387 = vunpack.c.l.b16 %v944
    %v2388 = vunpack.c.h.b16 %v944
    %v2389 = vunpack.c.l.b16 %v945
    %v2390 = vunpack.c.h.b16 %v945
    %v2391 = vunpack.c.l.b16 %v946
    %v2392 = vunpack.c.h.b16 %v946
    %v2393 = vunpack.c.l.b16 %v947
    %v2394 = vunpack.c.h.b16 %v947
    %v2395 = vunpack.c.l.b16 %v948
    %v2396 = vunpack.c.l.b16 %v949
    %v2397 = vunpack.c.h.b16 %v949
    %v2398 = vunpack.c.l.b16 %v950
    %v2399 = vunpack.c.h.b16 %v950
    %v2400 = vunpack.c.l.b16 %v951
    %v2401 = vunpack.c.h.b16 %v951
    %v2402 = vunpack.c.l.b16 %v952
    %v2403 = vunpack.c.h.b16 %v952
    %v2404 = vunpack.c.l.b16 %v953
    %v2405 = vunpack.c.h.b16 %v953
    %v2406 = vunpack.c.l.b16 %v954
    %v2407 = vunpack.c.h.b16 %v954
    %v2408 = vunpack.c.l.b16 %v955
    %v2409 = vunpack.c.l.b16 %v956
    %v2410 = vunpack.c.h.b16 %v956
    %v2411 = vunpack.c.l.b16 %v957
    %v2412 = vunpack.c.h.b16 %v957
    %v2413 = vunpack.c.l.b16 %v958
    %v2414 = vunpack.c.h.b16 %v958
    %v2415 = vunpack.c.l.b16 %v959
    %v2416 = vunpack.c.h.b16 %v959
    %v2417 = vunpack.c.l.b16 %v960
    %v2418 = vunpack.c.h.b16 %v960
    %v2419 = vunpack.c.l.b16 %v961
    %v2420 = vunpack.c.h.b16 %v961
    %v2421 = vunpack.c.l.b16 %v962
    %v2422 = vunpack.c.l.b16 %v963
    %v2423 = vunpack.c.h.b16 %v963
    %v2424 = vunpack.c.l.b16 %v964
    %v2425 = vunpack.c.h.b16 %v964
    %v2426 = vunpack.c.l.b16 %v965
    %v2427 = vunpack.c.h.b16 %v965
    %v2428 = vunpack.c.l.b16 %v966
    %v2429 = vunpack.c.h.b16 %v966
    %v2430 = vunpack.c.l.b16 %v967
    %v2431 = vunpack.c.h.b16 %v967
    %v2432 = vunpack.c.l.b16 %v968
    %v2433 = vunpack.c.h.b16 %v968
    %v2434 = vunpack.c.l.b16 %v969
    %v2435 = vunpack.c.l.b16 %v970
    %v2436 = vunpack.c.h.b16 %v970
    %v2437 = vunpack.c.l.b16 %v971
    %v2438 = vunpack.c.h.b16 %v971
    %v2439 = vunpack.c.l.b16 %v972
    %v2440 = vunpack.c.h.b16 %v972
    %v2441 = vunpack.c.l.b16 %v973
    %v2442 = vunpack.c.h.b16 %v973
    %v2443 = vunpack.c.l.b16 %v974
    %v2444 = vunpack.c.h.b16 %v974
    %v2445 = vunpack.c.l.b16 %v975
    %v2446 = vunpack.c.h.b16 %v975
    %v2447 = vunpack.c.l.b16 %v976
    %v2448 = vunpack.c.l.b16 %v977
    %v2449 = vunpack.c.h.b16 %v977
    %v2450 = vunpack.c.l.b16 %v978
    %v2451 = vunpack.c.h.b16 %v978
    %v2452 = vunpack.c.l.b16 %v979
    %v2453 = vunpack.c.h.b16 %v979
    %v2454 = vunpack.c.l.b16 %v980
    %v2455 = vunpack.c.h.b16 %v980
    %v2456 = vunpack.c.l.b16 %v981
    %v2457 = vunpack.c.h.b16 %v981
    %v2458 = vunpack.c.l.b16 %v982
    %v2459 = vunpack.c.h.b16 %v982
    %v2460 = vunpack.c.l.b16 %v983
    %v2461 = vunpack.c.l.b16 %v984
    %v2462 = vunpack.c.h.b16 %v984
    %v2463 = vunpack.c.l.b16 %v985
    %v2464 = vunpack.c.h.b16 %v985
    %v2465 = vunpack.c.l.b16 %v986
    %v2466 = vunpack.c.h.b16 %v986
    %v2467 = vunpack.c.l.b16 %v987
    %v2468 = vunpack.c.h.b16 %v987
    %v2469 = vunpack.c.l.b16 %v988
    %v2470 = vunpack.c.h.b16 %v988
    %v2471 = vunpack.c.l.b16 %v989
    %v2472 = vunpack.c.h.b16 %v989
    %v2473 = vunpack.c.l.b16 %v990
    %v2474 = vunpack.c.l.b16 %v991
    %v2475 = vunpack.c.h.b16 %v991
    %v2476 = vunpack.c.l.b16 %v992
    %v2477 = vunpack.c.h.b16 %v992
    %v2478 = vunpack.c.l.b16 %v993
    %v2479 = vunpack.c.h.b16 %v993
    %v2480 = vunpack.c.l.b16 %v994
    %v2481 = vunpack.c.h.b16 %v994
    %v2482 = vunpack.c.l.b16 %v995
    %v2483 = vunpack.c.h.b16 %v995
    %v2484 = vunpack.c.l.b16 %v996
    %v2485 = vunpack.c.h.b16 %v996
    %v2486 = vunpack.c.l.b16 %v997
    %v2487 = vunpack.c.l.b16 %v998
    %v2488 = vunpack.c.h.b16 %v998
    %v2489 = vunpack.c.l.b16 %v999
    %v2490 = vunpack.c.h.b16 %v999
    %v2491 = vunpack.c.l.b16 %v1000
    %v2492 = vunpack.c.h.b16 %v1000
    %v2493 = vunpack.c.l.b16 %v1001
    %v2494 = vunpack.c.h.b16 %v1001
    %v2495 = vunpack.c.l.b16 %v1002
    %v2496 = vunpack.c.h.b16 %v1002
    %v2497 = vunpack.c.l.b16 %v1003
    %v2498 = vunpack.c.h.b16 %v1003
    %v2499 = vunpack.c.l.b16 %v1004
    %v2500 = vunpack.c.l.b16 %v1005
    %v2501 = vunpack.c.h.b16 %v1005
    %v2502 = vunpack.c.l.b16 %v1006
    %v2503 = vunpack.c.h.b16 %v1006
    %v2504 = vunpack.c.l.b16 %v1007
    %v2505 = vunpack.c.h.b16 %v1007
    %v2506 = vunpack.c.l.b16 %v1008
    %v2507 = vunpack.c.h.b16 %v1008
    %v2508 = vunpack.c.l.b16 %v1009
    %v2509 = vunpack.c.h.b16 %v1009
    %v2510 = vunpack.c.l.b16 %v1010
    %v2511 = vunpack.c.h.b16 %v1010
    %v2512 = vunpack.c.l.b16 %v1011
    %v2513 = vunpack.c.l.b16 %v1012
    %v2514 = vunpack.c.h.b16 %v1012
    %v2515 = vunpack.c.l.b16 %v1013
    %v2516 = vunpack.c.h.b16 %v1013
    %v2517 = vunpack.c.l.b16 %v1014
    %v2518 = vunpack.c.h.b16 %v1014
    %v2519 = vunpack.c.l.b16 %v1015
    %v2520 = vunpack.c.h.b16 %v1015
    %v2521 = vunpack.c.l.b16 %v1016
    %v2522 = vunpack.c.h.b16 %v1016
    %v2523 = vunpack.c.l.b16 %v1017
    %v2524 = vunpack.c.h.b16 %v1017
    %v2525 = vunpack.c.l.b16 %v1018
    %v2526 = vunpack.c.l.b16 %v1019
    %v2527 = vunpack.c.h.b16 %v1019
    %v2528 = vunpack.c.l.b16 %v1020
    %v2529 = vunpack.c.h.b16 %v1020
    %v2530 = vunpack.c.l.b16 %v1021
    %v2531 = vunpack.c.h.b16 %v1021
    %v2532 = vunpack.c.l.b16 %v1022
    %v2533 = vunpack.c.h.b16 %v1022
    %v2534 = vunpack.c.l.b16 %v1023
    %v2535 = vunpack.c.h.b16 %v1023
    %v2536 = vunpack.c.l.b16 %v1024
    %v2537 = vunpack.c.h.b16 %v1024
    %v2538 = vunpack.c.l.b16 %v1025
    %v2539 = vunpack.c.l.b16 %v1026
    %v2540 = vunpack.c.h.b16 %v1026
    %v2541 = vunpack.c.l.b16 %v1027
    %v2542 = vunpack.c.h.b16 %v1027
    %v2543 = vunpack.c.l.b16 %v1028
    %v2544 = vunpack.c.h.b16 %v1028
    %v2545 = vunpack.c.l.b16 %v1029
    %v2546 = vunpack.c.h.b16 %v1029
    %v2547 = vunpack.c.l.b16 %v1030
    %v2548 = vunpack.c.h.b16 %v1030
    %v2549 = vunpack.c.l.b16 %v1031
    %v2550 = vunpack.c.h.b16 %v1031
    %v2551 = vunpack.c.l.b16 %v1032
    %v2552 = vunpack.c.l.b16 %v1033
    %v2553 = vunpack.c.h.b16 %v1033
    %v2554 = vunpack.c.l.b16 %v1034
    %v2555 = vunpack.c.h.b16 %v1034
    %v2556 = vunpack.c.l.b16 %v1035
    %v2557 = vunpack.c.h.b16 %v1035
    %v2558 = vunpack.c.l.b16 %v1036
    %v2559 = vunpack.c.h.b16 %v1036
    %v2560 = vunpack.c.l.b16 %v1037
    %v2561 = vunpack.c.h.b16 %v1037
    %v2562 = vunpack.c.l.b16 %v1038
    %v2563 = vunpack.c.h.b16 %v1038
    %v2564 = vunpack.c.l.b16 %v1039
    %v2565 = vunpack.c.l.b16 %v1040
    %v2566 = vunpack.c.h.b16 %v1040
    %v2567 = vunpack.c.l.b16 %v1041
    %v2568 = vunpack.c.h.b16 %v1041
    %v2569 = vunpack.c.l.b16 %v1042
    %v2570 = vunpack.c.h.b16 %v1042
    %v2571 = vunpack.c.l.b16 %v1043
    %v2572 = vunpack.c.h.b16 %v1043
    %v2573 = vunpack.c.l.b16 %v1044
    %v2574 = vunpack.c.h.b16 %v1044
    %v2575 = vunpack.c.l.b16 %v1045
    %v2576 = vunpack.c.h.b16 %v1045
    %v2577 = vunpack.c.l.b16 %v1046
    %v2578 = vunpack.c.l.b16 %v1047
    %v2579 = vunpack.c.h.b16 %v1047
    %v2580 = vunpack.c.l.b16 %v1048
    %v2581 = vunpack.c.h.b16 %v1048
    %v2582 = vunpack.c.l.b16 %v1049
    %v2583 = vunpack.c.h.b16 %v1049
    %v2584 = vunpack.c.l.b16 %v1050
    %v2585 = vunpack.c.h.b16 %v1050
    %v2586 = vunpack.c.l.b16 %v1051
    %v2587 = vunpack.c.h.b16 %v1051
    %v2588 = vunpack.c.l.b16 %v1052
    %v2589 = vunpack.c.h.b16 %v1052
    %v2590 = vunpack.c.l.b16 %v1053
    %v2591 = vunpack.c.l.b16 %v1054
    %v2592 = vunpack.c.h.b16 %v1054
    %v2593 = vunpack.c.l.b16 %v1055
    %v2594 = vunpack.c.h.b16 %v1055
    %v2595 = vunpack.c.l.b16 %v1056
    %v2596 = vunpack.c.h.b16 %v1056
    %v2597 = vunpack.c.l.b16 %v1057
    %v2598 = vunpack.c.h.b16 %v1057
    %v2599 = vunpack.c.l.b16 %v1058
    %v2600 = vunpack.c.h.b16 %v1058
    %v2601 = vunpack.c.l.b16 %v1059
    %v2602 = vunpack.c.h.b16 %v1059
    %v2603 = vunpack.c.l.b16 %v1060
    %v2604 = vunpack.c.l.b16 %v1061
    %v2605 = vunpack.c.h.b16 %v1061
    %v2606 = vunpack.c.l.b16 %v1062
    %v2607 = vunpack.c.h.b16 %v1062
    %v2608 = vunpack.c.l.b16 %v1063
    %v2609 = vunpack.c.h.b16 %v1063
    %v2610 = vunpack.c.l.b16 %v1064
    %v2611 = vunpack.c.h.b16 %v1064
    %v2612 = vunpack.c.l.b16 %v1065
    %v2613 = vunpack.c.h.b16 %v1065
    %v2614 = vunpack.c.l.b16 %v1066
    %v2615 = vunpack.c.h.b16 %v1066
    %v2616 = vunpack.c.l.b16 %v1067
    %v2617 = vunpack.c.l.b16 %v1068
    %v2618 = vunpack.c.h.b16 %v1068
    %v2619 = vunpack.c.l.b16 %v1069
    %v2620 = vunpack.c.h.b16 %v1069
    %v2621 = vunpack.c.l.b16 %v1070
    %v2622 = vunpack.c.h.b16 %v1070
    %v2623 = vunpack.c.l.b16 %v1071
    %v2624 = vunpack.c.h.b16 %v1071
    %v2625 = vunpack.c.l.b16 %v1072
    %v2626 = vunpack.c.h.b16 %v1072
    %v2627 = vunpack.c.l.b16 %v1073
    %v2628 = vunpack.c.h.b16 %v1073
    %v2629 = vunpack.c.l.b16 %v1074
    %v2630 = vunpack.c.l.b16 %v1075
    %v2631 = vunpack.c.h.b16 %v1075
    %v2632 = vunpack.c.l.b16 %v1076
    %v2633 = vunpack.c.h.b16 %v1076
    %v2634 = vunpack.c.l.b16 %v1077
    %v2635 = vunpack.c.h.b16 %v1077
    %v2636 = vunpack.c.l.b16 %v1078
    %v2637 = vunpack.c.h.b16 %v1078
    %v2638 = vunpack.c.l.b16 %v1079
    %v2639 = vunpack.c.h.b16 %v1079
    %v2640 = vunpack.c.l.b16 %v1080
    %v2641 = vunpack.c.h.b16 %v1080
    %v2642 = vunpack.c.l.b16 %v1081
    %v2643 = vunpack.c.l.b16 %v1082
    %v2644 = vunpack.c.h.b16 %v1082
    %v2645 = vunpack.c.l.b16 %v1083
    %v2646 = vunpack.c.h.b16 %v1083
    %v2647 = vunpack.c.l.b16 %v1084
    %v2648 = vunpack.c.h.b16 %v1084
    %v2649 = vunpack.c.l.b16 %v1085
    %v2650 = vunpack.c.h.b16 %v1085
    %v2651 = vunpack.c.l.b16 %v1086
    %v2652 = vunpack.c.h.b16 %v1086
    %v2653 = vunpack.c.l.b16 %v1087
    %v2654 = vunpack.c.h.b16 %v1087
    %v2655 = vunpack.c.l.b16 %v1088
    %v2656 = vunpack.c.l.b16 %v1089
    %v2657 = vunpack.c.h.b16 %v1089
    %v2658 = vunpack.c.l.b16 %v1090
    %v2659 = vunpack.c.h.b16 %v1090
    %v2660 = vunpack.c.l.b16 %v1091
    %v2661 = vunpack.c.h.b16 %v1091
    %v2662 = vunpack.c.l.b16 %v1092
    %v2663 = vunpack.c.h.b16 %v1092
    %v2664 = vunpack.c.l.b16 %v1093
    %v2665 = vunpack.c.h.b16 %v1093
    %v2666 = vunpack.c.l.b16 %v1094
    %v2667 = vunpack.c.h.b16 %v1094
    %v2668 = vunpack.c.l.b16 %v1095
    %v2669 = vunpack.c.l.b16 %v1096
    %v2670 = vunpack.c.h.b16 %v1096
    %v2671 = vunpack.c.l.b16 %v1097
    %v2672 = vunpack.c.h.b16 %v1097
    %v2673 = vunpack.c.l.b16 %v1098
    %v2674 = vunpack.c.h.b16 %v1098
    %v2675 = vunpack.c.l.b16 %v1099
    %v2676 = vunpack.c.h.b16 %v1099
    %v2677 = vunpack.c.l.b16 %v1100
    %v2678 = vunpack.c.h.b16 %v1100
    %v2679 = vunpack.c.l.b16 %v1101
    %v2680 = vunpack.c.h.b16 %v1101
    %v2681 = vunpack.c.l.b16 %v1102
    %v2682 = vunpack.c.l.b16 %v1103
    %v2683 = vunpack.c.h.b16 %v1103
    %v2684 = vunpack.c.l.b16 %v1104
    %v2685 = vunpack.c.h.b16 %v1104
    %v2686 = vunpack.c.l.b16 %v1105
    %v2687 = vunpack.c.h.b16 %v1105
    %v2688 = vunpack.c.l.b16 %v1106
    %v2689 = vunpack.c.h.b16 %v1106
    %v2690 = vunpack.c.l.b16 %v1107
    %v2691 = vunpack.c.h.b16 %v1107
    %v2692 = vunpack.c.l.b16 %v1108
    %v2693 = vunpack.c.h.b16 %v1108
    %v2694 = vunpack.c.l.b16 %v1109
    %v2695 = vunpack.c.l.b16 %v1110
    %v2696 = vunpack.c.h.b16 %v1110
    %v2697 = vunpack.c.l.b16 %v1111
    %v2698 = vunpack.c.h.b16 %v1111
    %v2699 = vunpack.c.l.b16 %v1112
    %v2700 = vunpack.c.h.b16 %v1112
    %v2701 = vunpack.c.l.b16 %v1113
    %v2702 = vunpack.c.h.b16 %v1113
    %v2703 = vunpack.c.l.b16 %v1114
    %v2704 = vunpack.c.h.b16 %v1114
    %v2705 = vunpack.c.l.b16 %v1115
    %v2706 = vunpack.c.h.b16 %v1115
    %v2707 = vunpack.c.l.b16 %v1116
    %v2708 = vunpack.c.l.b16 %v1117
    %v2709 = vunpack.c.h.b16 %v1117
    %v2710 = vunpack.c.l.b16 %v1118
    %v2711 = vunpack.c.h.b16 %v1118
    %v2712 = vunpack.c.l.b16 %v1119
    %v2713 = vunpack.c.h.b16 %v1119
    %v2714 = vunpack.c.l.b16 %v1120
    %v2715 = vunpack.c.h.b16 %v1120
    %v2716 = vunpack.c.l.b16 %v1121
    %v2717 = vunpack.c.h.b16 %v1121
    %v2718 = vunpack.c.l.b16 %v1122
    %v2719 = vunpack.c.h.b16 %v1122
    %v2720 = vunpack.c.l.b16 %v1123
    %v2721 = vunpack.c.l.b16 %v1124
    %v2722 = vunpack.c.h.b16 %v1124
    %v2723 = vunpack.c.l.b16 %v1125
    %v2724 = vunpack.c.h.b16 %v1125
    %v2725 = vunpack.c.l.b16 %v1126
    %v2726 = vunpack.c.h.b16 %v1126
    %v2727 = vunpack.c.l.b16 %v1127
    %v2728 = vunpack.c.h.b16 %v1127
    %v2729 = vunpack.c.l.b16 %v1128
    %v2730 = vunpack.c.h.b16 %v1128
    %v2731 = vunpack.c.l.b16 %v1129
    %v2732 = vunpack.c.h.b16 %v1129
    %v2733 = vunpack.c.l.b16 %v1130
    %v2734 = vunpack.c.l.b16 %v1131
    %v2735 = vunpack.c.h.b16 %v1131
    %v2736 = vunpack.c.l.b16 %v1132
    %v2737 = vunpack.c.h.b16 %v1132
    %v2738 = vunpack.c.l.b16 %v1133
    %v2739 = vunpack.c.h.b16 %v1133
    %v2740 = vunpack.c.l.b16 %v1134
    %v2741 = vunpack.c.h.b16 %v1134
    %v2742 = vunpack.c.l.b16 %v1135
    %v2743 = vunpack.c.h.b16 %v1135
    %v2744 = vunpack.c.l.b16 %v1136
    %v2745 = vunpack.c.h.b16 %v1136
    %v2746 = vunpack.c.l.b16 %v1137
    %v2747 = vunpack.c.l.b16 %v1138
    %v2748 = vunpack.c.h.b16 %v1138
    %v2749 = vunpack.c.l.b16 %v1139
    %v2750 = vunpack.c.h.b16 %v1139
    %v2751 = vunpack.c.l.b16 %v1140
    %v2752 = vunpack.c.h.b16 %v1140
    %v2753 = vunpack.c.l.b16 %v1141
    %v2754 = vunpack.c.h.b16 %v1141
    %v2755 = vunpack.c.l.b16 %v1142
    %v2756 = vunpack.c.h.b16 %v1142
    %v2757 = vunpack.c.l.b16 %v1143
    %v2758 = vunpack.c.h.b16 %v1143
    %v2759 = vunpack.c.l.b16 %v1144
    %v2760 = vunpack.c.l.b16 %v1145
    %v2761 = vunpack.c.h.b16 %v1145
    %v2762 = vunpack.c.l.b16 %v1146
    %v2763 = vunpack.c.h.b16 %v1146
    %v2764 = vunpack.c.l.b16 %v1147
    %v2765 = vunpack.c.h.b16 %v1147
    %v2766 = vunpack.c.l.b16 %v1148
    %v2767 = vunpack.c.h.b16 %v1148
    %v2768 = vunpack.c.l.b16 %v1149
    %v2769 = vunpack.c.h.b16 %v1149
    %v2770 = vunpack.c.l.b16 %v1150
    %v2771 = vunpack.c.h.b16 %v1150
    %v2772 = vunpack.c.l.b16 %v1151
    %v2773 = vunpack.c.l.b16 %v1152
    %v2774 = vunpack.c.h.b16 %v1152
    %v2775 = vunpack.c.l.b16 %v1153
    %v2776 = vunpack.c.h.b16 %v1153
    %v2777 = vunpack.c.l.b16 %v1154
    %v2778 = vunpack.c.h.b16 %v1154
    %v2779 = vunpack.c.l.b16 %v1155
    %v2780 = vunpack.c.h.b16 %v1155
    %v2781 = vunpack.c.l.b16 %v1156
    %v2782 = vunpack.c.h.b16 %v1156
    %v2783 = vunpack.c.l.b16 %v1157
    %v2784 = vunpack.c.h.b16 %v1157
    %v2785 = vunpack.c.l.b16 %v1158
    %v2786 = vunpack.c.l.b16 %v1159
    %v2787 = vunpack.c.h.b16 %v1159
    %v2788 = vunpack.c.l.b16 %v1160
    %v2789 = vunpack.c.h.b16 %v1160
    %v2790 = vunpack.c.l.b16 %v1161
    %v2791 = vunpack.c.h.b16 %v1161
    %v2792 = vunpack.c.l.b16 %v1162
    %v2793 = vunpack.c.h.b16 %v1162
    %v2794 = vunpack.c.l.b16 %v1163
    %v2795 = vunpack.c.h.b16 %v1163
    %v2796 = vunpack.c.l.b16 %v1164
    %v2797 = vunpack.c.h.b16 %v1164
    %v2798 = vunpack.c.l.b16 %v1165
    %v2799 = vunpack.c.l.b16 %v1166
    %v2800 = vunpack.c.h.b16 %v1166
    %v2801 = vunpack.c.l.b16 %v1167
    %v2802 = vunpack.c.h.b16 %v1167
    %v2803 = vunpack.c.l.b16 %v1168
    %v2804 = vunpack.c.h.b16 %v1168
    %v2805 = vunpack.c.l.b16 %v1169
    %v2806 = vunpack.c.h.b16 %v1169
    %v2807 = vunpack.c.l.b16 %v1170
    %v2808 = vunpack.c.h.b16 %v1170
    %v2809 = vunpack.c.l.b16 %v1171
    %v2810 = vunpack.c.h.b16 %v1171
    %v2811 = vunpack.c.l.b16 %v1172
    %v2812 = vunpack.c.l.b16 %v1173
    %v2813 = vunpack.c.h.b16 %v1173
    %v2814 = vunpack.c.l.b16 %v1174
    %v2815 = vunpack.c.h.b16 %v1174
    %v2816 = vunpack.c.l.b16 %v1175
    %v2817 = vunpack.c.h.b16 %v1175
    %v2818 = vunpack.c.l.b16 %v1176
    %v2819 = vunpack.c.h.b16 %v1176
    %v2820 = vunpack.c.l.b16 %v1177
    %v2821 = vunpack.c.h.b16 %v1177
    %v2822 = vunpack.c.l.b16 %v1178
    %v2823 = vunpack.c.h.b16 %v1178
    %v2824 = vunpack.c.l.b16 %v1179
    %v2825 = vunpack.c.l.b16 %v1180
    %v2826 = vunpack.c.h.b16 %v1180
    %v2827 = vunpack.c.l.b16 %v1181
    %v2828 = vunpack.c.h.b16 %v1181
    %v2829 = vunpack.c.l.b16 %v1182
    %v2830 = vunpack.c.h.b16 %v1182
    %v2831 = vunpack.c.l.b16 %v1183
    %v2832 = vunpack.c.h.b16 %v1183
    %v2833 = vunpack.c.l.b16 %v1184
    %v2834 = vunpack.c.h.b16 %v1184
    %v2835 = vunpack.c.l.b16 %v1185
    %v2836 = vunpack.c.h.b16 %v1185
    %v2837 = vunpack.c.l.b16 %v1186
    %v2838 = vunpack.c.l.b16 %v1187
    %v2839 = vunpack.c.h.b16 %v1187
    %v2840 = vunpack.c.l.b16 %v1188
    %v2841 = vunpack.c.h.b16 %v1188
    %v2842 = vunpack.c.l.b16 %v1189
    %v2843 = vunpack.c.h.b16 %v1189
    %v2844 = vunpack.c.l.b16 %v1190
    %v2845 = vunpack.c.h.b16 %v1190
    %v2846 = vunpack.c.l.b16 %v1191
    %v2847 = vunpack.c.h.b16 %v1191
    %v2848 = vunpack.c.l.b16 %v1192
    %v2849 = vunpack.c.h.b16 %v1192
    %v2850 = vunpack.c.l.b16 %v1193
    %v2851 = vunpack.c.l.b16 %v1194
    %v2852 = vunpack.c.h.b16 %v1194
    %v2853 = vunpack.c.l.b16 %v1195
    %v2854 = vunpack.c.h.b16 %v1195
    %v2855 = vunpack.c.l.b16 %v1196
    %v2856 = vunpack.c.h.b16 %v1196
    %v2857 = vunpack.c.l.b16 %v1197
    %v2858 = vunpack.c.h.b16 %v1197
    %v2859 = vunpack.c.l.b16 %v1198
    %v2860 = vunpack.c.h.b16 %v1198
    %v2861 = vunpack.c.l.b16 %v1199
    %v2862 = vunpack.c.h.b16 %v1199
    %v2863 = vunpack.c.l.b16 %v1200
    %v2864 = vunpack.c.l.b16 %v1201
    %v2865 = vunpack.c.h.b16 %v1201
    %v2866 = vunpack.c.l.b16 %v1202
    %v2867 = vunpack.c.h.b16 %v1202
    %v2868 = vunpack.c.l.b16 %v1203
    %v2869 = vunpack.c.h.b16 %v1203
    %v2870 = vunpack.c.l.b16 %v1204
    %v2871 = vunpack.c.h.b16 %v1204
    %v2872 = vunpack.c.l.b16 %v1205
    %v2873 = vunpack.c.h.b16 %v1205
    %v2874 = vunpack.c.l.b16 %v1206
    %v2875 = vunpack.c.h.b16 %v1206
    %v2876 = vunpack.c.l.b16 %v1207
    %v2877 = vunpack.c.l.b16 %v1208
    %v2878 = vunpack.c.h.b16 %v1208
    %v2879 = vunpack.c.l.b16 %v1209
    %v2880 = vunpack.c.h.b16 %v1209
    %v2881 = vunpack.c.l.b16 %v1210
    %v2882 = vunpack.c.h.b16 %v1210
    %v2883 = vunpack.c.l.b16 %v1211
    %v2884 = vunpack.c.h.b16 %v1211
    %v2885 = vunpack.c.l.b16 %v1212
    %v2886 = vunpack.c.h.b16 %v1212
    %v2887 = vunpack.c.l.b16 %v1213
    %v2888 = vunpack.c.h.b16 %v1213
    %v2889 = vunpack.c.l.b16 %v1214
    %v2890 = vunpack.c.l.b16 %v1215
    %v2891 = vunpack.c.h.b16 %v1215
    %v2892 = vunpack.c.l.b16 %v1216
    %v2893 = vunpack.c.h.b16 %v1216
    %v2894 = vunpack.c.l.b16 %v1217
    %v2895 = vunpack.c.h.b16 %v1217
    %v2896 = vunpack.c.l.b16 %v1218
    %v2897 = vunpack.c.h.b16 %v1218
    %v2898 = vunpack.c.l.b16 %v1219
    %v2899 = vunpack.c.h.b16 %v1219
    %v2900 = vunpack.c.l.b16 %v1220
    %v2901 = vunpack.c.h.b16 %v1220
    %v2902 = vunpack.c.l.b16 %v1221
    %v2903 = vunpack.c.l.b16 %v1222
    %v2904 = vunpack.c.h.b16 %v1222
    %v2905 = vunpack.c.l.b16 %v1223
    %v2906 = vunpack.c.h.b16 %v1223
    %v2907 = vunpack.c.l.b16 %v1224
    %v2908 = vunpack.c.h.b16 %v1224
    %v2909 = vunpack.c.l.b16 %v1225
    %v2910 = vunpack.c.h.b16 %v1225
    %v2911 = vunpack.c.l.b16 %v1226
    %v2912 = vunpack.c.h.b16 %v1226
    %v2913 = vunpack.c.l.b16 %v1227
    %v2914 = vunpack.c.h.b16 %v1227
    %v2915 = vunpack.c.l.b16 %v1228
    %v2916 = vunpack.c.l.b16 %v1229
    %v2917 = vunpack.c.h.b16 %v1229
    %v2918 = vunpack.c.l.b16 %v1230
    %v2919 = vunpack.c.h.b16 %v1230
    %v2920 = vunpack.c.l.b16 %v1231
    %v2921 = vunpack.c.h.b16 %v1231
    %v2922 = vunpack.c.l.b16 %v1232
    %v2923 = vunpack.c.h.b16 %v1232
    %v2924 = vunpack.c.l.b16 %v1233
    %v2925 = vunpack.c.h.b16 %v1233
    %v2926 = vunpack.c.l.b16 %v1234
    %v2927 = vunpack.c.h.b16 %v1234
    %v2928 = vunpack.c.l.b16 %v1235
    %v2929 = vunpack.c.l.b16 %v1236
    %v2930 = vunpack.c.h.b16 %v1236
    %v2931 = vunpack.c.l.b16 %v1237
    %v2932 = vunpack.c.h.b16 %v1237
    %v2933 = vunpack.c.l.b16 %v1238
    %v2934 = vunpack.c.h.b16 %v1238
    %v2935 = vunpack.c.l.b16 %v1239
    %v2936 = vunpack.c.h.b16 %v1239
    %v2937 = vunpack.c.l.b16 %v1240
    %v2938 = vunpack.c.h.b16 %v1240
    %v2939 = vunpack.c.l.b16 %v1241
    %v2940 = vunpack.c.h.b16 %v1241
    %v2941 = vunpack.c.l.b16 %v1242
    %v2942 = vunpack.c.l.b16 %v1243
    %v2943 = vunpack.c.h.b16 %v1243
    %v2944 = vunpack.c.l.b16 %v1244
    %v2945 = vunpack.c.h.b16 %v1244
    %v2946 = vunpack.c.l.b16 %v1245
    %v2947 = vunpack.c.h.b16 %v1245
    %v2948 = vunpack.c.l.b16 %v1246
    %v2949 = vunpack.c.h.b16 %v1246
    %v2950 = vunpack.c.l.b16 %v1247
    %v2951 = vunpack.c.h.b16 %v1247
    %v2952 = vunpack.c.l.b16 %v1248
    %v2953 = vunpack.c.h.b16 %v1248
    %v2954 = vunpack.c.l.b16 %v1249
    %v2955 = vunpack.c.l.b16 %v1250
    %v2956 = vunpack.c.h.b16 %v1250
    %v2957 = vunpack.c.l.b16 %v1251
    %v2958 = vunpack.c.h.b16 %v1251
    %v2959 = vunpack.c.l.b16 %v1252
    %v2960 = vunpack.c.h.b16 %v1252
    %v2961 = vunpack.c.l.b16 %v1253
    %v2962 = vunpack.c.h.b16 %v1253
    %v2963 = vunpack.c.l.b16 %v1254
    %v2964 = vunpack.c.h.b16 %v1254
    %v2965 = vunpack.c.l.b16 %v1255
    %v2966 = vunpack.c.h.b16 %v1255
    %v2967 = vunpack.c.l.b16 %v1256
    %v2968 = vunpack.c.l.b16 %v1257
    %v2969 = vunpack.c.h.b16 %v1257
    %v2970 = vunpack.c.l.b16 %v1258
    %v2971 = vunpack.c.h.b16 %v1258
    %v2972 = vunpack.c.l.b16 %v1259
    %v2973 = vunpack.c.h.b16 %v1259
    %v2974 = vunpack.c.l.b16 %v1260
    %v2975 = vunpack.c.h.b16 %v1260
    %v2976 = vunpack.c.l.b16 %v1261
    %v2977 = vunpack.c.h.b16 %v1261
    %v2978 = vunpack.c.l.b16 %v1262
    %v2979 = vunpack.c.h.b16 %v1262
    %v2980 = vunpack.c.l.b16 %v1263
    %v2981 = vunpack.c.l.b16 %v1264
    %v2982 = vunpack.c.h.b16 %v1264
    %v2983 = vunpack.c.l.b16 %v1265
    %v2984 = vunpack.c.h.b16 %v1265
    %v2985 = vunpack.c.l.b16 %v1266
    %v2986 = vunpack.c.h.b16 %v1266
    %v2987 = vunpack.c.l.b16 %v1267
    %v2988 = vunpack.c.h.b16 %v1267
    %v2989 = vunpack.c.l.b16 %v1268
    %v2990 = vunpack.c.h.b16 %v1268
    %v2991 = vunpack.c.l.b16 %v1269
    %v2992 = vunpack.c.h.b16 %v1269
    %v2993 = vunpack.c.l.b16 %v1270
    %v2994 = vunpack.c.l.b16 %v1271
    %v2995 = vunpack.c.h.b16 %v1271
    %v2996 = vunpack.c.l.b16 %v1272
    %v2997 = vunpack.c.h.b16 %v1272
    %v2998 = vunpack.c.l.b16 %v1273
    %v2999 = vunpack.c.h.b16 %v1273
    %v3000 = vunpack.c.l.b16 %v1274
    %v3001 = vunpack.c.h.b16 %v1274
    %v3002 = vunpack.c.l.b16 %v1275
    %v3003 = vunpack.c.h.b16 %v1275
    %v3004 = vunpack.c.l.b16 %v1276
    %v3005 = vunpack.c.h.b16 %v1276
    %v3006 = vunpack.c.l.b16 %v1277
    %v3007 = vunpack.c.l.b16 %v1278
    %v3008 = vunpack.c.h.b16 %v1278
    %v3009 = vunpack.c.l.b16 %v1279
    %v3010 = vunpack.c.h.b16 %v1279
    %v3011 = vunpack.c.l.b16 %v1280
    %v3012 = vunpack.c.h.b16 %v1280
    %v3013 = vunpack.c.l.b16 %v1281
    %v3014 = vunpack.c.h.b16 %v1281
    %v3015 = vunpack.c.l.b16 %v1282
    %v3016 = vunpack.c.h.b16 %v1282
    %v3017 = vunpack.c.l.b16 %v1283
    %v3018 = vunpack.c.h.b16 %v1283
    %v3019 = vunpack.c.l.b16 %v1284
    %v3020 = vunpack.c.l.b16 %v1285
    %v3021 = vunpack.c.h.b16 %v1285
    %v3022 = vunpack.c.l.b16 %v1286
    %v3023 = vunpack.c.h.b16 %v1286
    %v3024 = vunpack.c.l.b16 %v1287
    %v3025 = vunpack.c.h.b16 %v1287
    %v3026 = vunpack.c.l.b16 %v1288
    %v3027 = vunpack.c.h.b16 %v1288
    %v3028 = vunpack.c.l.b16 %v1289
    %v3029 = vunpack.c.h.b16 %v1289
    %v3030 = vunpack.c.l.b16 %v1290
    %v3031 = vunpack.c.h.b16 %v1290
    %v3032 = vunpack.c.l.b16 %v1291
    %v3033 = vunpack.c.l.b16 %v1292
    %v3034 = vunpack.c.h.b16 %v1292
    %v3035 = vunpack.c.l.b16 %v1293
    %v3036 = vunpack.c.h.b16 %v1293
    %v3037 = vunpack.c.l.b16 %v1294
    %v3038 = vunpack.c.h.b16 %v1294
    %v3039 = vunpack.c.l.b16 %v1295
    %v3040 = vunpack.c.h.b16 %v1295
    %v3041 = vunpack.c.l.b16 %v1296
    %v3042 = vunpack.c.h.b16 %v1296
    %v3043 = vunpack.c.l.b16 %v1297
    %v3044 = vunpack.c.h.b16 %v1297
    %v3045 = vunpack.c.l.b16 %v1298
    %v3046 = vunpack.c.l.b16 %v1299
    %v3047 = vunpack.c.h.b16 %v1299
    %v3048 = vunpack.c.l.b16 %v1300
    %v3049 = vunpack.c.h.b16 %v1300
    %v3050 = vunpack.c.l.b16 %v1301
    %v3051 = vunpack.c.h.b16 %v1301
    %v3052 = vunpack.c.l.b16 %v1302
    %v3053 = vunpack.c.h.b16 %v1302
    %v3054 = vunpack.c.l.b16 %v1303
    %v3055 = vunpack.c.h.b16 %v1303
    %v3056 = vunpack.c.l.b16 %v1304
    %v3057 = vunpack.c.h.b16 %v1304
    %v3058 = vunpack.c.l.b16 %v1305
    %v3059 = vunpack.c.l.b16 %v1306
    %v3060 = vunpack.c.h.b16 %v1306
    %v3061 = vunpack.c.l.b16 %v1307
    %v3062 = vunpack.c.h.b16 %v1307
    %v3063 = vunpack.c.l.b16 %v1308
    %v3064 = vunpack.c.h.b16 %v1308
    %v3065 = vunpack.c.l.b16 %v1309
    %v3066 = vunpack.c.h.b16 %v1309
    %v3067 = vunpack.c.l.b16 %v1310
    %v3068 = vunpack.c.h.b16 %v1310
    %v3069 = vunpack.c.l.b16 %v1311
    %v3070 = vunpack.c.h.b16 %v1311
    %v3071 = vunpack.c.l.b16 %v1312
    %v3072 = vunpack.c.l.b16 %v1313
    %v3073 = vunpack.c.h.b16 %v1313
    %v3074 = vunpack.c.l.b16 %v1314
    %v3075 = vunpack.c.h.b16 %v1314
    %v3076 = vunpack.c.l.b16 %v1315
    %v3077 = vunpack.c.h.b16 %v1315
    %v3078 = vunpack.c.l.b16 %v1316
    %v3079 = vunpack.c.h.b16 %v1316
    %v3080 = vunpack.c.l.b16 %v1317
    %v3081 = vunpack.c.h.b16 %v1317
    %v3082 = vunpack.c.l.b16 %v1318
    %v3083 = vunpack.c.h.b16 %v1318
    %v3084 = vunpack.c.l.b16 %v1319
    %v3085 = vunpack.c.l.b16 %v1320
    %v3086 = vunpack.c.h.b16 %v1320
    %v3087 = vunpack.c.l.b16 %v1321
    %v3088 = vunpack.c.h.b16 %v1321
    %v3089 = vunpack.c.l.b16 %v1322
    %v3090 = vunpack.c.h.b16 %v1322
    %v3091 = vunpack.c.l.b16 %v1323
    %v3092 = vunpack.c.h.b16 %v1323
    %v3093 = vunpack.c.l.b16 %v1324
    %v3094 = vunpack.c.h.b16 %v1324
    %v3095 = vunpack.c.l.b16 %v1325
    %v3096 = vunpack.c.h.b16 %v1325
    %v3097 = vunpack.c.l.b16 %v1326
    %v3098 = vunpack.c.l.b16 %v1327
    %v3099 = vunpack.c.h.b16 %v1327
    %v3100 = vunpack.c.l.b16 %v1328
    %v3101 = vunpack.c.h.b16 %v1328
    %v3102 = vunpack.c.l.b16 %v1329
    %v3103 = vunpack.c.h.b16 %v1329
    %v3104 = vunpack.c.l.b16 %v1330
    %v3105 = vunpack.c.h.b16 %v1330
    %v3106 = vunpack.c.l.b16 %v1331
    %v3107 = vunpack.c.h.b16 %v1331
    %v3108 = vunpack.c.l.b16 %v1332
    %v3109 = vunpack.c.h.b16 %v1332
    %v3110 = vunpack.c.l.b16 %v1333
    %v3111 = vunpack.c.l.b16 %v1334
    %v3112 = vunpack.c.h.b16 %v1334
    %v3113 = vunpack.c.l.b16 %v1335
    %v3114 = vunpack.c.h.b16 %v1335
    %v3115 = vunpack.c.l.b16 %v1336
    %v3116 = vunpack.c.h.b16 %v1336
    %v3117 = vunpack.c.l.b16 %v1337
    %v3118 = vunpack.c.h.b16 %v1337
    %v3119 = vunpack.c.l.b16 %v1338
    %v3120 = vunpack.c.h.b16 %v1338
    %v3121 = vunpack.c.l.b16 %v1339
    %v3122 = vunpack.c.h.b16 %v1339
    %v3123 = vunpack.c.l.b16 %v1340
    %v3124 = vunpack.c.l.b16 %v1341
    %v3125 = vunpack.c.h.b16 %v1341
    %v3126 = vunpack.c.l.b16 %v1342
    %v3127 = vunpack.c.h.b16 %v1342
    %v3128 = vunpack.c.l.b16 %v1343
    %v3129 = vunpack.c.h.b16 %v1343
    %v3130 = vunpack.c.l.b16 %v1344
    %v3131 = vunpack.c.h.b16 %v1344
    %v3132 = vunpack.c.l.b16 %v1345
    %v3133 = vunpack.c.h.b16 %v1345
    %v3134 = vunpack.c.l.b16 %v1346
    %v3135 = vunpack.c.h.b16 %v1346
    %v3136 = vunpack.c.l.b16 %v1347
    %v3137 = vunpack.c.l.b16 %v1348
    %v3138 = vunpack.c.h.b16 %v1348
    %v3139 = vunpack.c.l.b16 %v1349
    %v3140 = vunpack.c.h.b16 %v1349
    %v3141 = vunpack.c.l.b16 %v1350
    %v3142 = vunpack.c.h.b16 %v1350
    %v3143 = vunpack.c.l.b16 %v1351
    %v3144 = vunpack.c.h.b16 %v1351
    %v3145 = vunpack.c.l.b16 %v1352
    %v3146 = vunpack.c.h.b16 %v1352
    %v3147 = vunpack.c.l.b16 %v1353
    %v3148 = vunpack.c.h.b16 %v1353
    %v3149 = vunpack.c.l.b16 %v1354
    %v3150 = vunpack.c.l.b16 %v1355
    %v3151 = vunpack.c.h.b16 %v1355
    %v3152 = vunpack.c.l.b16 %v1356
    %v3153 = vunpack.c.h.b16 %v1356
    %v3154 = vunpack.c.l.b16 %v1357
    %v3155 = vunpack.c.h.b16 %v1357
    %v3156 = vunpack.c.l.b16 %v1358
    %v3157 = vunpack.c.h.b16 %v1358
    %v3158 = vunpack.c.l.b16 %v1359
    %v3159 = vunpack.c.h.b16 %v1359
    %v3160 = vunpack.c.l.b16 %v1360
    %v3161 = vunpack.c.h.b16 %v1360
    %v3162 = vunpack.c.l.b16 %v1361
    %v3163 = vunpack.c.l.b16 %v1362
    %v3164 = vunpack.c.h.b16 %v1362
    %v3165 = vunpack.c.l.b16 %v1363
    %v3166 = vunpack.c.h.b16 %v1363
    %v3167 = vunpack.c.l.b16 %v1364
    %v3168 = vunpack.c.h.b16 %v1364
    %v3169 = vunpack.c.l.b16 %v1365
    %v3170 = vunpack.c.h.b16 %v1365
    %v3171 = vunpack.c.l.b16 %v1366
    %v3172 = vunpack.c.h.b16 %v1366
    %v3173 = vunpack.c.l.b16 %v1367
    %v3174 = vunpack.c.h.b16 %v1367
    %v3175 = vunpack.c.l.b16 %v1368
    %v3176 = vunpack.c.l.b16 %v1369
    %v3177 = vunpack.c.h.b16 %v1369
    %v3178 = vunpack.c.l.b16 %v1370
    %v3179 = vunpack.c.h.b16 %v1370
    %v3180 = vunpack.c.l.b16 %v1371
    %v3181 = vunpack.c.h.b16 %v1371
    %v3182 = vunpack.c.l.b16 %v1372
    %v3183 = vunpack.c.h.b16 %v1372
    %v3184 = vunpack.c.l.b16 %v1373
    %v3185 = vunpack.c.h.b16 %v1373
    %v3186 = vunpack.c.l.b16 %v1374
    %v3187 = vunpack.c.h.b16 %v1374
    %v3188 = vunpack.c.l.b16 %v1375
    %v3189 = vunpack.c.l.b16 %v1376
    %v3190 = vunpack.c.h.b16 %v1376
    %v3191 = vunpack.c.l.b16 %v1377
    %v3192 = vunpack.c.h.b16 %v1377
    %v3193 = vunpack.c.l.b16 %v1378
    %v3194 = vunpack.c.h.b16 %v1378
    %v3195 = vunpack.c.l.b16 %v1379
    %v3196 = vunpack.c.h.b16 %v1379
    %v3197 = vunpack.c.l.b16 %v1380
    %v3198 = vunpack.c.h.b16 %v1380
    %v3199 = vunpack.c.l.b16 %v1381
    %v3200 = vunpack.c.h.b16 %v1381
    %v3201 = vunpack.c.l.b16 %v1382
    %v3202 = vunpack.c.l.b16 %v1383
    %v3203 = vunpack.c.h.b16 %v1383
    %v3204 = vunpack.c.l.b16 %v1384
    %v3205 = vunpack.c.h.b16 %v1384
    %v3206 = vunpack.c.l.b16 %v1385
    %v3207 = vunpack.c.h.b16 %v1385
    %v3208 = vunpack.c.l.b16 %v1386
    %v3209 = vunpack.c.h.b16 %v1386
    %v3210 = vunpack.c.l.b16 %v1387
    %v3211 = vunpack.c.h.b16 %v1387
    %v3212 = vunpack.c.l.b16 %v1388
    %v3213 = vunpack.c.h.b16 %v1388
    %v3214 = vunpack.c.l.b16 %v1389
    %v3215 = vunpack.c.l.b16 %v1390
    %v3216 = vunpack.c.h.b16 %v1390
    %v3217 = vunpack.c.l.b16 %v1391
    %v3218 = vunpack.c.h.b16 %v1391
    %v3219 = vunpack.c.l.b16 %v1392
    %v3220 = vunpack.c.h.b16 %v1392
    %v3221 = vunpack.c.l.b16 %v1393
    %v3222 = vunpack.c.h.b16 %v1393
    %v3223 = vunpack.c.l.b16 %v1394
    %v3224 = vunpack.c.h.b16 %v1394
    %v3225 = vunpack.c.l.b16 %v1395
    %v3226 = vunpack.c.h.b16 %v1395
    %v3227 = vunpack.c.l.b16 %v1396
    %v3228 = vunpack.c.l.b16 %v1397
    %v3229 = vunpack.c.h.b16 %v1397
    %v3230 = vunpack.c.l.b16 %v1398
    %v3231 = vunpack.c.h.b16 %v1398
    %v3232 = vunpack.c.l.b16 %v1399
    %v3233 = vunpack.c.h.b16 %v1399
    %v3234 = vunpack.c.l.b16 %v1400
    %v3235 = vunpack.c.h.b16 %v1400
    %v3236 = vunpack.c.l.b16 %v1401
    %v3237 = vunpack.c.h.b16 %v1401
    %v3238 = vunpack.c.l.b16 %v1402
    %v3239 = vunpack.c.h.b16 %v1402
    %v3240 = vunpack.c.l.b16 %v1403
    %v3241 = vunpack.c.l.b16 %v1404
    %v3242 = vunpack.c.h.b16 %v1404
    %v3243 = vunpack.c.l.b16 %v1405
    %v3244 = vunpack.c.h.b16 %v1405
    %v3245 = vunpack.c.l.b16 %v1406
    %v3246 = vunpack.c.h.b16 %v1406
    %v3247 = vunpack.c.l.b16 %v1407
    %v3248 = vunpack.c.h.b16 %v1407
    %v3249 = vunpack.c.l.b16 %v1408
    %v3250 = vunpack.c.h.b16 %v1408
    %v3251 = vunpack.c.l.b16 %v1409
    %v3252 = vunpack.c.h.b16 %v1409
    %v3253 = vunpack.c.l.b16 %v1410
    %v3254 = vunpack.c.l.b16 %v1411
    %v3255 = vunpack.c.h.b16 %v1411
    %v3256 = vunpack.c.l.b16 %v1412
    %v3257 = vunpack.c.h.b16 %v1412
    %v3258 = vunpack.c.l.b16 %v1413
    %v3259 = vunpack.c.h.b16 %v1413
    %v3260 = vunpack.c.l.b16 %v1414
    %v3261 = vunpack.c.h.b16 %v1414
    %v3262 = vunpack.c.l.b16 %v1415
    %v3263 = vunpack.c.h.b16 %v1415
    %v3264 = vunpack.c.l.b16 %v1416
    %v3265 = vunpack.c.h.b16 %v1416
    %v3266 = vunpack.c.l.b16 %v1417
    %v3267 = vunpack.c.l.b16 %v1418
    %v3268 = vunpack.c.h.b16 %v1418
    %v3269 = vunpack.c.l.b16 %v1419
    %v3270 = vunpack.c.h.b16 %v1419
    %v3271 = vunpack.c.l.b16 %v1420
    %v3272 = vunpack.c.h.b16 %v1420
    %v3273 = vunpack.c.l.b16 %v1421
    %v3274 = vunpack.c.h.b16 %v1421
    %v3275 = vunpack.c.l.b16 %v1422
    %v3276 = vunpack.c.h.b16 %v1422
    %v3277 = vunpack.c.l.b16 %v1423
    %v3278 = vunpack.c.h.b16 %v1423
    %v3279 = vunpack.c.l.b16 %v1424
    %v3280 = vunpack.c.l.b16 %v1425
    %v3281 = vunpack.c.h.b16 %v1425
    %v3282 = vunpack.c.l.b16 %v1426
    %v3283 = vunpack.c.h.b16 %v1426
    %v3284 = vunpack.c.l.b16 %v1427
    %v3285 = vunpack.c.h.b16 %v1427
    %v3286 = vunpack.c.l.b16 %v1428
    %v3287 = vunpack.c.h.b16 %v1428
    %v3288 = vunpack.c.l.b16 %v1429
    %v3289 = vunpack.c.h.b16 %v1429
    %v3290 = vunpack.c.l.b16 %v1430
    %v3291 = vunpack.c.h.b16 %v1430
    %v3292 = vunpack.c.l.b16 %v1431
    %v3293 = vunpack.c.l.b16 %v1432
    %v3294 = vunpack.c.h.b16 %v1432
    %v3295 = vunpack.c.l.b16 %v1433
    %v3296 = vunpack.c.h.b16 %v1433
    %v3297 = vunpack.c.l.b16 %v1434
    %v3298 = vunpack.c.h.b16 %v1434
    %v3299 = vunpack.c.l.b16 %v1435
    %v3300 = vunpack.c.h.b16 %v1435
    %v3301 = vunpack.c.l.b16 %v1436
    %v3302 = vunpack.c.h.b16 %v1436
    %v3303 = vunpack.c.l.b16 %v1437
    %v3304 = vunpack.c.h.b16 %v1437
    %v3305 = vunpack.c.l.b16 %v1438
    %v3306 = vunpack.c.l.b16 %v1439
    %v3307 = vunpack.c.h.b16 %v1439
    %v3308 = vunpack.c.l.b16 %v1440
    %v3309 = vunpack.c.h.b16 %v1440
    %v3310 = vunpack.c.l.b16 %v1441
    %v3311 = vunpack.c.h.b16 %v1441
    %v3312 = vunpack.c.l.b16 %v1442
    %v3313 = vunpack.c.h.b16 %v1442
    %v3314 = vunpack.c.l.b16 %v1443
    %v3315 = vunpack.c.h.b16 %v1443
    %v3316 = vunpack.c.l.b16 %v1444
    %v3317 = vunpack.c.h.b16 %v1444
    %v3318 = vunpack.c.l.b16 %v1445
    %v3319 = vunpack.c.l.b16 %v1446
    %v3320 = vunpack.c.h.b16 %v1446
    %v3321 = vunpack.c.l.b16 %v1447
    %v3322 = vunpack.c.h.b16 %v1447
    %v3323 = vunpack.c.l.b16 %v1448
    %v3324 = vunpack.c.h.b16 %v1448
    %v3325 = vunpack.c.l.b16 %v1449
    %v3326 = vunpack.c.h.b16 %v1449
    %v3327 = vunpack.c.l.b16 %v1450
    %v3328 = vunpack.c.h.b16 %v1450
    %v3329 = vunpack.c.l.b16 %v1451
    %v3330 = vunpack.c.h.b16 %v1451
    %v3331 = vunpack.c.l.b16 %v1452
    %v3332 = vunpack.c.l.b16 %v1453
    %v3333 = vunpack.c.h.b16 %v1453
    %v3334 = vunpack.c.l.b16 %v1454
    %v3335 = vunpack.c.h.b16 %v1454
    %v3336 = vunpack.c.l.b16 %v1455
    %v3337 = vunpack.c.h.b16 %v1455
    %v3338 = vunpack.c.l.b16 %v1456
    %v3339 = vunpack.c.h.b16 %v1456
    %v3340 = vunpack.c.l.b16 %v1457
    %v3341 = vunpack.c.h.b16 %v1457
    %v3342 = vunpack.c.l.b16 %v1458
    %v3343 = vunpack.c.h.b16 %v1458
    %v3344 = vunpack.c.l.b16 %v1459
    %v3345 = vunpack.c.l.b16 %v1460
    %v3346 = vunpack.c.h.b16 %v1460
    %v3347 = vunpack.c.l.b16 %v1461
    %v3348 = vunpack.c.h.b16 %v1461
    %v3349 = vunpack.c.l.b16 %v1462
    %v3350 = vunpack.c.h.b16 %v1462
    %v3351 = vunpack.c.l.b16 %v1463
    %v3352 = vunpack.c.h.b16 %v1463
    %v3353 = vunpack.c.l.b16 %v1464
    %v3354 = vunpack.c.h.b16 %v1464
    %v3355 = vunpack.c.l.b16 %v1465
    %v3356 = vunpack.c.h.b16 %v1465
    %v3357 = vunpack.c.l.b16 %v1466
    %v3358 = vunpack.c.l.b16 %v1467
    %v3359 = vunpack.c.h.b16 %v1467
    %v3360 = vunpack.c.l.b16 %v1468
    %v3361 = vunpack.c.h.b16 %v1468
    %v3362 = vunpack.c.l.b16 %v1469
    %v3363 = vunpack.c.h.b16 %v1469
    %v3364 = vunpack.c.l.b16 %v1470
    %v3365 = vunpack.c.h.b16 %v1470
    %v3366 = vunpack.c.l.b16 %v1471
    %v3367 = vunpack.c.h.b16 %v1471
    %v3368 = vunpack.c.l.b16 %v1472
    %v3369 = vunpack.c.h.b16 %v1472
    %v3370 = vunpack.c.l.b16 %v1473
    %v3371 = vunpack.c.l.b16 %v1474
    %v3372 = vunpack.c.h.b16 %v1474
    %v3373 = vunpack.c.l.b16 %v1475
    %v3374 = vunpack.c.h.b16 %v1475
    %v3375 = vunpack.c.l.b16 %v1476
    %v3376 = vunpack.c.h.b16 %v1476
    %v3377 = vunpack.c.l.b16 %v1477
    %v3378 = vunpack.c.h.b16 %v1477
    %v3379 = vunpack.c.l.b16 %v1478
    %v3380 = vunpack.c.h.b16 %v1478
    %v3381 = vunpack.c.l.b16 %v1479
    %v3382 = vunpack.c.h.b16 %v1479
    %v3383 = vunpack.c.l.b16 %v1480
    %v3384 = vunpack.c.l.b16 %v1481
    %v3385 = vunpack.c.h.b16 %v1481
    %v3386 = vunpack.c.l.b16 %v1482
    %v3387 = vunpack.c.h.b16 %v1482
    %v3388 = vunpack.c.l.b16 %v1483
    %v3389 = vunpack.c.h.b16 %v1483
    %v3390 = vunpack.c.l.b16 %v1484
    %v3391 = vunpack.c.h.b16 %v1484
    %v3392 = vunpack.c.l.b16 %v1485
    %v3393 = vunpack.c.h.b16 %v1485
    %v3394 = vunpack.c.l.b16 %v1486
    %v3395 = vunpack.c.h.b16 %v1486
    %v3396 = vunpack.c.l.b16 %v1487
    %v3397 = vunpack.c.l.b16 %v1488
    %v3398 = vunpack.c.h.b16 %v1488
    %v3399 = vunpack.c.l.b16 %v1489
    %v3400 = vunpack.c.h.b16 %v1489
    %v3401 = vunpack.c.l.b16 %v1490
    %v3402 = vunpack.c.h.b16 %v1490
    %v3403 = vunpack.c.l.b16 %v1491
    %v3404 = vunpack.c.h.b16 %v1491
    %v3405 = vunpack.c.l.b16 %v1492
    %v3406 = vunpack.c.h.b16 %v1492
    %v3407 = vunpack.c.l.b16 %v1493
    %v3408 = vunpack.c.h.b16 %v1493
    %v3409 = vunpack.c.l.b16 %v1494
    %v3410 = vunpack.c.l.b16 %v1495
    %v3411 = vunpack.c.h.b16 %v1495
    %v3412 = vunpack.c.l.b16 %v1496
    %v3413 = vunpack.c.h.b16 %v1496
    %v3414 = vunpack.c.l.b16 %v1497
    %v3415 = vunpack.c.h.b16 %v1497
    %v3416 = vunpack.c.l.b16 %v1498
    %v3417 = vunpack.c.h.b16 %v1498
    %v3418 = vunpack.c.l.b16 %v1499
    %v3419 = vunpack.c.h.b16 %v1499
    %v3420 = vunpack.c.l.b16 %v1500
    %v3421 = vunpack.c.h.b16 %v1500
    %v3422 = vunpack.c.l.b16 %v1501
    %v3423 = vunpack.c.l.b16 %v1502
    %v3424 = vunpack.c.h.b16 %v1502
    %v3425 = vunpack.c.l.b16 %v1503
    %v3426 = vunpack.c.h.b16 %v1503
    %v3427 = vunpack.c.l.b16 %v1504
    %v3428 = vunpack.c.h.b16 %v1504
    %v3429 = vunpack.c.l.b16 %v1505
    %v3430 = vunpack.c.h.b16 %v1505
    %v3431 = vunpack.c.l.b16 %v1506
    %v3432 = vunpack.c.h.b16 %v1506
    %v3433 = vunpack.c.l.b16 %v1507
    %v3434 = vunpack.c.h.b16 %v1507
    %v3435 = vunpack.c.l.b16 %v1508
    %v3436 = vunpack.c.l.b16 %v1509
    %v3437 = vunpack.c.h.b16 %v1509
    %v3438 = vunpack.c.l.b16 %v1510
    %v3439 = vunpack.c.h.b16 %v1510
    %v3440 = vunpack.c.l.b16 %v1511
    %v3441 = vunpack.c.h.b16 %v1511
    %v3442 = vunpack.c.l.b16 %v1512
    %v3443 = vunpack.c.h.b16 %v1512
    %v3444 = vunpack.c.l.b16 %v1513
    %v3445 = vunpack.c.h.b16 %v1513
    %v3446 = vunpack.c.l.b16 %v1514
    %v3447 = vunpack.c.h.b16 %v1514
    %v3448 = vunpack.c.l.b16 %v1515
    %v3449 = vunpack.c.l.b16 %v1516
    %v3450 = vunpack.c.h.b16 %v1516
    %v3451 = vunpack.c.l.b16 %v1517
    %v3452 = vunpack.c.h.b16 %v1517
    %v3453 = vunpack.c.l.b16 %v1518
    %v3454 = vunpack.c.h.b16 %v1518
    %v3455 = vunpack.c.l.b16 %v1519
    %v3456 = vunpack.c.h.b16 %v1519
    %v3457 = vunpack.c.l.b16 %v1520
    %v3458 = vunpack.c.h.b16 %v1520
    %v3459 = vunpack.c.l.b16 %v1521
    %v3460 = vunpack.c.h.b16 %v1521
    %v3461 = vunpack.c.l.b16 %v1522
    %v3462 = vunpack.c.l.b16 %v1523
    %v3463 = vunpack.c.h.b16 %v1523
    %v3464 = vunpack.c.l.b16 %v1524
    %v3465 = vunpack.c.h.b16 %v1524
    %v3466 = vunpack.c.l.b16 %v1525
    %v3467 = vunpack.c.h.b16 %v1525
    %v3468 = vunpack.c.l.b16 %v1526
    %v3469 = vunpack.c.h.b16 %v1526
    %v3470 = vunpack.c.l.b16 %v1527
    %v3471 = vunpack.c.h.b16 %v1527
    %v3472 = vunpack.c.l.b16 %v1528
    %v3473 = vunpack.c.h.b16 %v1528
    %v3474 = vunpack.c.l.b16 %v1529
    %v3475 = vunpack.c.l.b16 %v1530
    %v3476 = vunpack.c.h.b16 %v1530
    %v3477 = vunpack.c.l.b16 %v1531
    %v3478 = vunpack.c.h.b16 %v1531
    %v3479 = vunpack.c.l.b16 %v1532
    %v3480 = vunpack.c.h.b16 %v1532
    %v3481 = vunpack.c.l.b16 %v1533
    %v3482 = vunpack.c.h.b16 %v1533
    %v3483 = vunpack.c.l.b16 %v1534
    %v3484 = vunpack.c.h.b16 %v1534
    %v3485 = vunpack.c.l.b16 %v1535
    %v3486 = vunpack.c.h.b16 %v1535
    %v3487 = vunpack.c.l.b16 %v1536
    %v3488 = vunpack.c.l.b16 %v1537
    %v3489 = vunpack.c.h.b16 %v1537
    %v3490 = vunpack.c.l.b16 %v1538
    %v3491 = vunpack.c.h.b16 %v1538
    %v3492 = vunpack.c.l.b16 %v1539
    %v3493 = vunpack.c.h.b16 %v1539
    %v3494 = vunpack.c.l.b16 %v1540
    %v3495 = vunpack.c.h.b16 %v1540
    %v3496 = vunpack.c.l.b16 %v1541
    %v3497 = vunpack.c.h.b16 %v1541
    %v3498 = vunpack.c.l.b16 %v1542
    %v3499 = vunpack.c.h.b16 %v1542
    %v3500 = vunpack.c.l.b16 %v1543
    %v3501 = vunpack.c.l.b16 %v1544
    %v3502 = vunpack.c.h.b16 %v1544
    %v3503 = vunpack.c.l.b16 %v1545
    %v3504 = vunpack.c.h.b16 %v1545
    %v3505 = vunpack.c.l.b16 %v1546
    %v3506 = vunpack.c.h.b16 %v1546
    %v3507 = vunpack.c.l.b16 %v1547
    %v3508 = vunpack.c.h.b16 %v1547
    %v3509 = vunpack.c.l.b16 %v1548
    %v3510 = vunpack.c.h.b16 %v1548
    %v3511 = vunpack.c.l.b16 %v1549
    %v3512 = vunpack.c.h.b16 %v1549
    %v3513 = vunpack.c.l.b16 %v1550
    %v3514 = vunpack.c.l.b16 %v1551
    %v3515 = vunpack.c.h.b16 %v1551
    %v3516 = vunpack.c.l.b16 %v1552
    %v3517 = vunpack.c.h.b16 %v1552
    %v3518 = vunpack.c.l.b16 %v1553
    %v3519 = vunpack.c.h.b16 %v1553
    %v3520 = vunpack.c.l.b16 %v1554
    %v3521 = vunpack.c.h.b16 %v1554
    %v3522 = vunpack.c.l.b16 %v1555
    %v3523 = vunpack.c.h.b16 %v1555
    %v3524 = vunpack.c.l.b16 %v1556
    %v3525 = vunpack.c.h.b16 %v1556
    %v3526 = vunpack.c.l.b16 %v1557
    %v3527 = vunpack.c.l.b16 %v1558
    %v3528 = vunpack.c.h.b16 %v1558
    %v3529 = vunpack.c.l.b16 %v1559
    %v3530 = vunpack.c.h.b16 %v1559
    %v3531 = vunpack.c.l.b16 %v1560
    %v3532 = vunpack.c.h.b16 %v1560
    %v3533 = vunpack.c.l.b16 %v1561
    %v3534 = vunpack.c.h.b16 %v1561
    %v3535 = vunpack.c.l.b16 %v1562
    %v3536 = vunpack.c.h.b16 %v1562
    %v3537 = vunpack.c.l.b16 %v1563
    %v3538 = vunpack.c.h.b16 %v1563
    %v3539 = vunpack.c.l.b16 %v1564
    %v3540 = vunpack.c.l.b16 %v1565
    %v3541 = vunpack.c.h.b16 %v1565
    %v3542 = vunpack.c.l.b16 %v1566
    %v3543 = vunpack.c.h.b16 %v1566
    %v3544 = vunpack.c.l.b16 %v1567
    %v3545 = vunpack.c.h.b16 %v1567
    %v3546 = vunpack.c.l.b16 %v1568
    %v3547 = vunpack.c.h.b16 %v1568
    %v3548 = vunpack.c.l.b16 %v1569
    %v3549 = vunpack.c.h.b16 %v1569
    %v3550 = vunpack.c.l.b16 %v1570
    %v3551 = vunpack.c.h.b16 %v1570
    %v3552 = vunpack.c.l.b16 %v1571
    %v3553 = vunpack.c.l.b16 %v1572
    %v3554 = vunpack.c.h.b16 %v1572
    %v3555 = vunpack.c.l.b16 %v1573
    %v3556 = vunpack.c.h.b16 %v1573
    %v3557 = vunpack.c.l.b16 %v1574
    %v3558 = vunpack.c.h.b16 %v1574
    %v3559 = vunpack.c.l.b16 %v1575
    %v3560 = vunpack.c.h.b16 %v1575
    %v3561 = vunpack.c.l.b16 %v1576
    %v3562 = vunpack.c.h.b16 %v1576
    %v3563 = vunpack.c.l.b16 %v1577
    %v3564 = vunpack.c.h.b16 %v1577
    %v3565 = vunpack.c.l.b16 %v1578
    %v3566 = vunpack.c.l.b16 %v1579
    %v3567 = vunpack.c.h.b16 %v1579
    %v3568 = vunpack.c.l.b16 %v1580
    %v3569 = vunpack.c.h.b16 %v1580
    %v3570 = vunpack.c.l.b16 %v1581
    %v3571 = vunpack.c.h.b16 %v1581
    %v3572 = vunpack.c.l.b16 %v1582
    %v3573 = vunpack.c.h.b16 %v1582
    %v3574 = vunpack.c.l.b16 %v1583
    %v3575 = vunpack.c.h.b16 %v1583
    %v3576 = vunpack.c.l.b16 %v1584
    %v3577 = vunpack.c.h.b16 %v1584
    %v3578 = vunpack.c.l.b16 %v1585
    %v3579 = vunpack.c.l.b16 %v1586
    %v3580 = vunpack.c.h.b16 %v1586
    %v3581 = vunpack.c.l.b16 %v1587
    %v3582 = vunpack.c.h.b16 %v1587
    %v3583 = vunpack.c.l.b16 %v1588
    %v3584 = vunpack.c.h.b16 %v1588
    %v3585 = vunpack.c.l.b16 %v1589
    %v3586 = vunpack.c.h.b16 %v1589
    %v3587 = vunpack.c.l.b16 %v1590
    %v3588 = vunpack.c.h.b16 %v1590
    %v3589 = vunpack.c.l.b16 %v1591
    %v3590 = vunpack.c.h.b16 %v1591
    %v3591 = vunpack.c.l.b16 %v1592
    %v3592 = vunpack.c.l.b16 %v1593
    %v3593 = vunpack.c.h.b16 %v1593
    %v3594 = vunpack.c.l.b16 %v1594
    %v3595 = vunpack.c.h.b16 %v1594
    %v3596 = vunpack.c.l.b16 %v1595
    %v3597 = vunpack.c.h.b16 %v1595
    %v3598 = vunpack.c.l.b16 %v1596
    %v3599 = vunpack.c.h.b16 %v1596
    %v3600 = vunpack.c.l.b16 %v1597
    %v3601 = vunpack.c.h.b16 %v1597
    %v3602 = vunpack.c.l.b16 %v1598
    %v3603 = vunpack.c.h.b16 %v1598
    %v3604 = vunpack.c.l.b16 %v1599
    %v3605 = vunpack.c.l.b16 %v1600
    %v3606 = vunpack.c.h.b16 %v1600
    %v3607 = vunpack.c.l.b16 %v1601
    %v3608 = vunpack.c.h.b16 %v1601
    %v3609 = vunpack.c.l.b16 %v1602
    %v3610 = vunpack.c.h.b16 %v1602
    %v3611 = vunpack.c.l.b16 %v1603
    %v3612 = vunpack.c.h.b16 %v1603
    %v3613 = vunpack.c.l.b16 %v1604
    %v3614 = vunpack.c.h.b16 %v1604
    %v3615 = vunpack.c.l.b16 %v1605
    %v3616 = vunpack.c.h.b16 %v1605
    %v3617 = vunpack.c.l.b16 %v1606
    %v3618 = vunpack.c.l.b16 %v1607
    %v3619 = vunpack.c.h.b16 %v1607
    %v3620 = vunpack.c.l.b16 %v1608
    %v3621 = vunpack.c.h.b16 %v1608
    %v3622 = vunpack.c.l.b16 %v1609
    %v3623 = vunpack.c.h.b16 %v1609
    %v3624 = vunpack.c.l.b16 %v1610
    %v3625 = vunpack.c.h.b16 %v1610
    %v3626 = vunpack.c.l.b16 %v1611
    %v3627 = vunpack.c.h.b16 %v1611
    %v3628 = vunpack.c.l.b16 %v1612
    %v3629 = vunpack.c.h.b16 %v1612
    %v3630 = vunpack.c.l.b16 %v1613
    %v3631 = vunpack.c.l.b16 %v1614
    %v3632 = vunpack.c.h.b16 %v1614
    %v3633 = vunpack.c.l.b16 %v1615
    %v3634 = vunpack.c.h.b16 %v1615
    %v3635 = vunpack.c.l.b16 %v1616
    %v3636 = vunpack.c.h.b16 %v1616
    %v3637 = vunpack.c.l.b16 %v1617
    %v3638 = vunpack.c.h.b16 %v1617
    %v3639 = vunpack.c.l.b16 %v1618
    %v3640 = vunpack.c.h.b16 %v1618
    %v3641 = vunpack.c.l.b16 %v1619
    %v3642 = vunpack.c.h.b16 %v1619
    %v3643 = vunpack.c.l.b16 %v1620
    %v3644 = vunpack.c.l.b16 %v1621
    %v3645 = vunpack.c.h.b16 %v1621
    %v3646 = vunpack.c.l.b16 %v1622
    %v3647 = vunpack.c.h.b16 %v1622
    %v3648 = vunpack.c.l.b16 %v1623
    %v3649 = vunpack.c.h.b16 %v1623
    %v3650 = vunpack.c.l.b16 %v1624
    %v3651 = vunpack.c.h.b16 %v1624
    %v3652 = vunpack.c.l.b16 %v1625
    %v3653 = vunpack.c.h.b16 %v1625
    %v3654 = vunpack.c.l.b16 %v1626
    %v3655 = vunpack.c.h.b16 %v1626
    %v3656 = vunpack.c.l.b16 %v1627
    %v3657 = vpack.c.b16 %v2396, %v2383
    %v3658 = vpack.c.b16 %v2397, %v2384
    %v3659 = vpack.c.b16 %v2398, %v2385
    %v3660 = vpack.c.b16 %v2399, %v2386
    %v3661 = vpack.c.b16 %v2400, %v2387
    %v3662 = vpack.c.b16 %v2401, %v2388
    %v3663 = vpack.c.b16 %v2402, %v2389
    %v3664 = vpack.c.b16 %v2403, %v2390
    %v3665 = vpack.c.b16 %v2404, %v2391
    %v3666 = vpack.c.b16 %v2405, %v2392
    %v3667 = vpack.c.b16 %v2406, %v2393
    %v3668 = vpack.c.b16 %v2407, %v2394
    %v3669 = vpack.c.b16 %v2408, %v2395
    %v3670 = vpack.c.b16 %v2422, %v2409
    %v3671 = vpack.c.b16 %v2423, %v2410
    %v3672 = vpack.c.b16 %v2424, %v2411
    %v3673 = vpack.c.b16 %v2425, %v2412
    %v3674 = vpack.c.b16 %v2426, %v2413
    %v3675 = vpack.c.b16 %v2427, %v2414
    %v3676 = vpack.c.b16 %v2428, %v2415
    %v3677 = vpack.c.b16 %v2429, %v2416
    %v3678 = vpack.c.b16 %v2430, %v2417
    %v3679 = vpack.c.b16 %v2431, %v2418
    %v3680 = vpack.c.b16 %v2432, %v2419
    %v3681 = vpack.c.b16 %v2433, %v2420
    %v3682 = vpack.c.b16 %v2434, %v2421
    %v3683 = vpack.c.b16 %v2448, %v2435
    %v3684 = vpack.c.b16 %v2449, %v2436
    %v3685 = vpack.c.b16 %v2450, %v2437
    %v3686 = vpack.c.b16 %v2451, %v2438
    %v3687 = vpack.c.b16 %v2452, %v2439
    %v3688 = vpack.c.b16 %v2453, %v2440
    %v3689 = vpack.c.b16 %v2454, %v2441
    %v3690 = vpack.c.b16 %v2455, %v2442
    %v3691 = vpack.c.b16 %v2456, %v2443
    %v3692 = vpack.c.b16 %v2457, %v2444
    %v3693 = vpack.c.b16 %v2458, %v2445
    %v3694 = vpack.c.b16 %v2459, %v2446
    %v3695 = vpack.c.b16 %v2460, %v2447
    %v3696 = vpack.c.b16 %v2474, %v2461
    %v3697 = vpack.c.b16 %v2475, %v2462
    %v3698 = vpack.c.b16 %v2476, %v2463
    %v3699 = vpack.c.b16 %v2477, %v2464
    %v3700 = vpack.c.b16 %v2478, %v2465
    %v3701 = vpack.c.b16 %v2479, %v2466
    %v3702 = vpack.c.b16 %v2480, %v2467
    %v3703 = vpack.c.b16 %v2481, %v2468
    %v3704 = vpack.c.b16 %v2482, %v2469
    %v3705 = vpack.c.b16 %v2483, %v2470
    %v3706 = vpack.c.b16 %v2484, %v2471
    %v3707 = vpack.c.b16 %v2485, %v2472
    %v3708 = vpack.c.b16 %v2486, %v2473
    %v3709 = vpack.c.b16 %v2500, %v2487
    %v3710 = vpack.c.b16 %v2501, %v2488
    %v3711 = vpack.c.b16 %v2502, %v2489
    %v3712 = vpack.c.b16 %v2503, %v2490
    %v3713 = vpack.c.b16 %v2504, %v2491
    %v3714 = vpack.c.b16 %v2505, %v2492
    %v3715 = vpack.c.b16 %v2506, %v2493
    %v3716 = vpack.c.b16 %v2507, %v2494
    %v3717 = vpack.c.b16 %v2508, %v2495
    %v3718 = vpack.c.b16 %v2509, %v2496
    %v3719 = vpack.c.b16 %v2510, %v2497
    %v3720 = vpack.c.b16 %v2511, %v2498
    %v3721 = vpack.c.b16 %v2512, %v2499
    %v3722 = vpack.c.b16 %v2526, %v2513
    %v3723 = vpack.c.b16 %v2527, %v2514
    %v3724 = vpack.c.b16 %v2528, %v2515
    %v3725 = vpack.c.b16 %v2529, %v2516
    %v3726 = vpack.c.b16 %v2530, %v2517
    %v3727 = vpack.c.b16 %v2531, %v2518
    %v3728 = vpack.c.b16 %v2532, %v2519
    %v3729 = vpack.c.b16 %v2533, %v2520
    %v3730 = vpack.c.b16 %v2534, %v2521
    %v3731 = vpack.c.b16 %v2535, %v2522
    %v3732 = vpack.c.b16 %v2536, %v2523
    %v3733 = vpack.c.b16 %v2537, %v2524
    %v3734 = vpack.c.b16 %v2538, %v2525
    %v3735 = vpack.c.b16 %v2552, %v2539
    %v3736 = vpack.c.b16 %v2553, %v2540
    %v3737 = vpack.c.b16 %v2554, %v2541
    %v3738 = vpack.c.b16 %v2555, %v2542
    %v3739 = vpack.c.b16 %v2556, %v2543
    %v3740 = vpack.c.b16 %v2557, %v2544
    %v3741 = vpack.c.b16 %v2558, %v2545
    %v3742 = vpack.c.b16 %v2559, %v2546
    %v3743 = vpack.c.b16 %v2560, %v2547
    %v3744 = vpack.c.b16 %v2561, %v2548
    %v3745 = vpack.c.b16 %v2562, %v2549
    %v3746 = vpack.c.b16 %v2563, %v2550
    %v3747 = vpack.c.b16 %v2564, %v2551
    %v3748 = vpack.c.b16 %v2578, %v2565
    %v3749 = vpack.c.b16 %v2579, %v2566
    %v3750 = vpack.c.b16 %v2580, %v2567
    %v3751 = vpack.c.b16 %v2581, %v2568
    %v3752 = vpack.c.b16 %v2582, %v2569
    %v3753 = vpack.c.b16 %v2583, %v2570
    %v3754 = vpack.c.b16 %v2584, %v2571
    %v3755 = vpack.c.b16 %v2585, %v2572
    %v3756 = vpack.c.b16 %v2586, %v2573
    %v3757 = vpack.c.b16 %v2587, %v2574
    %v3758 = vpack.c.b16 %v2588, %v2575
    %v3759 = vpack.c.b16 %v2589, %v2576
    %v3760 = vpack.c.b16 %v2590, %v2577
    %v3761 = vpack.c.b16 %v2604, %v2591
    %v3762 = vpack.c.b16 %v2605, %v2592
    %v3763 = vpack.c.b16 %v2606, %v2593
    %v3764 = vpack.c.b16 %v2607, %v2594
    %v3765 = vpack.c.b16 %v2608, %v2595
    %v3766 = vpack.c.b16 %v2609, %v2596
    %v3767 = vpack.c.b16 %v2610, %v2597
    %v3768 = vpack.c.b16 %v2611, %v2598
    %v3769 = vpack.c.b16 %v2612, %v2599
    %v3770 = vpack.c.b16 %v2613, %v2600
    %v3771 = vpack.c.b16 %v2614, %v2601
    %v3772 = vpack.c.b16 %v2615, %v2602
    %v3773 = vpack.c.b16 %v2616, %v2603
    %v3774 = vpack.c.b16 %v2630, %v2617
    %v3775 = vpack.c.b16 %v2631, %v2618
    %v3776 = vpack.c.b16 %v2632, %v2619
    %v3777 = vpack.c.b16 %v2633, %v2620
    %v3778 = vpack.c.b16 %v2634, %v2621
    %v3779 = vpack.c.b16 %v2635, %v2622
    %v3780 = vpack.c.b16 %v2636, %v2623
    %v3781 = vpack.c.b16 %v2637, %v2624
    %v3782 = vpack.c.b16 %v2638, %v2625
    %v3783 = vpack.c.b16 %v2639, %v2626
    %v3784 = vpack.c.b16 %v2640, %v2627
    %v3785 = vpack.c.b16 %v2641, %v2628
    %v3786 = vpack.c.b16 %v2642, %v2629
    %v3787 = vpack.c.b16 %v2656, %v2643
    %v3788 = vpack.c.b16 %v2657, %v2644
    %v3789 = vpack.c.b16 %v2658, %v2645
    %v3790 = vpack.c.b16 %v2659, %v2646
    %v3791 = vpack.c.b16 %v2660, %v2647
    %v3792 = vpack.c.b16 %v2661, %v2648
    %v3793 = vpack.c.b16 %v2662, %v2649
    %v3794 = vpack.c.b16 %v2663, %v2650
    %v3795 = vpack.c.b16 %v2664, %v2651
    %v3796 = vpack.c.b16 %v2665, %v2652
    %v3797 = vpack.c.b16 %v2666, %v2653
    %v3798 = vpack.c.b16 %v2667, %v2654
    %v3799 = vpack.c.b16 %v2668, %v2655
    %v3800 = vpack.c.b16 %v2682, %v2669
    %v3801 = vpack.c.b16 %v2683, %v2670
    %v3802 = vpack.c.b16 %v2684, %v2671
    %v3803 = vpack.c.b16 %v2685, %v2672
    %v3804 = vpack.c.b16 %v2686, %v2673
    %v3805 = vpack.c.b16 %v2687, %v2674
    %v3806 = vpack.c.b16 %v2688, %v2675
    %v3807 = vpack.c.b16 %v2689, %v2676
    %v3808 = vpack.c.b16 %v2690, %v2677
    %v3809 = vpack.c.b16 %v2691, %v2678
    %v3810 = vpack.c.b16 %v2692, %v2679
    %v3811 = vpack.c.b16 %v2693, %v2680
    %v3812 = vpack.c.b16 %v2694, %v2681
    %v3813 = vpack.c.b16 %v2708, %v2695
    %v3814 = vpack.c.b16 %v2709, %v2696
    %v3815 = vpack.c.b16 %v2710, %v2697
    %v3816 = vpack.c.b16 %v2711, %v2698
    %v3817 = vpack.c.b16 %v2712, %v2699
    %v3818 = vpack.c.b16 %v2713, %v2700
    %v3819 = vpack.c.b16 %v2714, %v2701
    %v3820 = vpack.c.b16 %v2715, %v2702
    %v3821 = vpack.c.b16 %v2716, %v2703
    %v3822 = vpack.c.b16 %v2717, %v2704
    %v3823 = vpack.c.b16 %v2718, %v2705
    %v3824 = vpack.c.b16 %v2719, %v2706
    %v3825 = vpack.c.b16 %v2720, %v2707
    %v3826 = vpack.c.b16 %v2734, %v2721
    %v3827 = vpack.c.b16 %v2735, %v2722
    %v3828 = vpack.c.b16 %v2736, %v2723
    %v3829 = vpack.c.b16 %v2737, %v2724
    %v3830 = vpack.c.b16 %v2738, %v2725
    %v3831 = vpack.c.b16 %v2739, %v2726
    %v3832 = vpack.c.b16 %v2740, %v2727
    %v3833 = vpack.c.b16 %v2741, %v2728
    %v3834 = vpack.c.b16 %v2742, %v2729
    %v3835 = vpack.c.b16 %v2743, %v2730
    %v3836 = vpack.c.b16 %v2744, %v2731
    %v3837 = vpack.c.b16 %v2745, %v2732
    %v3838 = vpack.c.b16 %v2746, %v2733
    %v3839 = vpack.c.b16 %v2760, %v2747
    %v3840 = vpack.c.b16 %v2761, %v2748
    %v3841 = vpack.c.b16 %v2762, %v2749
    %v3842 = vpack.c.b16 %v2763, %v2750
    %v3843 = vpack.c.b16 %v2764, %v2751
    %v3844 = vpack.c.b16 %v2765, %v2752
    %v3845 = vpack.c.b16 %v2766, %v2753
    %v3846 = vpack.c.b16 %v2767, %v2754
    %v3847 = vpack.c.b16 %v2768, %v2755
    %v3848 = vpack.c.b16 %v2769, %v2756
    %v3849 = vpack.c.b16 %v2770, %v2757
    %v3850 = vpack.c.b16 %v2771, %v2758
    %v3851 = vpack.c.b16 %v2772, %v2759
    %v3852 = vpack.c.b16 %v2786, %v2773
    %v3853 = vpack.c.b16 %v2787, %v2774
    %v3854 = vpack.c.b16 %v2788, %v2775
    %v3855 = vpack.c.b16 %v2789, %v2776
    %v3856 = vpack.c.b16 %v2790, %v2777
    %v3857 = vpack.c.b16 %v2791, %v2778
    %v3858 = vpack.c.b16 %v2792, %v2779
    %v3859 = vpack.c.b16 %v2793, %v2780
    %v3860 = vpack.c.b16 %v2794, %v2781
    %v3861 = vpack.c.b16 %v2795, %v2782
    %v3862 = vpack.c.b16 %v2796, %v2783
    %v3863 = vpack.c.b16 %v2797, %v2784
    %v3864 = vpack.c.b16 %v2798, %v2785
    %v3865 = vpack.c.b16 %v2812, %v2799
    %v3866 = vpack.c.b16 %v2813, %v2800
    %v3867 = vpack.c.b16 %v2814, %v2801
    %v3868 = vpack.c.b16 %v2815, %v2802
    %v3869 = vpack.c.b16 %v2816, %v2803
    %v3870 = vpack.c.b16 %v2817, %v2804
    %v3871 = vpack.c.b16 %v2818, %v2805
    %v3872 = vpack.c.b16 %v2819, %v2806
    %v3873 = vpack.c.b16 %v2820, %v2807
    %v3874 = vpack.c.b16 %v2821, %v2808
    %v3875 = vpack.c.b16 %v2822, %v2809
    %v3876 = vpack.c.b16 %v2823, %v2810
    %v3877 = vpack.c.b16 %v2824, %v2811
    %v3878 = vpack.c.b16 %v2838, %v2825
    %v3879 = vpack.c.b16 %v2839, %v2826
    %v3880 = vpack.c.b16 %v2840, %v2827
    %v3881 = vpack.c.b16 %v2841, %v2828
    %v3882 = vpack.c.b16 %v2842, %v2829
    %v3883 = vpack.c.b16 %v2843, %v2830
    %v3884 = vpack.c.b16 %v2844, %v2831
    %v3885 = vpack.c.b16 %v2845, %v2832
    %v3886 = vpack.c.b16 %v2846, %v2833
    %v3887 = vpack.c.b16 %v2847, %v2834
    %v3888 = vpack.c.b16 %v2848, %v2835
    %v3889 = vpack.c.b16 %v2849, %v2836
    %v3890 = vpack.c.b16 %v2850, %v2837
    %v3891 = vpack.c.b16 %v2864, %v2851
    %v3892 = vpack.c.b16 %v2865, %v2852
    %v3893 = vpack.c.b16 %v2866, %v2853
    %v3894 = vpack.c.b16 %v2867, %v2854
    %v3895 = vpack.c.b16 %v2868, %v2855
    %v3896 = vpack.c.b16 %v2869, %v2856
    %v3897 = vpack.c.b16 %v2870, %v2857
    %v3898 = vpack.c.b16 %v2871, %v2858
    %v3899 = vpack.c.b16 %v2872, %v2859
    %v3900 = vpack.c.b16 %v2873, %v2860
    %v3901 = vpack.c.b16 %v2874, %v2861
    %v3902 = vpack.c.b16 %v2875, %v2862
    %v3903 = vpack.c.b16 %v2876, %v2863
    %v3904 = vpack.c.b16 %v2890, %v2877
    %v3905 = vpack.c.b16 %v2891, %v2878
    %v3906 = vpack.c.b16 %v2892, %v2879
    %v3907 = vpack.c.b16 %v2893, %v2880
    %v3908 = vpack.c.b16 %v2894, %v2881
    %v3909 = vpack.c.b16 %v2895, %v2882
    %v3910 = vpack.c.b16 %v2896, %v2883
    %v3911 = vpack.c.b16 %v2897, %v2884
    %v3912 = vpack.c.b16 %v2898, %v2885
    %v3913 = vpack.c.b16 %v2899, %v2886
    %v3914 = vpack.c.b16 %v2900, %v2887
    %v3915 = vpack.c.b16 %v2901, %v2888
    %v3916 = vpack.c.b16 %v2902, %v2889
    %v3917 = vpack.c.b16 %v2916, %v2903
    %v3918 = vpack.c.b16 %v2917, %v2904
    %v3919 = vpack.c.b16 %v2918, %v2905
    %v3920 = vpack.c.b16 %v2919, %v2906
    %v3921 = vpack.c.b16 %v2920, %v2907
    %v3922 = vpack.c.b16 %v2921, %v2908
    %v3923 = vpack.c.b16 %v2922, %v2909
    %v3924 = vpack.c.b16 %v2923, %v2910
    %v3925 = vpack.c.b16 %v2924, %v2911
    %v3926 = vpack.c.b16 %v2925, %v2912
    %v3927 = vpack.c.b16 %v2926, %v2913
    %v3928 = vpack.c.b16 %v2927, %v2914
    %v3929 = vpack.c.b16 %v2928, %v2915
    %v3930 = vpack.c.b16 %v2942, %v2929
    %v3931 = vpack.c.b16 %v2943, %v2930
    %v3932 = vpack.c.b16 %v2944, %v2931
    %v3933 = vpack.c.b16 %v2945, %v2932
    %v3934 = vpack.c.b16 %v2946, %v2933
    %v3935 = vpack.c.b16 %v2947, %v2934
    %v3936 = vpack.c.b16 %v2948, %v2935
    %v3937 = vpack.c.b16 %v2949, %v2936
    %v3938 = vpack.c.b16 %v2950, %v2937
    %v3939 = vpack.c.b16 %v2951, %v2938
    %v3940 = vpack.c.b16 %v2952, %v2939
    %v3941 = vpack.c.b16 %v2953, %v2940
    %v3942 = vpack.c.b16 %v2954, %v2941
    %v3943 = vpack.c.b16 %v2968, %v2955
    %v3944 = vpack.c.b16 %v2969, %v2956
    %v3945 = vpack.c.b16 %v2970, %v2957
    %v3946 = vpack.c.b16 %v2971, %v2958
    %v3947 = vpack.c.b16 %v2972, %v2959
    %v3948 = vpack.c.b16 %v2973, %v2960
    %v3949 = vpack.c.b16 %v2974, %v2961
    %v3950 = vpack.c.b16 %v2975, %v2962
    %v3951 = vpack.c.b16 %v2976, %v2963
    %v3952 = vpack.c.b16 %v2977, %v2964
    %v3953 = vpack.c.b16 %v2978, %v2965
    %v3954 = vpack.c.b16 %v2979, %v2966
    %v3955 = vpack.c.b16 %v2980, %v2967
    %v3956 = vpack.c.b16 %v2994, %v2981
    %v3957 = vpack.c.b16 %v2995, %v2982
    %v3958 = vpack.c.b16 %v2996, %v2983
    %v3959 = vpack.c.b16 %v2997, %v2984
    %v3960 = vpack.c.b16 %v2998, %v2985
    %v3961 = vpack.c.b16 %v2999, %v2986
    %v3962 = vpack.c.b16 %v3000, %v2987
    %v3963 = vpack.c.b16 %v3001, %v2988
    %v3964 = vpack.c.b16 %v3002, %v2989
    %v3965 = vpack.c.b16 %v3003, %v2990
    %v3966 = vpack.c.b16 %v3004, %v2991
    %v3967 = vpack.c.b16 %v3005, %v2992
    %v3968 = vpack.c.b16 %v3006, %v2993
    %v3969 = vpack.c.b16 %v3020, %v3007
    %v3970 = vpack.c.b16 %v3021, %v3008
    %v3971 = vpack.c.b16 %v3022, %v3009
    %v3972 = vpack.c.b16 %v3023, %v3010
    %v3973 = vpack.c.b16 %v3024, %v3011
    %v3974 = vpack.c.b16 %v3025, %v3012
    %v3975 = vpack.c.b16 %v3026, %v3013
    %v3976 = vpack.c.b16 %v3027, %v3014
    %v3977 = vpack.c.b16 %v3028, %v3015
    %v3978 = vpack.c.b16 %v3029, %v3016
    %v3979 = vpack.c.b16 %v3030, %v3017
    %v3980 = vpack.c.b16 %v3031, %v3018
    %v3981 = vpack.c.b16 %v3032, %v3019
    %v3982 = vpack.c.b16 %v3046, %v3033
    %v3983 = vpack.c.b16 %v3047, %v3034
    %v3984 = vpack.c.b16 %v3048, %v3035
    %v3985 = vpack.c.b16 %v3049, %v3036
    %v3986 = vpack.c.b16 %v3050, %v3037
    %v3987 = vpack.c.b16 %v3051, %v3038
    %v3988 = vpack.c.b16 %v3052, %v3039
    %v3989 = vpack.c.b16 %v3053, %v3040
    %v3990 = vpack.c.b16 %v3054, %v3041
    %v3991 = vpack.c.b16 %v3055, %v3042
    %v3992 = vpack.c.b16 %v3056, %v3043
    %v3993 = vpack.c.b16 %v3057, %v3044
    %v3994 = vpack.c.b16 %v3058, %v3045
    %v3995 = vpack.c.b16 %v3072, %v3059
    %v3996 = vpack.c.b16 %v3073, %v3060
    %v3997 = vpack.c.b16 %v3074, %v3061
    %v3998 = vpack.c.b16 %v3075, %v3062
    %v3999 = vpack.c.b16 %v3076, %v3063
    %v4000 = vpack.c.b16 %v3077, %v3064
    %v4001 = vpack.c.b16 %v3078, %v3065
    %v4002 = vpack.c.b16 %v3079, %v3066
    %v4003 = vpack.c.b16 %v3080, %v3067
    %v4004 = vpack.c.b16 %v3081, %v3068
    %v4005 = vpack.c.b16 %v3082, %v3069
    %v4006 = vpack.c.b16 %v3083, %v3070
    %v4007 = vpack.c.b16 %v3084, %v3071
    %v4008 = vpack.c.b16 %v3098, %v3085
    %v4009 = vpack.c.b16 %v3099, %v3086
    %v4010 = vpack.c.b16 %v3100, %v3087
    %v4011 = vpack.c.b16 %v3101, %v3088
    %v4012 = vpack.c.b16 %v3102, %v3089
    %v4013 = vpack.c.b16 %v3103, %v3090
    %v4014 = vpack.c.b16 %v3104, %v3091
    %v4015 = vpack.c.b16 %v3105, %v3092
    %v4016 = vpack.c.b16 %v3106, %v3093
    %v4017 = vpack.c.b16 %v3107, %v3094
    %v4018 = vpack.c.b16 %v3108, %v3095
    %v4019 = vpack.c.b16 %v3109, %v3096
    %v4020 = vpack.c.b16 %v3110, %v3097
    %v4021 = vpack.c.b16 %v3124, %v3111
    %v4022 = vpack.c.b16 %v3125, %v3112
    %v4023 = vpack.c.b16 %v3126, %v3113
    %v4024 = vpack.c.b16 %v3127, %v3114
    %v4025 = vpack.c.b16 %v3128, %v3115
    %v4026 = vpack.c.b16 %v3129, %v3116
    %v4027 = vpack.c.b16 %v3130, %v3117
    %v4028 = vpack.c.b16 %v3131, %v3118
    %v4029 = vpack.c.b16 %v3132, %v3119
    %v4030 = vpack.c.b16 %v3133, %v3120
    %v4031 = vpack.c.b16 %v3134, %v3121
    %v4032 = vpack.c.b16 %v3135, %v3122
    %v4033 = vpack.c.b16 %v3136, %v3123
    %v4034 = vpack.c.b16 %v3150, %v3137
    %v4035 = vpack.c.b16 %v3151, %v3138
    %v4036 = vpack.c.b16 %v3152, %v3139
    %v4037 = vpack.c.b16 %v3153, %v3140
    %v4038 = vpack.c.b16 %v3154, %v3141
    %v4039 = vpack.c.b16 %v3155, %v3142
    %v4040 = vpack.c.b16 %v3156, %v3143
    %v4041 = vpack.c.b16 %v3157, %v3144
    %v4042 = vpack.c.b16 %v3158, %v3145
    %v4043 = vpack.c.b16 %v3159, %v3146
    %v4044 = vpack.c.b16 %v3160, %v3147
    %v4045 = vpack.c.b16 %v3161, %v3148
    %v4046 = vpack.c.b16 %v3162, %v3149
    %v4047 = vpack.c.b16 %v3176, %v3163
    %v4048 = vpack.c.b16 %v3177, %v3164
    %v4049 = vpack.c.b16 %v3178, %v3165
    %v4050 = vpack.c.b16 %v3179, %v3166
    %v4051 = vpack.c.b16 %v3180, %v3167
    %v4052 = vpack.c.b16 %v3181, %v3168
    %v4053 = vpack.c.b16 %v3182, %v3169
    %v4054 = vpack.c.b16 %v3183, %v3170
    %v4055 = vpack.c.b16 %v3184, %v3171
    %v4056 = vpack.c.b16 %v3185, %v3172
    %v4057 = vpack.c.b16 %v3186, %v3173
    %v4058 = vpack.c.b16 %v3187, %v3174
    %v4059 = vpack.c.b16 %v3188, %v3175
    %v4060 = vpack.c.b16 %v3202, %v3189
    %v4061 = vpack.c.b16 %v3203, %v3190
    %v4062 = vpack.c.b16 %v3204, %v3191
    %v4063 = vpack.c.b16 %v3205, %v3192
    %v4064 = vpack.c.b16 %v3206, %v3193
    %v4065 = vpack.c.b16 %v3207, %v3194
    %v4066 = vpack.c.b16 %v3208, %v3195
    %v4067 = vpack.c.b16 %v3209, %v3196
    %v4068 = vpack.c.b16 %v3210, %v3197
    %v4069 = vpack.c.b16 %v3211, %v3198
    %v4070 = vpack.c.b16 %v3212, %v3199
    %v4071 = vpack.c.b16 %v3213, %v3200
    %v4072 = vpack.c.b16 %v3214, %v3201
    %v4073 = vpack.c.b16 %v3228, %v3215
    %v4074 = vpack.c.b16 %v3229, %v3216
    %v4075 = vpack.c.b16 %v3230, %v3217
    %v4076 = vpack.c.b16 %v3231, %v3218
    %v4077 = vpack.c.b16 %v3232, %v3219
    %v4078 = vpack.c.b16 %v3233, %v3220
    %v4079 = vpack.c.b16 %v3234, %v3221
    %v4080 = vpack.c.b16 %v3235, %v3222
    %v4081 = vpack.c.b16 %v3236, %v3223
    %v4082 = vpack.c.b16 %v3237, %v3224
    %v4083 = vpack.c.b16 %v3238, %v3225
    %v4084 = vpack.c.b16 %v3239, %v3226
    %v4085 = vpack.c.b16 %v3240, %v3227
    %v4086 = vpack.c.b16 %v3254, %v3241
    %v4087 = vpack.c.b16 %v3255, %v3242
    %v4088 = vpack.c.b16 %v3256, %v3243
    %v4089 = vpack.c.b16 %v3257, %v3244
    %v4090 = vpack.c.b16 %v3258, %v3245
    %v4091 = vpack.c.b16 %v3259, %v3246
    %v4092 = vpack.c.b16 %v3260, %v3247
    %v4093 = vpack.c.b16 %v3261, %v3248
    %v4094 = vpack.c.b16 %v3262, %v3249
    %v4095 = vpack.c.b16 %v3263, %v3250
    %v4096 = vpack.c.b16 %v3264, %v3251
    %v4097 = vpack.c.b16 %v3265, %v3252
    %v4098 = vpack.c.b16 %v3266, %v3253
    %v4099 = vpack.c.b16 %v3280, %v3267
    %v4100 = vpack.c.b16 %v3281, %v3268
    %v4101 = vpack.c.b16 %v3282, %v3269
    %v4102 = vpack.c.b16 %v3283, %v3270
    %v4103 = vpack.c.b16 %v3284, %v3271
    %v4104 = vpack.c.b16 %v3285, %v3272
    %v4105 = vpack.c.b16 %v3286, %v3273
    %v4106 = vpack.c.b16 %v3287, %v3274
    %v4107 = vpack.c.b16 %v3288, %v3275
    %v4108 = vpack.c.b16 %v3289, %v3276
    %v4109 = vpack.c.b16 %v3290, %v3277
    %v4110 = vpack.c.b16 %v3291, %v3278
    %v4111 = vpack.c.b16 %v3292, %v3279
    %v4112 = vpack.c.b16 %v3306, %v3293
    %v4113 = vpack.c.b16 %v3307, %v3294
    %v4114 = vpack.c.b16 %v3308, %v3295
    %v4115 = vpack.c.b16 %v3309, %v3296
    %v4116 = vpack.c.b16 %v3310, %v3297
    %v4117 = vpack.c.b16 %v3311, %v3298
    %v4118 = vpack.c.b16 %v3312, %v3299
    %v4119 = vpack.c.b16 %v3313, %v3300
    %v4120 = vpack.c.b16 %v3314, %v3301
    %v4121 = vpack.c.b16 %v3315, %v3302
    %v4122 = vpack.c.b16 %v3316, %v3303
    %v4123 = vpack.c.b16 %v3317, %v3304
    %v4124 = vpack.c.b16 %v3318, %v3305
    %v4125 = vpack.c.b16 %v3332, %v3319
    %v4126 = vpack.c.b16 %v3333, %v3320
    %v4127 = vpack.c.b16 %v3334, %v3321
    %v4128 = vpack.c.b16 %v3335, %v3322
    %v4129 = vpack.c.b16 %v3336, %v3323
    %v4130 = vpack.c.b16 %v3337, %v3324
    %v4131 = vpack.c.b16 %v3338, %v3325
    %v4132 = vpack.c.b16 %v3339, %v3326
    %v4133 = vpack.c.b16 %v3340, %v3327
    %v4134 = vpack.c.b16 %v3341, %v3328
    %v4135 = vpack.c.b16 %v3342, %v3329
    %v4136 = vpack.c.b16 %v3343, %v3330
    %v4137 = vpack.c.b16 %v3344, %v3331
    %v4138 = vpack.c.b16 %v3358, %v3345
    %v4139 = vpack.c.b16 %v3359, %v3346
    %v4140 = vpack.c.b16 %v3360, %v3347
    %v4141 = vpack.c.b16 %v3361, %v3348
    %v4142 = vpack.c.b16 %v3362, %v3349
    %v4143 = vpack.c.b16 %v3363, %v3350
    %v4144 = vpack.c.b16 %v3364, %v3351
    %v4145 = vpack.c.b16 %v3365, %v3352
    %v4146 = vpack.c.b16 %v3366, %v3353
    %v4147 = vpack.c.b16 %v3367, %v3354
    %v4148 = vpack.c.b16 %v3368, %v3355
    %v4149 = vpack.c.b16 %v3369, %v3356
    %v4150 = vpack.c.b16 %v3370, %v3357
    %v4151 = vpack.c.b16 %v3384, %v3371
    %v4152 = vpack.c.b16 %v3385, %v3372
    %v4153 = vpack.c.b16 %v3386, %v3373
    %v4154 = vpack.c.b16 %v3387, %v3374
    %v4155 = vpack.c.b16 %v3388, %v3375
    %v4156 = vpack.c.b16 %v3389, %v3376
    %v4157 = vpack.c.b16 %v3390, %v3377
    %v4158 = vpack.c.b16 %v3391, %v3378
    %v4159 = vpack.c.b16 %v3392, %v3379
    %v4160 = vpack.c.b16 %v3393, %v3380
    %v4161 = vpack.c.b16 %v3394, %v3381
    %v4162 = vpack.c.b16 %v3395, %v3382
    %v4163 = vpack.c.b16 %v3396, %v3383
    %v4164 = vpack.c.b16 %v3410, %v3397
    %v4165 = vpack.c.b16 %v3411, %v3398
    %v4166 = vpack.c.b16 %v3412, %v3399
    %v4167 = vpack.c.b16 %v3413, %v3400
    %v4168 = vpack.c.b16 %v3414, %v3401
    %v4169 = vpack.c.b16 %v3415, %v3402
    %v4170 = vpack.c.b16 %v3416, %v3403
    %v4171 = vpack.c.b16 %v3417, %v3404
    %v4172 = vpack.c.b16 %v3418, %v3405
    %v4173 = vpack.c.b16 %v3419, %v3406
    %v4174 = vpack.c.b16 %v3420, %v3407
    %v4175 = vpack.c.b16 %v3421, %v3408
    %v4176 = vpack.c.b16 %v3422, %v3409
    %v4177 = vpack.c.b16 %v3436, %v3423
    %v4178 = vpack.c.b16 %v3437, %v3424
    %v4179 = vpack.c.b16 %v3438, %v3425
    %v4180 = vpack.c.b16 %v3439, %v3426
    %v4181 = vpack.c.b16 %v3440, %v3427
    %v4182 = vpack.c.b16 %v3441, %v3428
    %v4183 = vpack.c.b16 %v3442, %v3429
    %v4184 = vpack.c.b16 %v3443, %v3430
    %v4185 = vpack.c.b16 %v3444, %v3431
    %v4186 = vpack.c.b16 %v3445, %v3432
    %v4187 = vpack.c.b16 %v3446, %v3433
    %v4188 = vpack.c.b16 %v3447, %v3434
    %v4189 = vpack.c.b16 %v3448, %v3435
    %v4190 = vpack.c.b16 %v3462, %v3449
    %v4191 = vpack.c.b16 %v3463, %v3450
    %v4192 = vpack.c.b16 %v3464, %v3451
    %v4193 = vpack.c.b16 %v3465, %v3452
    %v4194 = vpack.c.b16 %v3466, %v3453
    %v4195 = vpack.c.b16 %v3467, %v3454
    %v4196 = vpack.c.b16 %v3468, %v3455
    %v4197 = vpack.c.b16 %v3469, %v3456
    %v4198 = vpack.c.b16 %v3470, %v3457
    %v4199 = vpack.c.b16 %v3471, %v3458
    %v4200 = vpack.c.b16 %v3472, %v3459
    %v4201 = vpack.c.b16 %v3473, %v3460
    %v4202 = vpack.c.b16 %v3474, %v3461
    %v4203 = vpack.c.b16 %v3488, %v3475
    %v4204 = vpack.c.b16 %v3489, %v3476
    %v4205 = vpack.c.b16 %v3490, %v3477
    %v4206 = vpack.c.b16 %v3491, %v3478
    %v4207 = vpack.c.b16 %v3492, %v3479
    %v4208 = vpack.c.b16 %v3493, %v3480
    %v4209 = vpack.c.b16 %v3494, %v3481
    %v4210 = vpack.c.b16 %v3495, %v3482
    %v4211 = vpack.c.b16 %v3496, %v3483
    %v4212 = vpack.c.b16 %v3497, %v3484
    %v4213 = vpack.c.b16 %v3498, %v3485
    %v4214 = vpack.c.b16 %v3499, %v3486
    %v4215 = vpack.c.b16 %v3500, %v3487
    %v4216 = vpack.c.b16 %v3514, %v3501
    %v4217 = vpack.c.b16 %v3515, %v3502
    %v4218 = vpack.c.b16 %v3516, %v3503
    %v4219 = vpack.c.b16 %v3517, %v3504
    %v4220 = vpack.c.b16 %v3518, %v3505
    %v4221 = vpack.c.b16 %v3519, %v3506
    %v4222 = vpack.c.b16 %v3520, %v3507
    %v4223 = vpack.c.b16 %v3521, %v3508
    %v4224 = vpack.c.b16 %v3522, %v3509
    %v4225 = vpack.c.b16 %v3523, %v3510
    %v4226 = vpack.c.b16 %v3524, %v3511
    %v4227 = vpack.c.b16 %v3525, %v3512
    %v4228 = vpack.c.b16 %v3526, %v3513
    %v4229 = vpack.c.b16 %v3540, %v3527
    %v4230 = vpack.c.b16 %v3541, %v3528
    %v4231 = vpack.c.b16 %v3542, %v3529
    %v4232 = vpack.c.b16 %v3543, %v3530
    %v4233 = vpack.c.b16 %v3544, %v3531
    %v4234 = vpack.c.b16 %v3545, %v3532
    %v4235 = vpack.c.b16 %v3546, %v3533
    %v4236 = vpack.c.b16 %v3547, %v3534
    %v4237 = vpack.c.b16 %v3548, %v3535
    %v4238 = vpack.c.b16 %v3549, %v3536
    %v4239 = vpack.c.b16 %v3550, %v3537
    %v4240 = vpack.c.b16 %v3551, %v3538
    %v4241 = vpack.c.b16 %v3552, %v3539
    %v4242 = vpack.c.b16 %v3566, %v3553
    %v4243 = vpack.c.b16 %v3567, %v3554
    %v4244 = vpack.c.b16 %v3568, %v3555
    %v4245 = vpack.c.b16 %v3569, %v3556
    %v4246 = vpack.c.b16 %v3570, %v3557
    %v4247 = vpack.c.b16 %v3571, %v3558
    %v4248 = vpack.c.b16 %v3572, %v3559
    %v4249 = vpack.c.b16 %v3573, %v3560
    %v4250 = vpack.c.b16 %v3574, %v3561
    %v4251 = vpack.c.b16 %v3575, %v3562
    %v4252 = vpack.c.b16 %v3576, %v3563
    %v4253 = vpack.c.b16 %v3577, %v3564
    %v4254 = vpack.c.b16 %v3578, %v3565
    %v4255 = vpack.c.b16 %v3592, %v3579
    %v4256 = vpack.c.b16 %v3593, %v3580
    %v4257 = vpack.c.b16 %v3594, %v3581
    %v4258 = vpack.c.b16 %v3595, %v3582
    %v4259 = vpack.c.b16 %v3596, %v3583
    %v4260 = vpack.c.b16 %v3597, %v3584
    %v4261 = vpack.c.b16 %v3598, %v3585
    %v4262 = vpack.c.b16 %v3599, %v3586
    %v4263 = vpack.c.b16 %v3600, %v3587
    %v4264 = vpack.c.b16 %v3601, %v3588
    %v4265 = vpack.c.b16 %v3602, %v3589
    %v4266 = vpack.c.b16 %v3603, %v3590
    %v4267 = vpack.c.b16 %v3604, %v3591
    %v4268 = vpack.c.b16 %v3618, %v3605
    %v4269 = vpack.c.b16 %v3619, %v3606
    %v4270 = vpack.c.b16 %v3620, %v3607
    %v4271 = vpack.c.b16 %v3621, %v3608
    %v4272 = vpack.c.b16 %v3622, %v3609
    %v4273 = vpack.c.b16 %v3623, %v3610
    %v4274 = vpack.c.b16 %v3624, %v3611
    %v4275 = vpack.c.b16 %v3625, %v3612
    %v4276 = vpack.c.b16 %v3626, %v3613
    %v4277 = vpack.c.b16 %v3627, %v3614
    %v4278 = vpack.c.b16 %v3628, %v3615
    %v4279 = vpack.c.b16 %v3629, %v3616
    %v4280 = vpack.c.b16 %v3630, %v3617
    %v4281 = vpack.c.b16 %v3644, %v3631
    %v4282 = vpack.c.b16 %v3645, %v3632
    %v4283 = vpack.c.b16 %v3646, %v3633
    %v4284 = vpack.c.b16 %v3647, %v3634
    %v4285 = vpack.c.b16 %v3648, %v3635
    %v4286 = vpack.c.b16 %v3649, %v3636
    %v4287 = vpack.c.b16 %v3650, %v3637
    %v4288 = vpack.c.b16 %v3651, %v3638
    %v4289 = vpack.c.b16 %v3652, %v3639
    %v4290 = vpack.c.b16 %v3653, %v3640
    %v4291 = vpack.c.b16 %v3654, %v3641
    %v4292 = vpack.c.b16 %v3655, %v3642
    %v4293 = vpack.c.b16 %v3656, %v3643
    %vm4931 = vcmask 130048
    %v4933 = vsel %vm4931, %v941, 0
    %4935 = vmatprep.subr.bf16.mxu0 %v3658
    %4936 = vmatpush1.bf16.msra.mxu0 %v3657
    %4937 = vmatprep.subr.bf16.mxu0 %v3671
    %4938 = vmatpush1.bf16.msra.mxu0 %v3670
    %4939 = vmatprep.subr.bf16.mxu0 %v3684
    %4940 = vmatpush1.bf16.msra.mxu0 %v3683
    %4941 = vmatprep.subr.bf16.mxu0 %v3697
    %4942 = vmatpush1.bf16.msra.mxu0 %v3696
    %4943 = vmatprep.subr.bf16.mxu0 %v3710
    %4944 = vmatpush1.bf16.msra.mxu0 %v3709
    %4945 = vmatprep.subr.bf16.mxu0 %v3723
    %4946 = vmatpush1.bf16.msra.mxu0 %v3722
    %4947 = vmatprep.subr.bf16.mxu0 %v3736
    %4948 = vmatpush1.bf16.msra.mxu0 %v3735
    %4949 = vmatprep.subr.bf16.mxu0 %v3749
    %4950 = vmatpush1.bf16.msra.mxu0 %v3748
    %4951 = vmatprep.subr.bf16.mxu0 %v3762
    %4952 = vmatpush1.bf16.msra.mxu0 %v3761
    %4953 = vmatprep.subr.bf16.mxu0 %v3775
    %4954 = vmatpush1.bf16.msra.mxu0 %v3774
    %4955 = vmatprep.subr.bf16.mxu0 %v3788
    %4956 = vmatpush1.bf16.msra.mxu0 %v3787
    %4957 = vmatprep.subr.bf16.mxu0 %v3801
    %4958 = vmatpush1.bf16.msra.mxu0 %v3800
    %4959 = vmatprep.subr.bf16.mxu0 %v3814
    %4960 = vmatpush1.bf16.msra.mxu0 %v3813
    %4961 = vmatprep.subr.bf16.mxu0 %v3827
    %4962 = vmatpush1.bf16.msra.mxu0 %v3826
    %4963 = vmatprep.subr.bf16.mxu0 %v3840
    %4964 = vmatpush1.bf16.msra.mxu0 %v3839
    %4965 = vmatprep.subr.bf16.mxu0 %v3853
    %4966 = vmatpush1.bf16.msra.mxu0 %v3852
    %4967 = vmatprep.mubr.bf16.mxu0 %v936
    %4968 = vmatmul.mubr.bf16.gmra.mrb[0].mxu0 %v935
    %v4969 = vpop.f32.mrb[0].mxu0
    %v4970 = vadd.f32 %v1635, %v4969
    %v4971 = vpop.f32.mrb[0].mxu0
    %v4972 = vadd.f32 %v1639, %v4971
    %v4973 = vpop.f32.mrb[0].mxu0
    %v4974 = vpop.f32.mrb[0].mxu0
    %4975 = vdwg.mxu0
    %4976 = vmatprep.subr.bf16.mxu0 %v3866
    %4977 = vmatpush1.bf16.msra.mxu0 %v3865
    %4978 = vmatprep.subr.bf16.mxu0 %v3879
    %4979 = vmatpush1.bf16.msra.mxu0 %v3878
    %4980 = vmatprep.subr.bf16.mxu0 %v3892
    %4981 = vmatpush1.bf16.msra.mxu0 %v3891
    %4982 = vmatprep.subr.bf16.mxu0 %v3905
    %4983 = vmatpush1.bf16.msra.mxu0 %v3904
    %4984 = vmatprep.subr.bf16.mxu0 %v3918
    %4985 = vmatpush1.bf16.msra.mxu0 %v3917
    %4986 = vmatprep.subr.bf16.mxu0 %v3931
    %4987 = vmatpush1.bf16.msra.mxu0 %v3930
    %4988 = vmatprep.subr.bf16.mxu0 %v3944
    %4989 = vmatpush1.bf16.msra.mxu0 %v3943
    %4990 = vmatprep.subr.bf16.mxu0 %v3957
    %4991 = vmatpush1.bf16.msra.mxu0 %v3956
    %4992 = vmatprep.subr.bf16.mxu0 %v3970
    %4993 = vmatpush1.bf16.msra.mxu0 %v3969
    %4994 = vmatprep.subr.bf16.mxu0 %v3983
    %4995 = vmatpush1.bf16.msra.mxu0 %v3982
    %4996 = vmatprep.subr.bf16.mxu0 %v3996
    %4997 = vmatpush1.bf16.msra.mxu0 %v3995
    %4998 = vmatprep.subr.bf16.mxu0 %v4009
    %4999 = vmatpush1.bf16.msra.mxu0 %v4008
    %5000 = vmatprep.subr.bf16.mxu0 %v4022
    %5001 = vmatpush1.bf16.msra.mxu0 %v4021
    %5002 = vmatprep.subr.bf16.mxu0 %v4035
    %5003 = vmatpush1.bf16.msra.mxu0 %v4034
    %5004 = vmatprep.subr.bf16.mxu0 %v4048
    %5005 = vmatpush1.bf16.msra.mxu0 %v4047
    %5006 = vmatprep.subr.bf16.mxu0 %v4061
    %5007 = vmatpush1.bf16.msra.mxu0 %v4060
    %5008 = vmatprep.mubr.bf16.mxu0 %v938
    %5009 = vmatmul.mubr.bf16.gmra.mrb[0].mxu0 %v937
    %v5010 = vpop.f32.mrb[0].mxu0
    %v5011 = vadd.f32 %v4970, %v5010
    %v5012 = vpop.f32.mrb[0].mxu0
    %v5013 = vadd.f32 %v4972, %v5012
    %v5014 = vpop.f32.mrb[0].mxu0
    %v5015 = vpop.f32.mrb[0].mxu0
    %5016 = vdwg.mxu0
    %5017 = vmatprep.subr.bf16.mxu0 %v4074
    %5018 = vmatpush1.bf16.msra.mxu0 %v4073
    %5019 = vmatprep.subr.bf16.mxu0 %v4087
    %5020 = vmatpush1.bf16.msra.mxu0 %v4086
    %5021 = vmatprep.subr.bf16.mxu0 %v4100
    %5022 = vmatpush1.bf16.msra.mxu0 %v4099
    %5023 = vmatprep.subr.bf16.mxu0 %v4113
    %5024 = vmatpush1.bf16.msra.mxu0 %v4112
    %5025 = vmatprep.subr.bf16.mxu0 %v4126
    %5026 = vmatpush1.bf16.msra.mxu0 %v4125
    %5027 = vmatprep.subr.bf16.mxu0 %v4139
    %5028 = vmatpush1.bf16.msra.mxu0 %v4138
    %5029 = vmatprep.subr.bf16.mxu0 %v4152
    %5030 = vmatpush1.bf16.msra.mxu0 %v4151
    %5031 = vmatprep.subr.bf16.mxu0 %v4165
    %5032 = vmatpush1.bf16.msra.mxu0 %v4164
    %5033 = vmatprep.subr.bf16.mxu0 %v4178
    %5034 = vmatpush1.bf16.msra.mxu0 %v4177
    %5035 = vmatprep.subr.bf16.mxu0 %v4191
    %5036 = vmatpush1.bf16.msra.mxu0 %v4190
    %5037 = vmatprep.subr.bf16.mxu0 %v4204
    %5038 = vmatpush1.bf16.msra.mxu0 %v4203
    %5039 = vmatprep.subr.bf16.mxu0 %v4217
    %5040 = vmatpush1.bf16.msra.mxu0 %v4216
    %5041 = vmatprep.subr.bf16.mxu0 %v4230
    %5042 = vmatpush1.bf16.msra.mxu0 %v4229
    %5043 = vmatprep.subr.bf16.mxu0 %v4243
    %5044 = vmatpush1.bf16.msra.mxu0 %v4242
    %5045 = vmatprep.subr.bf16.mxu0 %v4256
    %5046 = vmatpush1.bf16.msra.mxu0 %v4255
    %5047 = vmatprep.subr.bf16.mxu0 %v4269
    %5048 = vmatpush1.bf16.msra.mxu0 %v4268
    %5049 = vmatprep.mubr.bf16.mxu0 %v940
    %5050 = vmatmul.mubr.bf16.gmra.mrb[0].mxu0 %v939
    %v5051 = vpop.f32.mrb[0].mxu0
    %v5052 = vadd.f32 %v5011, %v5051
    %v5053 = vpop.f32.mrb[0].mxu0
    %v5054 = vadd.f32 %v5013, %v5053
    %v5055 = vpop.f32.mrb[0].mxu0
    %v5056 = vpop.f32.mrb[0].mxu0
    %5057 = vdwg.mxu0
    %5058 = vmatprep.subr.bf16.mxu0 %v4282
    %5059 = vmatpush1.bf16.msra.mxu0 %v4281
    %5060 = vmatprep.subr.bf16.mxu0 0
    %5061 = vmatpush1.bf16.msra.mxu0 0
    %5062 = vmatprep.subr.bf16.mxu0 0
    %5063 = vmatpush1.bf16.msra.mxu0 0
    %5064 = vmatprep.subr.bf16.mxu0 0
    %5065 = vmatpush1.bf16.msra.mxu0 0
    %5066 = vmatprep.subr.bf16.mxu0 0
    %5067 = vmatpush1.bf16.msra.mxu0 0
    %5068 = vmatprep.subr.bf16.mxu0 0
    %5069 = vmatpush1.bf16.msra.mxu0 0
    %5070 = vmatprep.subr.bf16.mxu0 0
    %5071 = vmatpush1.bf16.msra.mxu0 0
    %5072 = vmatprep.subr.bf16.mxu0 0
    %5073 = vmatpush1.bf16.msra.mxu0 0
    %5074 = vmatprep.subr.bf16.mxu0 0
    %5075 = vmatpush1.bf16.msra.mxu0 0
    %5076 = vmatprep.subr.bf16.mxu0 0
    %5077 = vmatpush1.bf16.msra.mxu0 0
    %5078 = vmatprep.subr.bf16.mxu0 0
    %5079 = vmatpush1.bf16.msra.mxu0 0
    %5080 = vmatprep.subr.bf16.mxu0 0
    %5081 = vmatpush1.bf16.msra.mxu0 0
    %5082 = vmatprep.subr.bf16.mxu0 0
    %5083 = vmatpush1.bf16.msra.mxu0 0
    %5084 = vmatprep.subr.bf16.mxu0 0
    %5085 = vmatpush1.bf16.msra.mxu0 0
    %5086 = vmatprep.subr.bf16.mxu0 0
    %5087 = vmatpush1.bf16.msra.mxu0 0
    %5088 = vmatprep.subr.bf16.mxu0 0
    %5089 = vmatpush1.bf16.msra.mxu0 0
    %5090 = vmatprep.mubr.bf16.mxu0 0
    %5091 = vmatmul.mubr.bf16.gmra.mrb[0].mxu0 %v4933
    %v5092 = vpop.f32.mrb[0].mxu0
    %v5093 = vadd.f32 %v5052, %v5092
    %v5094 = vpop.f32.mrb[0].mxu0
    %v5095 = vadd.f32 %v5054, %v5094
    %v5096 = vpop.f32.mrb[0].mxu0
    %v5097 = vpop.f32.mrb[0].mxu0
    %5098 = vdwg.mxu0
    %5099 = vmatprep.subr.bf16.mxu0 %v3660
    %5100 = vmatpush1.bf16.msra.mxu0 %v3659
    %5101 = vmatprep.subr.bf16.mxu0 %v3673
    %5102 = vmatpush1.bf16.msra.mxu0 %v3672
    %5103 = vmatprep.subr.bf16.mxu0 %v3686
    %5104 = vmatpush1.bf16.msra.mxu0 %v3685
    %5105 = vmatprep.subr.bf16.mxu0 %v3699
    %5106 = vmatpush1.bf16.msra.mxu0 %v3698
    %5107 = vmatprep.subr.bf16.mxu0 %v3712
    %5108 = vmatpush1.bf16.msra.mxu0 %v3711
    %5109 = vmatprep.subr.bf16.mxu0 %v3725
    %5110 = vmatpush1.bf16.msra.mxu0 %v3724
    %5111 = vmatprep.subr.bf16.mxu0 %v3738
    %5112 = vmatpush1.bf16.msra.mxu0 %v3737
    %5113 = vmatprep.subr.bf16.mxu0 %v3751
    %5114 = vmatpush1.bf16.msra.mxu0 %v3750
    %5115 = vmatprep.subr.bf16.mxu0 %v3764
    %5116 = vmatpush1.bf16.msra.mxu0 %v3763
    %5117 = vmatprep.subr.bf16.mxu0 %v3777
    %5118 = vmatpush1.bf16.msra.mxu0 %v3776
    %5119 = vmatprep.subr.bf16.mxu0 %v3790
    %5120 = vmatpush1.bf16.msra.mxu0 %v3789
    %5121 = vmatprep.subr.bf16.mxu0 %v3803
    %5122 = vmatpush1.bf16.msra.mxu0 %v3802
    %5123 = vmatprep.subr.bf16.mxu0 %v3816
    %5124 = vmatpush1.bf16.msra.mxu0 %v3815
    %5125 = vmatprep.subr.bf16.mxu0 %v3829
    %5126 = vmatpush1.bf16.msra.mxu0 %v3828
    %5127 = vmatprep.subr.bf16.mxu0 %v3842
    %5128 = vmatpush1.bf16.msra.mxu0 %v3841
    %5129 = vmatprep.subr.bf16.mxu0 %v3855
    %5130 = vmatpush1.bf16.msra.mxu0 %v3854
    %5131 = vmatprep.mubr.bf16.mxu0 %v936
    %5132 = vmatmul.mubr.bf16.gmra.mrb[0].mxu0 %v935
    %v5133 = vpop.f32.mrb[0].mxu0
    %v5134 = vadd.f32 %v1643, %v5133
    %v5135 = vpop.f32.mrb[0].mxu0
    %v5136 = vadd.f32 %v1647, %v5135
    %v5137 = vpop.f32.mrb[0].mxu0
    %v5138 = vpop.f32.mrb[0].mxu0
    %5139 = vdwg.mxu0
    %5140 = vmatprep.subr.bf16.mxu0 %v3868
    %5141 = vmatpush1.bf16.msra.mxu0 %v3867
    %5142 = vmatprep.subr.bf16.mxu0 %v3881
    %5143 = vmatpush1.bf16.msra.mxu0 %v3880
    %5144 = vmatprep.subr.bf16.mxu0 %v3894
    %5145 = vmatpush1.bf16.msra.mxu0 %v3893
    %5146 = vmatprep.subr.bf16.mxu0 %v3907
    %5147 = vmatpush1.bf16.msra.mxu0 %v3906
    %5148 = vmatprep.subr.bf16.mxu0 %v3920
    %5149 = vmatpush1.bf16.msra.mxu0 %v3919
    %5150 = vmatprep.subr.bf16.mxu0 %v3933
    %5151 = vmatpush1.bf16.msra.mxu0 %v3932
    %5152 = vmatprep.subr.bf16.mxu0 %v3946
    %5153 = vmatpush1.bf16.msra.mxu0 %v3945
    %5154 = vmatprep.subr.bf16.mxu0 %v3959
    %5155 = vmatpush1.bf16.msra.mxu0 %v3958
    %5156 = vmatprep.subr.bf16.mxu0 %v3972
    %5157 = vmatpush1.bf16.msra.mxu0 %v3971
    %5158 = vmatprep.subr.bf16.mxu0 %v3985
    %5159 = vmatpush1.bf16.msra.mxu0 %v3984
    %5160 = vmatprep.subr.bf16.mxu0 %v3998
    %5161 = vmatpush1.bf16.msra.mxu0 %v3997
    %5162 = vmatprep.subr.bf16.mxu0 %v4011
    %5163 = vmatpush1.bf16.msra.mxu0 %v4010
    %5164 = vmatprep.subr.bf16.mxu0 %v4024
    %5165 = vmatpush1.bf16.msra.mxu0 %v4023
    %5166 = vmatprep.subr.bf16.mxu0 %v4037
    %5167 = vmatpush1.bf16.msra.mxu0 %v4036
    %5168 = vmatprep.subr.bf16.mxu0 %v4050
    %5169 = vmatpush1.bf16.msra.mxu0 %v4049
    %5170 = vmatprep.subr.bf16.mxu0 %v4063
    %5171 = vmatpush1.bf16.msra.mxu0 %v4062
    %5172 = vmatprep.mubr.bf16.mxu0 %v938
    %5173 = vmatmul.mubr.bf16.gmra.mrb[0].mxu0 %v937
    %v5174 = vpop.f32.mrb[0].mxu0
    %v5175 = vadd.f32 %v5134, %v5174
    %v5176 = vpop.f32.mrb[0].mxu0
    %v5177 = vadd.f32 %v5136, %v5176
    %v5178 = vpop.f32.mrb[0].mxu0
    %v5179 = vpop.f32.mrb[0].mxu0
    %5180 = vdwg.mxu0
    %5181 = vmatprep.subr.bf16.mxu0 %v4076
    %5182 = vmatpush1.bf16.msra.mxu0 %v4075
    %5183 = vmatprep.subr.bf16.mxu0 %v4089
    %5184 = vmatpush1.bf16.msra.mxu0 %v4088
    %5185 = vmatprep.subr.bf16.mxu0 %v4102
    %5186 = vmatpush1.bf16.msra.mxu0 %v4101
    %5187 = vmatprep.subr.bf16.mxu0 %v4115
    %5188 = vmatpush1.bf16.msra.mxu0 %v4114
    %5189 = vmatprep.subr.bf16.mxu0 %v4128
    %5190 = vmatpush1.bf16.msra.mxu0 %v4127
    %5191 = vmatprep.subr.bf16.mxu0 %v4141
    %5192 = vmatpush1.bf16.msra.mxu0 %v4140
    %5193 = vmatprep.subr.bf16.mxu0 %v4154
    %5194 = vmatpush1.bf16.msra.mxu0 %v4153
    %5195 = vmatprep.subr.bf16.mxu0 %v4167
    %5196 = vmatpush1.bf16.msra.mxu0 %v4166
    %5197 = vmatprep.subr.bf16.mxu0 %v4180
    %5198 = vmatpush1.bf16.msra.mxu0 %v4179
    %5199 = vmatprep.subr.bf16.mxu0 %v4193
    %5200 = vmatpush1.bf16.msra.mxu0 %v4192
    %5201 = vmatprep.subr.bf16.mxu0 %v4206
    %5202 = vmatpush1.bf16.msra.mxu0 %v4205
    %5203 = vmatprep.subr.bf16.mxu0 %v4219
    %5204 = vmatpush1.bf16.msra.mxu0 %v4218
    %5205 = vmatprep.subr.bf16.mxu0 %v4232
    %5206 = vmatpush1.bf16.msra.mxu0 %v4231
    %5207 = vmatprep.subr.bf16.mxu0 %v4245
    %5208 = vmatpush1.bf16.msra.mxu0 %v4244
    %5209 = vmatprep.subr.bf16.mxu0 %v4258
    %5210 = vmatpush1.bf16.msra.mxu0 %v4257
    %5211 = vmatprep.subr.bf16.mxu0 %v4271
    %5212 = vmatpush1.bf16.msra.mxu0 %v4270
    %5213 = vmatprep.mubr.bf16.mxu0 %v940
    %5214 = vmatmul.mubr.bf16.gmra.mrb[0].mxu0 %v939
    %v5215 = vpop.f32.mrb[0].mxu0
    %v5216 = vadd.f32 %v5175, %v5215
    %v5217 = vpop.f32.mrb[0].mxu0
    %v5218 = vadd.f32 %v5177, %v5217
    %v5219 = vpop.f32.mrb[0].mxu0
    %v5220 = vpop.f32.mrb[0].mxu0
    %5221 = vdwg.mxu0
    %5222 = vmatprep.subr.bf16.mxu0 %v4284
    %5223 = vmatpush1.bf16.msra.mxu0 %v4283
    %5224 = vmatprep.subr.bf16.mxu0 0
    %5225 = vmatpush1.bf16.msra.mxu0 0
    %5226 = vmatprep.subr.bf16.mxu0 0
    %5227 = vmatpush1.bf16.msra.mxu0 0
    %5228 = vmatprep.subr.bf16.mxu0 0
    %5229 = vmatpush1.bf16.msra.mxu0 0
    %5230 = vmatprep.subr.bf16.mxu0 0
    %5231 = vmatpush1.bf16.msra.mxu0 0
    %5232 = vmatprep.subr.bf16.mxu0 0
    %5233 = vmatpush1.bf16.msra.mxu0 0
    %5234 = vmatprep.subr.bf16.mxu0 0
    %5235 = vmatpush1.bf16.msra.mxu0 0
    %5236 = vmatprep.subr.bf16.mxu0 0
    %5237 = vmatpush1.bf16.msra.mxu0 0
    %5238 = vmatprep.subr.bf16.mxu0 0
    %5239 = vmatpush1.bf16.msra.mxu0 0
    %5240 = vmatprep.subr.bf16.mxu0 0
    %5241 = vmatpush1.bf16.msra.mxu0 0
    %5242 = vmatprep.subr.bf16.mxu0 0
    %5243 = vmatpush1.bf16.msra.mxu0 0
    %5244 = vmatprep.subr.bf16.mxu0 0
    %5245 = vmatpush1.bf16.msra.mxu0 0
    %5246 = vmatprep.subr.bf16.mxu0 0
    %5247 = vmatpush1.bf16.msra.mxu0 0
    %5248 = vmatprep.subr.bf16.mxu0 0
    %5249 = vmatpush1.bf16.msra.mxu0 0
    %5250 = vmatprep.subr.bf16.mxu0 0
    %5251 = vmatpush1.bf16.msra.mxu0 0
    %5252 = vmatprep.subr.bf16.mxu0 0
    %5253 = vmatpush1.bf16.msra.mxu0 0
    %5254 = vmatprep.mubr.bf16.mxu0 0
    %5255 = vmatmul.mubr.bf16.gmra.mrb[0].mxu0 %v4933
    %v5256 = vpop.f32.mrb[0].mxu0
    %v5257 = vadd.f32 %v5216, %v5256
    %v5258 = vpop.f32.mrb[0].mxu0
    %v5259 = vadd.f32 %v5218, %v5258
    %v5260 = vpop.f32.mrb[0].mxu0
    %v5261 = vpop.f32.mrb[0].mxu0
    %5262 = vdwg.mxu0
    %5263 = vmatprep.subr.bf16.mxu0 %v3662
    %5264 = vmatpush1.bf16.msra.mxu0 %v3661
    %5265 = vmatprep.subr.bf16.mxu0 %v3675
    %5266 = vmatpush1.bf16.msra.mxu0 %v3674
    %5267 = vmatprep.subr.bf16.mxu0 %v3688
    %5268 = vmatpush1.bf16.msra.mxu0 %v3687
    %5269 = vmatprep.subr.bf16.mxu0 %v3701
    %5270 = vmatpush1.bf16.msra.mxu0 %v3700
    %5271 = vmatprep.subr.bf16.mxu0 %v3714
    %5272 = vmatpush1.bf16.msra.mxu0 %v3713
    %5273 = vmatprep.subr.bf16.mxu0 %v3727
    %5274 = vmatpush1.bf16.msra.mxu0 %v3726
    %5275 = vmatprep.subr.bf16.mxu0 %v3740
    %5276 = vmatpush1.bf16.msra.mxu0 %v3739
    %5277 = vmatprep.subr.bf16.mxu0 %v3753
    %5278 = vmatpush1.bf16.msra.mxu0 %v3752
    %5279 = vmatprep.subr.bf16.mxu0 %v3766
    %5280 = vmatpush1.bf16.msra.mxu0 %v3765
    %5281 = vmatprep.subr.bf16.mxu0 %v3779
    %5282 = vmatpush1.bf16.msra.mxu0 %v3778
    %5283 = vmatprep.subr.bf16.mxu0 %v3792
    %5284 = vmatpush1.bf16.msra.mxu0 %v3791
    %5285 = vmatprep.subr.bf16.mxu0 %v3805
    %5286 = vmatpush1.bf16.msra.mxu0 %v3804
    %5287 = vmatprep.subr.bf16.mxu0 %v3818
    %5288 = vmatpush1.bf16.msra.mxu0 %v3817
    %5289 = vmatprep.subr.bf16.mxu0 %v3831
    %5290 = vmatpush1.bf16.msra.mxu0 %v3830
    %5291 = vmatprep.subr.bf16.mxu0 %v3844
    %5292 = vmatpush1.bf16.msra.mxu0 %v3843
    %5293 = vmatprep.subr.bf16.mxu0 %v3857
    %5294 = vmatpush1.bf16.msra.mxu0 %v3856
    %5295 = vmatprep.mubr.bf16.mxu0 %v936
    %5296 = vmatmul.mubr.bf16.gmra.mrb[0].mxu0 %v935
    %v5297 = vpop.f32.mrb[0].mxu0
    %v5298 = vadd.f32 %v1651, %v5297
    %v5299 = vpop.f32.mrb[0].mxu0
    %v5300 = vadd.f32 %v1655, %v5299
    %v5301 = vpop.f32.mrb[0].mxu0
    %v5302 = vpop.f32.mrb[0].mxu0
    %5303 = vdwg.mxu0
    %5304 = vmatprep.subr.bf16.mxu0 %v3870
    %5305 = vmatpush1.bf16.msra.mxu0 %v3869
    %5306 = vmatprep.subr.bf16.mxu0 %v3883
    %5307 = vmatpush1.bf16.msra.mxu0 %v3882
    %5308 = vmatprep.subr.bf16.mxu0 %v3896
    %5309 = vmatpush1.bf16.msra.mxu0 %v3895
    %5310 = vmatprep.subr.bf16.mxu0 %v3909
    %5311 = vmatpush1.bf16.msra.mxu0 %v3908
    %5312 = vmatprep.subr.bf16.mxu0 %v3922
    %5313 = vmatpush1.bf16.msra.mxu0 %v3921
    %5314 = vmatprep.subr.bf16.mxu0 %v3935
    %5315 = vmatpush1.bf16.msra.mxu0 %v3934
    %5316 = vmatprep.subr.bf16.mxu0 %v3948
    %5317 = vmatpush1.bf16.msra.mxu0 %v3947
    %5318 = vmatprep.subr.bf16.mxu0 %v3961
    %5319 = vmatpush1.bf16.msra.mxu0 %v3960
    %5320 = vmatprep.subr.bf16.mxu0 %v3974
    %5321 = vmatpush1.bf16.msra.mxu0 %v3973
    %5322 = vmatprep.subr.bf16.mxu0 %v3987
    %5323 = vmatpush1.bf16.msra.mxu0 %v3986
    %5324 = vmatprep.subr.bf16.mxu0 %v4000
    %5325 = vmatpush1.bf16.msra.mxu0 %v3999
    %5326 = vmatprep.subr.bf16.mxu0 %v4013
    %5327 = vmatpush1.bf16.msra.mxu0 %v4012
    %5328 = vmatprep.subr.bf16.mxu0 %v4026
    %5329 = vmatpush1.bf16.msra.mxu0 %v4025
    %5330 = vmatprep.subr.bf16.mxu0 %v4039
    %5331 = vmatpush1.bf16.msra.mxu0 %v4038
    %5332 = vmatprep.subr.bf16.mxu0 %v4052
    %5333 = vmatpush1.bf16.msra.mxu0 %v4051
    %5334 = vmatprep.subr.bf16.mxu0 %v4065
    %5335 = vmatpush1.bf16.msra.mxu0 %v4064
    %5336 = vmatprep.mubr.bf16.mxu0 %v938
    %5337 = vmatmul.mubr.bf16.gmra.mrb[0].mxu0 %v937
    %v5338 = vpop.f32.mrb[0].mxu0
    %v5339 = vadd.f32 %v5298, %v5338
    %v5340 = vpop.f32.mrb[0].mxu0
    %v5341 = vadd.f32 %v5300, %v5340
    %v5342 = vpop.f32.mrb[0].mxu0
    %v5343 = vpop.f32.mrb[0].mxu0
    %5344 = vdwg.mxu0
    %5345 = vmatprep.subr.bf16.mxu0 %v4078
    %5346 = vmatpush1.bf16.msra.mxu0 %v4077
    %5347 = vmatprep.subr.bf16.mxu0 %v4091
    %5348 = vmatpush1.bf16.msra.mxu0 %v4090
    %5349 = vmatprep.subr.bf16.mxu0 %v4104
    %5350 = vmatpush1.bf16.msra.mxu0 %v4103
    %5351 = vmatprep.subr.bf16.mxu0 %v4117
    %5352 = vmatpush1.bf16.msra.mxu0 %v4116
    %5353 = vmatprep.subr.bf16.mxu0 %v4130
    %5354 = vmatpush1.bf16.msra.mxu0 %v4129
    %5355 = vmatprep.subr.bf16.mxu0 %v4143
    %5356 = vmatpush1.bf16.msra.mxu0 %v4142
    %5357 = vmatprep.subr.bf16.mxu0 %v4156
    %5358 = vmatpush1.bf16.msra.mxu0 %v4155
    %5359 = vmatprep.subr.bf16.mxu0 %v4169
    %5360 = vmatpush1.bf16.msra.mxu0 %v4168
    %5361 = vmatprep.subr.bf16.mxu0 %v4182
    %5362 = vmatpush1.bf16.msra.mxu0 %v4181
    %5363 = vmatprep.subr.bf16.mxu0 %v4195
    %5364 = vmatpush1.bf16.msra.mxu0 %v4194
    %5365 = vmatprep.subr.bf16.mxu0 %v4208
    %5366 = vmatpush1.bf16.msra.mxu0 %v4207
    %5367 = vmatprep.subr.bf16.mxu0 %v4221
    %5368 = vmatpush1.bf16.msra.mxu0 %v4220
    %5369 = vmatprep.subr.bf16.mxu0 %v4234
    %5370 = vmatpush1.bf16.msra.mxu0 %v4233
    %5371 = vmatprep.subr.bf16.mxu0 %v4247
    %5372 = vmatpush1.bf16.msra.mxu0 %v4246
    %5373 = vmatprep.subr.bf16.mxu0 %v4260
    %5374 = vmatpush1.bf16.msra.mxu0 %v4259
    %5375 = vmatprep.subr.bf16.mxu0 %v4273
    %5376 = vmatpush1.bf16.msra.mxu0 %v4272
    %5377 = vmatprep.mubr.bf16.mxu0 %v940
    %5378 = vmatmul.mubr.bf16.gmra.mrb[0].mxu0 %v939
    %v5379 = vpop.f32.mrb[0].mxu0
    %v5380 = vadd.f32 %v5339, %v5379
    %v5381 = vpop.f32.mrb[0].mxu0
    %v5382 = vadd.f32 %v5341, %v5381
    %v5383 = vpop.f32.mrb[0].mxu0
    %v5384 = vpop.f32.mrb[0].mxu0
    %5385 = vdwg.mxu0
    %5386 = vmatprep.subr.bf16.mxu0 %v4286
    %5387 = vmatpush1.bf16.msra.mxu0 %v4285
    %5388 = vmatprep.subr.bf16.mxu0 0
    %5389 = vmatpush1.bf16.msra.mxu0 0
    %5390 = vmatprep.subr.bf16.mxu0 0
    %5391 = vmatpush1.bf16.msra.mxu0 0
    %5392 = vmatprep.subr.bf16.mxu0 0
    %5393 = vmatpush1.bf16.msra.mxu0 0
    %5394 = vmatprep.subr.bf16.mxu0 0
    %5395 = vmatpush1.bf16.msra.mxu0 0
    %5396 = vmatprep.subr.bf16.mxu0 0
    %5397 = vmatpush1.bf16.msra.mxu0 0
    %5398 = vmatprep.subr.bf16.mxu0 0
    %5399 = vmatpush1.bf16.msra.mxu0 0
    %5400 = vmatprep.subr.bf16.mxu0 0
    %5401 = vmatpush1.bf16.msra.mxu0 0
    %5402 = vmatprep.subr.bf16.mxu0 0
    %5403 = vmatpush1.bf16.msra.mxu0 0
    %5404 = vmatprep.subr.bf16.mxu0 0
    %5405 = vmatpush1.bf16.msra.mxu0 0
    %5406 = vmatprep.subr.bf16.mxu0 0
    %5407 = vmatpush1.bf16.msra.mxu0 0
    %5408 = vmatprep.subr.bf16.mxu0 0
    %5409 = vmatpush1.bf16.msra.mxu0 0
    %5410 = vmatprep.subr.bf16.mxu0 0
    %5411 = vmatpush1.bf16.msra.mxu0 0
    %5412 = vmatprep.subr.bf16.mxu0 0
    %5413 = vmatpush1.bf16.msra.mxu0 0
    %5414 = vmatprep.subr.bf16.mxu0 0
    %5415 = vmatpush1.bf16.msra.mxu0 0
    %5416 = vmatprep.subr.bf16.mxu0 0
    %5417 = vmatpush1.bf16.msra.mxu0 0
    %5418 = vmatprep.mubr.bf16.mxu0 0
    %5419 = vmatmul.mubr.bf16.gmra.mrb[0].mxu0 %v4933
    %v5420 = vpop.f32.mrb[0].mxu0
    %v5421 = vadd.f32 %v5380, %v5420
    %v5422 = vpop.f32.mrb[0].mxu0
    %v5423 = vadd.f32 %v5382, %v5422
    %v5424 = vpop.f32.mrb[0].mxu0
    %v5425 = vpop.f32.mrb[0].mxu0
    %5426 = vdwg.mxu0
    %5427 = vmatprep.subr.bf16.mxu0 %v3664
    %5428 = vmatpush1.bf16.msra.mxu0 %v3663
    %5429 = vmatprep.subr.bf16.mxu0 %v3677
    %5430 = vmatpush1.bf16.msra.mxu0 %v3676
    %5431 = vmatprep.subr.bf16.mxu0 %v3690
    %5432 = vmatpush1.bf16.msra.mxu0 %v3689
    %5433 = vmatprep.subr.bf16.mxu0 %v3703
    %5434 = vmatpush1.bf16.msra.mxu0 %v3702
    %5435 = vmatprep.subr.bf16.mxu0 %v3716
    %5436 = vmatpush1.bf16.msra.mxu0 %v3715
    %5437 = vmatprep.subr.bf16.mxu0 %v3729
    %5438 = vmatpush1.bf16.msra.mxu0 %v3728
    %5439 = vmatprep.subr.bf16.mxu0 %v3742
    %5440 = vmatpush1.bf16.msra.mxu0 %v3741
    %5441 = vmatprep.subr.bf16.mxu0 %v3755
    %5442 = vmatpush1.bf16.msra.mxu0 %v3754
    %5443 = vmatprep.subr.bf16.mxu0 %v3768
    %5444 = vmatpush1.bf16.msra.mxu0 %v3767
    %5445 = vmatprep.subr.bf16.mxu0 %v3781
    %5446 = vmatpush1.bf16.msra.mxu0 %v3780
    %5447 = vmatprep.subr.bf16.mxu0 %v3794
    %5448 = vmatpush1.bf16.msra.mxu0 %v3793
    %5449 = vmatprep.subr.bf16.mxu0 %v3807
    %5450 = vmatpush1.bf16.msra.mxu0 %v3806
    %5451 = vmatprep.subr.bf16.mxu0 %v3820
    %5452 = vmatpush1.bf16.msra.mxu0 %v3819
    %5453 = vmatprep.subr.bf16.mxu0 %v3833
    %5454 = vmatpush1.bf16.msra.mxu0 %v3832
    %5455 = vmatprep.subr.bf16.mxu0 %v3846
    %5456 = vmatpush1.bf16.msra.mxu0 %v3845
    %5457 = vmatprep.subr.bf16.mxu0 %v3859
    %5458 = vmatpush1.bf16.msra.mxu0 %v3858
    %5459 = vmatprep.mubr.bf16.mxu0 %v936
    %5460 = vmatmul.mubr.bf16.gmra.mrb[0].mxu0 %v935
    %v5461 = vpop.f32.mrb[0].mxu0
    %v5462 = vadd.f32 %v1659, %v5461
    %v5463 = vpop.f32.mrb[0].mxu0
    %v5464 = vadd.f32 %v1663, %v5463
    %v5465 = vpop.f32.mrb[0].mxu0
    %v5466 = vpop.f32.mrb[0].mxu0
    %5467 = vdwg.mxu0
    %5468 = vmatprep.subr.bf16.mxu0 %v3872
    %5469 = vmatpush1.bf16.msra.mxu0 %v3871
    %5470 = vmatprep.subr.bf16.mxu0 %v3885
    %5471 = vmatpush1.bf16.msra.mxu0 %v3884
    %5472 = vmatprep.subr.bf16.mxu0 %v3898
    %5473 = vmatpush1.bf16.msra.mxu0 %v3897
    %5474 = vmatprep.subr.bf16.mxu0 %v3911
    %5475 = vmatpush1.bf16.msra.mxu0 %v3910
    %5476 = vmatprep.subr.bf16.mxu0 %v3924
    %5477 = vmatpush1.bf16.msra.mxu0 %v3923
    %5478 = vmatprep.subr.bf16.mxu0 %v3937
    %5479 = vmatpush1.bf16.msra.mxu0 %v3936
    %5480 = vmatprep.subr.bf16.mxu0 %v3950
    %5481 = vmatpush1.bf16.msra.mxu0 %v3949
    %5482 = vmatprep.subr.bf16.mxu0 %v3963
    %5483 = vmatpush1.bf16.msra.mxu0 %v3962
    %5484 = vmatprep.subr.bf16.mxu0 %v3976
    %5485 = vmatpush1.bf16.msra.mxu0 %v3975
    %5486 = vmatprep.subr.bf16.mxu0 %v3989
    %5487 = vmatpush1.bf16.msra.mxu0 %v3988
    %5488 = vmatprep.subr.bf16.mxu0 %v4002
    %5489 = vmatpush1.bf16.msra.mxu0 %v4001
    %5490 = vmatprep.subr.bf16.mxu0 %v4015
    %5491 = vmatpush1.bf16.msra.mxu0 %v4014
    %5492 = vmatprep.subr.bf16.mxu0 %v4028
    %5493 = vmatpush1.bf16.msra.mxu0 %v4027
    %5494 = vmatprep.subr.bf16.mxu0 %v4041
    %5495 = vmatpush1.bf16.msra.mxu0 %v4040
    %5496 = vmatprep.subr.bf16.mxu0 %v4054
    %5497 = vmatpush1.bf16.msra.mxu0 %v4053
    %5498 = vmatprep.subr.bf16.mxu0 %v4067
    %5499 = vmatpush1.bf16.msra.mxu0 %v4066
    %5500 = vmatprep.mubr.bf16.mxu0 %v938
    %5501 = vmatmul.mubr.bf16.gmra.mrb[0].mxu0 %v937
    %v5502 = vpop.f32.mrb[0].mxu0
    %v5503 = vadd.f32 %v5462, %v5502
    %v5504 = vpop.f32.mrb[0].mxu0
    %v5505 = vadd.f32 %v5464, %v5504
    %v5506 = vpop.f32.mrb[0].mxu0
    %v5507 = vpop.f32.mrb[0].mxu0
    %5508 = vdwg.mxu0
    %5509 = vmatprep.subr.bf16.mxu0 %v4080
    %5510 = vmatpush1.bf16.msra.mxu0 %v4079
    %5511 = vmatprep.subr.bf16.mxu0 %v4093
    %5512 = vmatpush1.bf16.msra.mxu0 %v4092
    %5513 = vmatprep.subr.bf16.mxu0 %v4106
    %5514 = vmatpush1.bf16.msra.mxu0 %v4105
    %5515 = vmatprep.subr.bf16.mxu0 %v4119
    %5516 = vmatpush1.bf16.msra.mxu0 %v4118
    %5517 = vmatprep.subr.bf16.mxu0 %v4132
    %5518 = vmatpush1.bf16.msra.mxu0 %v4131
    %5519 = vmatprep.subr.bf16.mxu0 %v4145
    %5520 = vmatpush1.bf16.msra.mxu0 %v4144
    %5521 = vmatprep.subr.bf16.mxu0 %v4158
    %5522 = vmatpush1.bf16.msra.mxu0 %v4157
    %5523 = vmatprep.subr.bf16.mxu0 %v4171
    %5524 = vmatpush1.bf16.msra.mxu0 %v4170
    %5525 = vmatprep.subr.bf16.mxu0 %v4184
    %5526 = vmatpush1.bf16.msra.mxu0 %v4183
    %5527 = vmatprep.subr.bf16.mxu0 %v4197
    %5528 = vmatpush1.bf16.msra.mxu0 %v4196
    %5529 = vmatprep.subr.bf16.mxu0 %v4210
    %5530 = vmatpush1.bf16.msra.mxu0 %v4209
    %5531 = vmatprep.subr.bf16.mxu0 %v4223
    %5532 = vmatpush1.bf16.msra.mxu0 %v4222
    %5533 = vmatprep.subr.bf16.mxu0 %v4236
    %5534 = vmatpush1.bf16.msra.mxu0 %v4235
    %5535 = vmatprep.subr.bf16.mxu0 %v4249
    %5536 = vmatpush1.bf16.msra.mxu0 %v4248
    %5537 = vmatprep.subr.bf16.mxu0 %v4262
    %5538 = vmatpush1.bf16.msra.mxu0 %v4261
    %5539 = vmatprep.subr.bf16.mxu0 %v4275
    %5540 = vmatpush1.bf16.msra.mxu0 %v4274
    %5541 = vmatprep.mubr.bf16.mxu0 %v940
    %5542 = vmatmul.mubr.bf16.gmra.mrb[0].mxu0 %v939
    %v5543 = vpop.f32.mrb[0].mxu0
    %v5544 = vadd.f32 %v5503, %v5543
    %v5545 = vpop.f32.mrb[0].mxu0
    %v5546 = vadd.f32 %v5505, %v5545
    %v5547 = vpop.f32.mrb[0].mxu0
    %v5548 = vpop.f32.mrb[0].mxu0
    %5549 = vdwg.mxu0
    %5550 = vmatprep.subr.bf16.mxu0 %v4288
    %5551 = vmatpush1.bf16.msra.mxu0 %v4287
    %5552 = vmatprep.subr.bf16.mxu0 0
    %5553 = vmatpush1.bf16.msra.mxu0 0
    %5554 = vmatprep.subr.bf16.mxu0 0
    %5555 = vmatpush1.bf16.msra.mxu0 0
    %5556 = vmatprep.subr.bf16.mxu0 0
    %5557 = vmatpush1.bf16.msra.mxu0 0
    %5558 = vmatprep.subr.bf16.mxu0 0
    %5559 = vmatpush1.bf16.msra.mxu0 0
    %5560 = vmatprep.subr.bf16.mxu0 0
    %5561 = vmatpush1.bf16.msra.mxu0 0
    %5562 = vmatprep.subr.bf16.mxu0 0
    %5563 = vmatpush1.bf16.msra.mxu0 0
    %5564 = vmatprep.subr.bf16.mxu0 0
    %5565 = vmatpush1.bf16.msra.mxu0 0
    %5566 = vmatprep.subr.bf16.mxu0 0
    %5567 = vmatpush1.bf16.msra.mxu0 0
    %5568 = vmatprep.subr.bf16.mxu0 0
    %5569 = vmatpush1.bf16.msra.mxu0 0
    %5570 = vmatprep.subr.bf16.mxu0 0
    %5571 = vmatpush1.bf16.msra.mxu0 0
    %5572 = vmatprep.subr.bf16.mxu0 0
    %5573 = vmatpush1.bf16.msra.mxu0 0
    %5574 = vmatprep.subr.bf16.mxu0 0
    %5575 = vmatpush1.bf16.msra.mxu0 0
    %5576 = vmatprep.subr.bf16.mxu0 0
    %5577 = vmatpush1.bf16.msra.mxu0 0
    %5578 = vmatprep.subr.bf16.mxu0 0
    %5579 = vmatpush1.bf16.msra.mxu0 0
    %5580 = vmatprep.subr.bf16.mxu0 0
    %5581 = vmatpush1.bf16.msra.mxu0 0
    %5582 = vmatprep.mubr.bf16.mxu0 0
    %5583 = vmatmul.mubr.bf16.gmra.mrb[0].mxu0 %v4933
    %v5584 = vpop.f32.mrb[0].mxu0
    %v5585 = vadd.f32 %v5544, %v5584
    %v5586 = vpop.f32.mrb[0].mxu0
    %v5587 = vadd.f32 %v5546, %v5586
    %v5588 = vpop.f32.mrb[0].mxu0
    %v5589 = vpop.f32.mrb[0].mxu0
    %5590 = vdwg.mxu0
    %5591 = vmatprep.subr.bf16.mxu0 %v3666
    %5592 = vmatpush1.bf16.msra.mxu0 %v3665
    %5593 = vmatprep.subr.bf16.mxu0 %v3679
    %5594 = vmatpush1.bf16.msra.mxu0 %v3678
    %5595 = vmatprep.subr.bf16.mxu0 %v3692
    %5596 = vmatpush1.bf16.msra.mxu0 %v3691
    %5597 = vmatprep.subr.bf16.mxu0 %v3705
    %5598 = vmatpush1.bf16.msra.mxu0 %v3704
    %5599 = vmatprep.subr.bf16.mxu0 %v3718
    %5600 = vmatpush1.bf16.msra.mxu0 %v3717
    %5601 = vmatprep.subr.bf16.mxu0 %v3731
    %5602 = vmatpush1.bf16.msra.mxu0 %v3730
    %5603 = vmatprep.subr.bf16.mxu0 %v3744
    %5604 = vmatpush1.bf16.msra.mxu0 %v3743
    %5605 = vmatprep.subr.bf16.mxu0 %v3757
    %5606 = vmatpush1.bf16.msra.mxu0 %v3756
    %5607 = vmatprep.subr.bf16.mxu0 %v3770
    %5608 = vmatpush1.bf16.msra.mxu0 %v3769
    %5609 = vmatprep.subr.bf16.mxu0 %v3783
    %5610 = vmatpush1.bf16.msra.mxu0 %v3782
    %5611 = vmatprep.subr.bf16.mxu0 %v3796
    %5612 = vmatpush1.bf16.msra.mxu0 %v3795
    %5613 = vmatprep.subr.bf16.mxu0 %v3809
    %5614 = vmatpush1.bf16.msra.mxu0 %v3808
    %5615 = vmatprep.subr.bf16.mxu0 %v3822
    %5616 = vmatpush1.bf16.msra.mxu0 %v3821
    %5617 = vmatprep.subr.bf16.mxu0 %v3835
    %5618 = vmatpush1.bf16.msra.mxu0 %v3834
    %5619 = vmatprep.subr.bf16.mxu0 %v3848
    %5620 = vmatpush1.bf16.msra.mxu0 %v3847
    %5621 = vmatprep.subr.bf16.mxu0 %v3861
    %5622 = vmatpush1.bf16.msra.mxu0 %v3860
    %5623 = vmatprep.mubr.bf16.mxu0 %v936
    %5624 = vmatmul.mubr.bf16.gmra.mrb[0].mxu0 %v935
    %v5625 = vpop.f32.mrb[0].mxu0
    %v5626 = vadd.f32 %v1667, %v5625
    %v5627 = vpop.f32.mrb[0].mxu0
    %v5628 = vadd.f32 %v1671, %v5627
    %v5629 = vpop.f32.mrb[0].mxu0
    %v5630 = vpop.f32.mrb[0].mxu0
    %5631 = vdwg.mxu0
    %5632 = vmatprep.subr.bf16.mxu0 %v3874
    %5633 = vmatpush1.bf16.msra.mxu0 %v3873
    %5634 = vmatprep.subr.bf16.mxu0 %v3887
    %5635 = vmatpush1.bf16.msra.mxu0 %v3886
    %5636 = vmatprep.subr.bf16.mxu0 %v3900
    %5637 = vmatpush1.bf16.msra.mxu0 %v3899
    %5638 = vmatprep.subr.bf16.mxu0 %v3913
    %5639 = vmatpush1.bf16.msra.mxu0 %v3912
    %5640 = vmatprep.subr.bf16.mxu0 %v3926
    %5641 = vmatpush1.bf16.msra.mxu0 %v3925
    %5642 = vmatprep.subr.bf16.mxu0 %v3939
    %5643 = vmatpush1.bf16.msra.mxu0 %v3938
    %5644 = vmatprep.subr.bf16.mxu0 %v3952
    %5645 = vmatpush1.bf16.msra.mxu0 %v3951
    %5646 = vmatprep.subr.bf16.mxu0 %v3965
    %5647 = vmatpush1.bf16.msra.mxu0 %v3964
    %5648 = vmatprep.subr.bf16.mxu0 %v3978
    %5649 = vmatpush1.bf16.msra.mxu0 %v3977
    %5650 = vmatprep.subr.bf16.mxu0 %v3991
    %5651 = vmatpush1.bf16.msra.mxu0 %v3990
    %5652 = vmatprep.subr.bf16.mxu0 %v4004
    %5653 = vmatpush1.bf16.msra.mxu0 %v4003
    %5654 = vmatprep.subr.bf16.mxu0 %v4017
    %5655 = vmatpush1.bf16.msra.mxu0 %v4016
    %5656 = vmatprep.subr.bf16.mxu0 %v4030
    %5657 = vmatpush1.bf16.msra.mxu0 %v4029
    %5658 = vmatprep.subr.bf16.mxu0 %v4043
    %5659 = vmatpush1.bf16.msra.mxu0 %v4042
    %5660 = vmatprep.subr.bf16.mxu0 %v4056
    %5661 = vmatpush1.bf16.msra.mxu0 %v4055
    %5662 = vmatprep.subr.bf16.mxu0 %v4069
    %5663 = vmatpush1.bf16.msra.mxu0 %v4068
    %5664 = vmatprep.mubr.bf16.mxu0 %v938
    %5665 = vmatmul.mubr.bf16.gmra.mrb[0].mxu0 %v937
    %v5666 = vpop.f32.mrb[0].mxu0
    %v5667 = vadd.f32 %v5626, %v5666
    %v5668 = vpop.f32.mrb[0].mxu0
    %v5669 = vadd.f32 %v5628, %v5668
    %v5670 = vpop.f32.mrb[0].mxu0
    %v5671 = vpop.f32.mrb[0].mxu0
    %5672 = vdwg.mxu0
    %5673 = vmatprep.subr.bf16.mxu0 %v4082
    %5674 = vmatpush1.bf16.msra.mxu0 %v4081
    %5675 = vmatprep.subr.bf16.mxu0 %v4095
    %5676 = vmatpush1.bf16.msra.mxu0 %v4094
    %5677 = vmatprep.subr.bf16.mxu0 %v4108
    %5678 = vmatpush1.bf16.msra.mxu0 %v4107
    %5679 = vmatprep.subr.bf16.mxu0 %v4121
    %5680 = vmatpush1.bf16.msra.mxu0 %v4120
    %5681 = vmatprep.subr.bf16.mxu0 %v4134
    %5682 = vmatpush1.bf16.msra.mxu0 %v4133
    %5683 = vmatprep.subr.bf16.mxu0 %v4147
    %5684 = vmatpush1.bf16.msra.mxu0 %v4146
    %5685 = vmatprep.subr.bf16.mxu0 %v4160
    %5686 = vmatpush1.bf16.msra.mxu0 %v4159
    %5687 = vmatprep.subr.bf16.mxu0 %v4173
    %5688 = vmatpush1.bf16.msra.mxu0 %v4172
    %5689 = vmatprep.subr.bf16.mxu0 %v4186
    %5690 = vmatpush1.bf16.msra.mxu0 %v4185
    %5691 = vmatprep.subr.bf16.mxu0 %v4199
    %5692 = vmatpush1.bf16.msra.mxu0 %v4198
    %5693 = vmatprep.subr.bf16.mxu0 %v4212
    %5694 = vmatpush1.bf16.msra.mxu0 %v4211
    %5695 = vmatprep.subr.bf16.mxu0 %v4225
    %5696 = vmatpush1.bf16.msra.mxu0 %v4224
    %5697 = vmatprep.subr.bf16.mxu0 %v4238
    %5698 = vmatpush1.bf16.msra.mxu0 %v4237
    %5699 = vmatprep.subr.bf16.mxu0 %v4251
    %5700 = vmatpush1.bf16.msra.mxu0 %v4250
    %5701 = vmatprep.subr.bf16.mxu0 %v4264
    %5702 = vmatpush1.bf16.msra.mxu0 %v4263
    %5703 = vmatprep.subr.bf16.mxu0 %v4277
    %5704 = vmatpush1.bf16.msra.mxu0 %v4276
    %5705 = vmatprep.mubr.bf16.mxu0 %v940
    %5706 = vmatmul.mubr.bf16.gmra.mrb[0].mxu0 %v939
    %v5707 = vpop.f32.mrb[0].mxu0
    %v5708 = vadd.f32 %v5667, %v5707
    %v5709 = vpop.f32.mrb[0].mxu0
    %v5710 = vadd.f32 %v5669, %v5709
    %v5711 = vpop.f32.mrb[0].mxu0
    %v5712 = vpop.f32.mrb[0].mxu0
    %5713 = vdwg.mxu0
    %5714 = vmatprep.subr.bf16.mxu0 %v4290
    %5715 = vmatpush1.bf16.msra.mxu0 %v4289
    %5716 = vmatprep.subr.bf16.mxu0 0
    %5717 = vmatpush1.bf16.msra.mxu0 0
    %5718 = vmatprep.subr.bf16.mxu0 0
    %5719 = vmatpush1.bf16.msra.mxu0 0
    %5720 = vmatprep.subr.bf16.mxu0 0
    %5721 = vmatpush1.bf16.msra.mxu0 0
    %5722 = vmatprep.subr.bf16.mxu0 0
    %5723 = vmatpush1.bf16.msra.mxu0 0
    %5724 = vmatprep.subr.bf16.mxu0 0
    %5725 = vmatpush1.bf16.msra.mxu0 0
    %5726 = vmatprep.subr.bf16.mxu0 0
    %5727 = vmatpush1.bf16.msra.mxu0 0
    %5728 = vmatprep.subr.bf16.mxu0 0
    %5729 = vmatpush1.bf16.msra.mxu0 0
    %5730 = vmatprep.subr.bf16.mxu0 0
    %5731 = vmatpush1.bf16.msra.mxu0 0
    %5732 = vmatprep.subr.bf16.mxu0 0
    %5733 = vmatpush1.bf16.msra.mxu0 0
    %5734 = vmatprep.subr.bf16.mxu0 0
    %5735 = vmatpush1.bf16.msra.mxu0 0
    %5736 = vmatprep.subr.bf16.mxu0 0
    %5737 = vmatpush1.bf16.msra.mxu0 0
    %5738 = vmatprep.subr.bf16.mxu0 0
    %5739 = vmatpush1.bf16.msra.mxu0 0
    %5740 = vmatprep.subr.bf16.mxu0 0
    %5741 = vmatpush1.bf16.msra.mxu0 0
    %5742 = vmatprep.subr.bf16.mxu0 0
    %5743 = vmatpush1.bf16.msra.mxu0 0
    %5744 = vmatprep.subr.bf16.mxu0 0
    %5745 = vmatpush1.bf16.msra.mxu0 0
    %5746 = vmatprep.mubr.bf16.mxu0 0
    %5747 = vmatmul.mubr.bf16.gmra.mrb[0].mxu0 %v4933
    %v5748 = vpop.f32.mrb[0].mxu0
    %v5749 = vadd.f32 %v5708, %v5748
    %v5750 = vpop.f32.mrb[0].mxu0
    %v5751 = vadd.f32 %v5710, %v5750
    %v5752 = vpop.f32.mrb[0].mxu0
    %v5753 = vpop.f32.mrb[0].mxu0
    %5754 = vdwg.mxu0
    %5755 = vmatprep.subr.bf16.mxu0 %v3668
    %5756 = vmatpush1.bf16.msra.mxu0 %v3667
    %5757 = vmatprep.subr.bf16.mxu0 %v3681
    %5758 = vmatpush1.bf16.msra.mxu0 %v3680
    %5759 = vmatprep.subr.bf16.mxu0 %v3694
    %5760 = vmatpush1.bf16.msra.mxu0 %v3693
    %5761 = vmatprep.subr.bf16.mxu0 %v3707
    %5762 = vmatpush1.bf16.msra.mxu0 %v3706
    %5763 = vmatprep.subr.bf16.mxu0 %v3720
    %5764 = vmatpush1.bf16.msra.mxu0 %v3719
    %5765 = vmatprep.subr.bf16.mxu0 %v3733
    %5766 = vmatpush1.bf16.msra.mxu0 %v3732
    %5767 = vmatprep.subr.bf16.mxu0 %v3746
    %5768 = vmatpush1.bf16.msra.mxu0 %v3745
    %5769 = vmatprep.subr.bf16.mxu0 %v3759
    %5770 = vmatpush1.bf16.msra.mxu0 %v3758
    %5771 = vmatprep.subr.bf16.mxu0 %v3772
    %5772 = vmatpush1.bf16.msra.mxu0 %v3771
    %5773 = vmatprep.subr.bf16.mxu0 %v3785
    %5774 = vmatpush1.bf16.msra.mxu0 %v3784
    %5775 = vmatprep.subr.bf16.mxu0 %v3798
    %5776 = vmatpush1.bf16.msra.mxu0 %v3797
    %5777 = vmatprep.subr.bf16.mxu0 %v3811
    %5778 = vmatpush1.bf16.msra.mxu0 %v3810
    %5779 = vmatprep.subr.bf16.mxu0 %v3824
    %5780 = vmatpush1.bf16.msra.mxu0 %v3823
    %5781 = vmatprep.subr.bf16.mxu0 %v3837
    %5782 = vmatpush1.bf16.msra.mxu0 %v3836
    %5783 = vmatprep.subr.bf16.mxu0 %v3850
    %5784 = vmatpush1.bf16.msra.mxu0 %v3849
    %5785 = vmatprep.subr.bf16.mxu0 %v3863
    %5786 = vmatpush1.bf16.msra.mxu0 %v3862
    %5787 = vmatprep.mubr.bf16.mxu0 %v936
    %5788 = vmatmul.mubr.bf16.gmra.mrb[0].mxu0 %v935
    %v5789 = vpop.f32.mrb[0].mxu0
    %v5790 = vadd.f32 %v1675, %v5789
    %v5791 = vpop.f32.mrb[0].mxu0
    %v5792 = vadd.f32 %v1679, %v5791
    %v5793 = vpop.f32.mrb[0].mxu0
    %v5794 = vpop.f32.mrb[0].mxu0
    %5795 = vdwg.mxu0
    %5796 = vmatprep.subr.bf16.mxu0 %v3876
    %5797 = vmatpush1.bf16.msra.mxu0 %v3875
    %5798 = vmatprep.subr.bf16.mxu0 %v3889
    %5799 = vmatpush1.bf16.msra.mxu0 %v3888
    %5800 = vmatprep.subr.bf16.mxu0 %v3902
    %5801 = vmatpush1.bf16.msra.mxu0 %v3901
    %5802 = vmatprep.subr.bf16.mxu0 %v3915
    %5803 = vmatpush1.bf16.msra.mxu0 %v3914
    %5804 = vmatprep.subr.bf16.mxu0 %v3928
    %5805 = vmatpush1.bf16.msra.mxu0 %v3927
    %5806 = vmatprep.subr.bf16.mxu0 %v3941
    %5807 = vmatpush1.bf16.msra.mxu0 %v3940
    %5808 = vmatprep.subr.bf16.mxu0 %v3954
    %5809 = vmatpush1.bf16.msra.mxu0 %v3953
    %5810 = vmatprep.subr.bf16.mxu0 %v3967
    %5811 = vmatpush1.bf16.msra.mxu0 %v3966
    %5812 = vmatprep.subr.bf16.mxu0 %v3980
    %5813 = vmatpush1.bf16.msra.mxu0 %v3979
    %5814 = vmatprep.subr.bf16.mxu0 %v3993
    %5815 = vmatpush1.bf16.msra.mxu0 %v3992
    %5816 = vmatprep.subr.bf16.mxu0 %v4006
    %5817 = vmatpush1.bf16.msra.mxu0 %v4005
    %5818 = vmatprep.subr.bf16.mxu0 %v4019
    %5819 = vmatpush1.bf16.msra.mxu0 %v4018
    %5820 = vmatprep.subr.bf16.mxu0 %v4032
    %5821 = vmatpush1.bf16.msra.mxu0 %v4031
    %5822 = vmatprep.subr.bf16.mxu0 %v4045
    %5823 = vmatpush1.bf16.msra.mxu0 %v4044
    %5824 = vmatprep.subr.bf16.mxu0 %v4058
    %5825 = vmatpush1.bf16.msra.mxu0 %v4057
    %5826 = vmatprep.subr.bf16.mxu0 %v4071
    %5827 = vmatpush1.bf16.msra.mxu0 %v4070
    %5828 = vmatprep.mubr.bf16.mxu0 %v938
    %5829 = vmatmul.mubr.bf16.gmra.mrb[0].mxu0 %v937
    %v5830 = vpop.f32.mrb[0].mxu0
    %v5831 = vadd.f32 %v5790, %v5830
    %v5832 = vpop.f32.mrb[0].mxu0
    %v5833 = vadd.f32 %v5792, %v5832
    %v5834 = vpop.f32.mrb[0].mxu0
    %v5835 = vpop.f32.mrb[0].mxu0
    %5836 = vdwg.mxu0
    %5837 = vmatprep.subr.bf16.mxu0 %v4084
    %5838 = vmatpush1.bf16.msra.mxu0 %v4083
    %5839 = vmatprep.subr.bf16.mxu0 %v4097
    %5840 = vmatpush1.bf16.msra.mxu0 %v4096
    %5841 = vmatprep.subr.bf16.mxu0 %v4110
    %5842 = vmatpush1.bf16.msra.mxu0 %v4109
    %5843 = vmatprep.subr.bf16.mxu0 %v4123
    %5844 = vmatpush1.bf16.msra.mxu0 %v4122
    %5845 = vmatprep.subr.bf16.mxu0 %v4136
    %5846 = vmatpush1.bf16.msra.mxu0 %v4135
    %5847 = vmatprep.subr.bf16.mxu0 %v4149
    %5848 = vmatpush1.bf16.msra.mxu0 %v4148
    %5849 = vmatprep.subr.bf16.mxu0 %v4162
    %5850 = vmatpush1.bf16.msra.mxu0 %v4161
    %5851 = vmatprep.subr.bf16.mxu0 %v4175
    %5852 = vmatpush1.bf16.msra.mxu0 %v4174
    %5853 = vmatprep.subr.bf16.mxu0 %v4188
    %5854 = vmatpush1.bf16.msra.mxu0 %v4187
    %5855 = vmatprep.subr.bf16.mxu0 %v4201
    %5856 = vmatpush1.bf16.msra.mxu0 %v4200
    %5857 = vmatprep.subr.bf16.mxu0 %v4214
    %5858 = vmatpush1.bf16.msra.mxu0 %v4213
    %5859 = vmatprep.subr.bf16.mxu0 %v4227
    %5860 = vmatpush1.bf16.msra.mxu0 %v4226
    %5861 = vmatprep.subr.bf16.mxu0 %v4240
    %5862 = vmatpush1.bf16.msra.mxu0 %v4239
    %5863 = vmatprep.subr.bf16.mxu0 %v4253
    %5864 = vmatpush1.bf16.msra.mxu0 %v4252
    %5865 = vmatprep.subr.bf16.mxu0 %v4266
    %5866 = vmatpush1.bf16.msra.mxu0 %v4265
    %5867 = vmatprep.subr.bf16.mxu0 %v4279
    %5868 = vmatpush1.bf16.msra.mxu0 %v4278
    %5869 = vmatprep.mubr.bf16.mxu0 %v940
    %5870 = vmatmul.mubr.bf16.gmra.mrb[0].mxu0 %v939
    %v5871 = vpop.f32.mrb[0].mxu0
    %v5872 = vadd.f32 %v5831, %v5871
    %v5873 = vpop.f32.mrb[0].mxu0
    %v5874 = vadd.f32 %v5833, %v5873
    %v5875 = vpop.f32.mrb[0].mxu0
    %v5876 = vpop.f32.mrb[0].mxu0
    %5877 = vdwg.mxu0
    %5878 = vmatprep.subr.bf16.mxu0 %v4292
    %5879 = vmatpush1.bf16.msra.mxu0 %v4291
    %5880 = vmatprep.subr.bf16.mxu0 0
    %5881 = vmatpush1.bf16.msra.mxu0 0
    %5882 = vmatprep.subr.bf16.mxu0 0
    %5883 = vmatpush1.bf16.msra.mxu0 0
    %5884 = vmatprep.subr.bf16.mxu0 0
    %5885 = vmatpush1.bf16.msra.mxu0 0
    %5886 = vmatprep.subr.bf16.mxu0 0
    %5887 = vmatpush1.bf16.msra.mxu0 0
    %5888 = vmatprep.subr.bf16.mxu0 0
    %5889 = vmatpush1.bf16.msra.mxu0 0
    %5890 = vmatprep.subr.bf16.mxu0 0
    %5891 = vmatpush1.bf16.msra.mxu0 0
    %5892 = vmatprep.subr.bf16.mxu0 0
    %5893 = vmatpush1.bf16.msra.mxu0 0
    %5894 = vmatprep.subr.bf16.mxu0 0
    %5895 = vmatpush1.bf16.msra.mxu0 0
    %5896 = vmatprep.subr.bf16.mxu0 0
    %5897 = vmatpush1.bf16.msra.mxu0 0
    %5898 = vmatprep.subr.bf16.mxu0 0
    %5899 = vmatpush1.bf16.msra.mxu0 0
    %5900 = vmatprep.subr.bf16.mxu0 0
    %5901 = vmatpush1.bf16.msra.mxu0 0
    %5902 = vmatprep.subr.bf16.mxu0 0
    %5903 = vmatpush1.bf16.msra.mxu0 0
    %5904 = vmatprep.subr.bf16.mxu0 0
    %5905 = vmatpush1.bf16.msra.mxu0 0
    %5906 = vmatprep.subr.bf16.mxu0 0
    %5907 = vmatpush1.bf16.msra.mxu0 0
    %5908 = vmatprep.subr.bf16.mxu0 0
    %5909 = vmatpush1.bf16.msra.mxu0 0
    %5910 = vmatprep.mubr.bf16.mxu0 0
    %5911 = vmatmul.mubr.bf16.gmra.mrb[0].mxu0 %v4933
    %v5912 = vpop.f32.mrb[0].mxu0
    %v5913 = vadd.f32 %v5872, %v5912
    %v5914 = vpop.f32.mrb[0].mxu0
    %v5915 = vadd.f32 %v5874, %v5914
    %v5916 = vpop.f32.mrb[0].mxu0
    %v5917 = vpop.f32.mrb[0].mxu0
    %5918 = vdwg.mxu0
    %5919 = vmatprep.subr.bf16.mxu0 0
    %5920 = vmatpush1.bf16.msra.mxu0 %v3669
    %5921 = vmatprep.subr.bf16.mxu0 0
    %5922 = vmatpush1.bf16.msra.mxu0 %v3682
    %5923 = vmatprep.subr.bf16.mxu0 0
    %5924 = vmatpush1.bf16.msra.mxu0 %v3695
    %5925 = vmatprep.subr.bf16.mxu0 0
    %5926 = vmatpush1.bf16.msra.mxu0 %v3708
    %5927 = vmatprep.subr.bf16.mxu0 0
    %5928 = vmatpush1.bf16.msra.mxu0 %v3721
    %5929 = vmatprep.subr.bf16.mxu0 0
    %5930 = vmatpush1.bf16.msra.mxu0 %v3734
    %5931 = vmatprep.subr.bf16.mxu0 0
    %5932 = vmatpush1.bf16.msra.mxu0 %v3747
    %5933 = vmatprep.subr.bf16.mxu0 0
    %5934 = vmatpush1.bf16.msra.mxu0 %v3760
    %5935 = vmatprep.subr.bf16.mxu0 0
    %5936 = vmatpush1.bf16.msra.mxu0 %v3773
    %5937 = vmatprep.subr.bf16.mxu0 0
    %5938 = vmatpush1.bf16.msra.mxu0 %v3786
    %5939 = vmatprep.subr.bf16.mxu0 0
    %5940 = vmatpush1.bf16.msra.mxu0 %v3799
    %5941 = vmatprep.subr.bf16.mxu0 0
    %5942 = vmatpush1.bf16.msra.mxu0 %v3812
    %5943 = vmatprep.subr.bf16.mxu0 0
    %5944 = vmatpush1.bf16.msra.mxu0 %v3825
    %5945 = vmatprep.subr.bf16.mxu0 0
    %5946 = vmatpush1.bf16.msra.mxu0 %v3838
    %5947 = vmatprep.subr.bf16.mxu0 0
    %5948 = vmatpush1.bf16.msra.mxu0 %v3851
    %5949 = vmatprep.subr.bf16.mxu0 0
    %5950 = vmatpush1.bf16.msra.mxu0 %v3864
    %5951 = vmatprep.mubr.bf16.mxu0 %v936
    %5952 = vmatmul.mubr.bf16.gmra.mrb[0].mxu0 %v935
    %v5953 = vpop.f32.mrb[0].mxu0
    %v5954 = vadd.f32 %v1683, %v5953
    %v5955 = vpop.f32.mrb[0].mxu0
    %v5956 = vpop.f32.mrb[0].mxu0
    %v5957 = vpop.f32.mrb[0].mxu0
    %5958 = vdwg.mxu0
    %5959 = vmatprep.subr.bf16.mxu0 0
    %5960 = vmatpush1.bf16.msra.mxu0 %v3877
    %5961 = vmatprep.subr.bf16.mxu0 0
    %5962 = vmatpush1.bf16.msra.mxu0 %v3890
    %5963 = vmatprep.subr.bf16.mxu0 0
    %5964 = vmatpush1.bf16.msra.mxu0 %v3903
    %5965 = vmatprep.subr.bf16.mxu0 0
    %5966 = vmatpush1.bf16.msra.mxu0 %v3916
    %5967 = vmatprep.subr.bf16.mxu0 0
    %5968 = vmatpush1.bf16.msra.mxu0 %v3929
    %5969 = vmatprep.subr.bf16.mxu0 0
    %5970 = vmatpush1.bf16.msra.mxu0 %v3942
    %5971 = vmatprep.subr.bf16.mxu0 0
    %5972 = vmatpush1.bf16.msra.mxu0 %v3955
    %5973 = vmatprep.subr.bf16.mxu0 0
    %5974 = vmatpush1.bf16.msra.mxu0 %v3968
    %5975 = vmatprep.subr.bf16.mxu0 0
    %5976 = vmatpush1.bf16.msra.mxu0 %v3981
    %5977 = vmatprep.subr.bf16.mxu0 0
    %5978 = vmatpush1.bf16.msra.mxu0 %v3994
    %5979 = vmatprep.subr.bf16.mxu0 0
    %5980 = vmatpush1.bf16.msra.mxu0 %v4007
    %5981 = vmatprep.subr.bf16.mxu0 0
    %5982 = vmatpush1.bf16.msra.mxu0 %v4020
    %5983 = vmatprep.subr.bf16.mxu0 0
    %5984 = vmatpush1.bf16.msra.mxu0 %v4033
    %5985 = vmatprep.subr.bf16.mxu0 0
    %5986 = vmatpush1.bf16.msra.mxu0 %v4046
    %5987 = vmatprep.subr.bf16.mxu0 0
    %5988 = vmatpush1.bf16.msra.mxu0 %v4059
    %5989 = vmatprep.subr.bf16.mxu0 0
    %5990 = vmatpush1.bf16.msra.mxu0 %v4072
    %5991 = vmatprep.mubr.bf16.mxu0 %v938
    %5992 = vmatmul.mubr.bf16.gmra.mrb[0].mxu0 %v937
    %v5993 = vpop.f32.mrb[0].mxu0
    %v5994 = vadd.f32 %v5954, %v5993
    %v5995 = vpop.f32.mrb[0].mxu0
    %v5996 = vpop.f32.mrb[0].mxu0
    %v5997 = vpop.f32.mrb[0].mxu0
    %5998 = vdwg.mxu0
    %5999 = vmatprep.subr.bf16.mxu0 0
    %6000 = vmatpush1.bf16.msra.mxu0 %v4085
    %6001 = vmatprep.subr.bf16.mxu0 0
    %6002 = vmatpush1.bf16.msra.mxu0 %v4098
    %6003 = vmatprep.subr.bf16.mxu0 0
    %6004 = vmatpush1.bf16.msra.mxu0 %v4111
    %6005 = vmatprep.subr.bf16.mxu0 0
    %6006 = vmatpush1.bf16.msra.mxu0 %v4124
    %6007 = vmatprep.subr.bf16.mxu0 0
    %6008 = vmatpush1.bf16.msra.mxu0 %v4137
    %6009 = vmatprep.subr.bf16.mxu0 0
    %6010 = vmatpush1.bf16.msra.mxu0 %v4150
    %6011 = vmatprep.subr.bf16.mxu0 0
    %6012 = vmatpush1.bf16.msra.mxu0 %v4163
    %6013 = vmatprep.subr.bf16.mxu0 0
    %6014 = vmatpush1.bf16.msra.mxu0 %v4176
    %6015 = vmatprep.subr.bf16.mxu0 0
    %6016 = vmatpush1.bf16.msra.mxu0 %v4189
    %6017 = vmatprep.subr.bf16.mxu0 0
    %6018 = vmatpush1.bf16.msra.mxu0 %v4202
    %6019 = vmatprep.subr.bf16.mxu0 0
    %6020 = vmatpush1.bf16.msra.mxu0 %v4215
    %6021 = vmatprep.subr.bf16.mxu0 0
    %6022 = vmatpush1.bf16.msra.mxu0 %v4228
    %6023 = vmatprep.subr.bf16.mxu0 0
    %6024 = vmatpush1.bf16.msra.mxu0 %v4241
    %6025 = vmatprep.subr.bf16.mxu0 0
    %6026 = vmatpush1.bf16.msra.mxu0 %v4254
    %6027 = vmatprep.subr.bf16.mxu0 0
    %6028 = vmatpush1.bf16.msra.mxu0 %v4267
    %6029 = vmatprep.subr.bf16.mxu0 0
    %6030 = vmatpush1.bf16.msra.mxu0 %v4280
    %6031 = vmatprep.mubr.bf16.mxu0 %v940
    %6032 = vmatmul.mubr.bf16.gmra.mrb[0].mxu0 %v939
    %v6033 = vpop.f32.mrb[0].mxu0
    %v6034 = vadd.f32 %v5994, %v6033
    %v6035 = vpop.f32.mrb[0].mxu0
    %v6036 = vpop.f32.mrb[0].mxu0
    %v6037 = vpop.f32.mrb[0].mxu0
    %6038 = vdwg.mxu0
    %6039 = vmatprep.subr.bf16.mxu0 0
    %6040 = vmatpush1.bf16.msra.mxu0 %v4293
    %6041 = vmatprep.subr.bf16.mxu0 0
    %6042 = vmatpush1.bf16.msra.mxu0 0
    %6043 = vmatprep.subr.bf16.mxu0 0
    %6044 = vmatpush1.bf16.msra.mxu0 0
    %6045 = vmatprep.subr.bf16.mxu0 0
    %6046 = vmatpush1.bf16.msra.mxu0 0
    %6047 = vmatprep.subr.bf16.mxu0 0
    %6048 = vmatpush1.bf16.msra.mxu0 0
    %6049 = vmatprep.subr.bf16.mxu0 0
    %6050 = vmatpush1.bf16.msra.mxu0 0
    %6051 = vmatprep.subr.bf16.mxu0 0
    %6052 = vmatpush1.bf16.msra.mxu0 0
    %6053 = vmatprep.subr.bf16.mxu0 0
    %6054 = vmatpush1.bf16.msra.mxu0 0
    %6055 = vmatprep.subr.bf16.mxu0 0
    %6056 = vmatpush1.bf16.msra.mxu0 0
    %6057 = vmatprep.subr.bf16.mxu0 0
    %6058 = vmatpush1.bf16.msra.mxu0 0
    %6059 = vmatprep.subr.bf16.mxu0 0
    %6060 = vmatpush1.bf16.msra.mxu0 0
    %6061 = vmatprep.subr.bf16.mxu0 0
    %6062 = vmatpush1.bf16.msra.mxu0 0
    %6063 = vmatprep.subr.bf16.mxu0 0
    %6064 = vmatpush1.bf16.msra.mxu0 0
    %6065 = vmatprep.subr.bf16.mxu0 0
    %6066 = vmatpush1.bf16.msra.mxu0 0
    %6067 = vmatprep.subr.bf16.mxu0 0
    %6068 = vmatpush1.bf16.msra.mxu0 0
    %6069 = vmatprep.subr.bf16.mxu0 0
    %6070 = vmatpush1.bf16.msra.mxu0 0
    %6071 = vmatprep.mubr.bf16.mxu0 0
    %6072 = vmatmul.mubr.bf16.gmra.mrb[0].mxu0 %v4933
    %v6073 = vpop.f32.mrb[0].mxu0
    %v6074 = vadd.f32 %v6034, %v6073
    %v6075 = vpop.f32.mrb[0].mxu0
    %v6076 = vpop.f32.mrb[0].mxu0
    %v6077 = vpop.f32.mrb[0].mxu0
    %6078 = vdwg.mxu0
    %v6079 = vmax.f32 %v5093, 0.0
    %v6080 = vmax.f32 %v5095, 0.0
    %v6081 = vmax.f32 %v5257, 0.0
    %v6082 = vmax.f32 %v5259, 0.0
    %v6083 = vmax.f32 %v5421, 0.0
    %v6084 = vmax.f32 %v5423, 0.0
    %v6085 = vmax.f32 %v5585, 0.0
    %v6086 = vmax.f32 %v5587, 0.0
    %v6087 = vmax.f32 %v5749, 0.0
    %v6088 = vmax.f32 %v5751, 0.0
    %v6089 = vmax.f32 %v5913, 0.0
    %v6090 = vmax.f32 %v5915, 0.0
    %v6091 = vmax.f32 %v6074, 0.0
    %v6092 = vpack.c.bf16 %v6079, %v6079
    %v6093 = vpack.c.bf16 %v6080, %v6080
    %v6094 = vpack.c.bf16 %v6081, %v6081
    %v6095 = vpack.c.bf16 %v6082, %v6082
    %v6096 = vpack.c.bf16 %v6083, %v6083
    %v6097 = vpack.c.bf16 %v6084, %v6084
    %v6098 = vpack.c.bf16 %v6085, %v6085
    %v6099 = vpack.c.bf16 %v6086, %v6086
    %v6100 = vpack.c.bf16 %v6087, %v6087
    %v6101 = vpack.c.bf16 %v6088, %v6088
    %v6102 = vpack.c.bf16 %v6089, %v6089
    %v6103 = vpack.c.bf16 %v6090, %v6090
    %v6104 = vpack.c.bf16 %v6091, %v6091
    %v6105 = vld [vmem:[#allocation10] sm:$0xf]
    %v6106 = vld [vmem:[#allocation10 + $0x4] sm:$0xf]
    %v6107 = vld [vmem:[#allocation10 + $0x8] sm:$0xf]
    %v6108 = vld [vmem:[#allocation10 + $0xc] sm:$0xf]
    %v6109 = vld [vmem:[#allocation10 + $0x10] sm:$0xf]
    %v6110 = vld [vmem:[#allocation10 + $0x14] sm:$0xf]
    %v6111 = vld [vmem:[#allocation10 + $0x18] sm:$0xf]
    %v6112 = vld [vmem:[#allocation10 + $0x1c] sm:$0xf]
    %v6113 = vld [vmem:[#allocation10 + $0x20] sm:$0xf]
    %v6114 = vld [vmem:[#allocation10 + $0x24] sm:$0xf]
    %v6115 = vld [vmem:[#allocation10 + $0x28] sm:$0xf]
    %v6116 = vld [vmem:[#allocation10 + $0x2c] sm:$0xf]
    %v6117 = vld [vmem:[#allocation10 + $0x30] sm:$0xf]
    %v6118 = vld [vmem:[#allocation10 + $0x34] sm:$0xf]
    %v6119 = vld [vmem:[#allocation10 + $0x38] sm:$0xf]
    %v6120 = vld [vmem:[#allocation10 + $0x3c] sm:$0xf]
    %v6121 = vld [vmem:[#allocation10 + $0x40] sm:$0xf]
    %v6122 = vld [vmem:[#allocation10 + $0x44] sm:$0xf]
    %v6123 = vld [vmem:[#allocation10 + $0x48] sm:$0xf]
    %v6124 = vld [vmem:[#allocation10 + $0x4c] sm:$0xf]
    %v6125 = vld [vmem:[#allocation10 + $0x50] sm:$0xf]
    %v6126 = vld [vmem:[#allocation10 + $0x54] sm:$0xf]
    %v6127 = vld [vmem:[#allocation10 + $0x58] sm:$0xf]
    %v6128 = vld [vmem:[#allocation10 + $0x5c] sm:$0xf]
    %v6129 = vld [vmem:[#allocation10 + $0x60] sm:$0xf]
    %v6130 = vld [vmem:[#allocation10 + $0x64] sm:$0xf]
    %v6131 = vld [vmem:[#allocation10 + $0x68] sm:$0xf]
    %v6132 = vld [vmem:[#allocation10 + $0x6c] sm:$0xf]
    %v6133 = vld [vmem:[#allocation10 + $0x70] sm:$0xf]
    %v6134 = vld [vmem:[#allocation10 + $0x74] sm:$0xf]
    %v6135 = vld [vmem:[#allocation10 + $0x78] sm:$0xf]
    %v6136 = vld [vmem:[#allocation10 + $0x7c] sm:$0xf]
    %v6137 = vld [vmem:[#allocation10 + $0x80] sm:$0xf]
    %v6138 = vld [vmem:[#allocation10 + $0x84] sm:$0xf]
    %v6139 = vld [vmem:[#allocation10 + $0x88] sm:$0xf]
    %v6140 = vld [vmem:[#allocation10 + $0x8c] sm:$0xf]
    %v6141 = vld [vmem:[#allocation10 + $0x90] sm:$0xf]
    %v6142 = vld [vmem:[#allocation10 + $0x94] sm:$0xf]
    %v6143 = vld [vmem:[#allocation10 + $0x98] sm:$0xf]
    %v6144 = vld [vmem:[#allocation10 + $0x9c] sm:$0xf]
    %v6145 = vld [vmem:[#allocation10 + $0xa0] sm:$0xf]
    %v6146 = vld [vmem:[#allocation10 + $0xa4] sm:$0xf]
    %v6147 = vld [vmem:[#allocation10 + $0xa8] sm:$0xf]
    %v6148 = vld [vmem:[#allocation10 + $0xac] sm:$0xf]
    %v6149 = vld [vmem:[#allocation10 + $0xb0] sm:$0xf]
    %v6150 = vld [vmem:[#allocation10 + $0xb4] sm:$0xf]
    %v6151 = vld [vmem:[#allocation10 + $0xb8] sm:$0xf]
    %v6152 = vld [vmem:[#allocation10 + $0xbc] sm:$0xf]
    %v6153 = vld [vmem:[#allocation10 + $0xc0] sm:$0xf]
    %v6154 = vld [vmem:[#allocation10 + $0xc4] sm:$0xf]
    %v6155 = vld [vmem:[#allocation10 + $0xc8] sm:$0xf]
    %v6156 = vld [vmem:[#allocation10 + $0xcc] sm:$0xf]
    %v6157 = vld [vmem:[#allocation10 + $0xd0] sm:$0xf]
    %v6158 = vld [vmem:[#allocation10 + $0xd4] sm:$0xf]
    %v6159 = vld [vmem:[#allocation10 + $0xd8] sm:$0xf]
    %v6160 = vld [vmem:[#allocation10 + $0xdc] sm:$0xf]
    %v6161 = vld [vmem:[#allocation10 + $0xe0] sm:$0xf]
    %v6162 = vld [vmem:[#allocation10 + $0xe4] sm:$0xf]
    %v6163 = vld [vmem:[#allocation10 + $0xe8] sm:$0xf]
    %v6164 = vld [vmem:[#allocation10 + $0xec] sm:$0xf]
    %v6165 = vld [vmem:[#allocation10 + $0xf0] sm:$0xf]
    %v6166 = vld [vmem:[#allocation10 + $0xf4] sm:$0xf]
    %v6167 = vld [vmem:[#allocation10 + $0xf8] sm:$0xf]
    %v6168 = vld [vmem:[#allocation10 + $0xfc] sm:$0xf]
    %v6169 = vld [vmem:[#allocation10 + $0x100] sm:$0xf]
    %v6170 = vld [vmem:[#allocation10 + $0x104] sm:$0xf]
    %v6171 = vld [vmem:[#allocation10 + $0x108] sm:$0xf]
    %v6172 = vld [vmem:[#allocation10 + $0x10c] sm:$0xf]
    %v6173 = vld [vmem:[#allocation10 + $0x110] sm:$0xf]
    %v6174 = vld [vmem:[#allocation10 + $0x114] sm:$0xf]
    %v6175 = vld [vmem:[#allocation10 + $0x118] sm:$0xf]
    %v6176 = vld [vmem:[#allocation10 + $0x11c] sm:$0xf]
    %v6177 = vld [vmem:[#allocation10 + $0x120] sm:$0xf]
    %v6178 = vld [vmem:[#allocation10 + $0x124] sm:$0xf]
    %v6179 = vld [vmem:[#allocation10 + $0x128] sm:$0xf]
    %v6180 = vld [vmem:[#allocation10 + $0x12c] sm:$0xf]
    %v6181 = vld [vmem:[#allocation10 + $0x130] sm:$0xf]
    %v6182 = vld [vmem:[#allocation10 + $0x134] sm:$0xf]
    %v6183 = vld [vmem:[#allocation10 + $0x138] sm:$0xf]
    %v6184 = vld [vmem:[#allocation10 + $0x13c] sm:$0xf]
    %v6185 = vld [vmem:[#allocation10 + $0x140] sm:$0xf]
    %v6186 = vld [vmem:[#allocation10 + $0x144] sm:$0xf]
    %v6187 = vld [vmem:[#allocation10 + $0x148] sm:$0xf]
    %v6188 = vld [vmem:[#allocation10 + $0x14c] sm:$0xf]
    %v6189 = vld [vmem:[#allocation10 + $0x150] sm:$0xf]
    %v6190 = vld [vmem:[#allocation10 + $0x154] sm:$0xf]
    %v6191 = vld [vmem:[#allocation10 + $0x158] sm:$0xf]
    %v6192 = vld [vmem:[#allocation10 + $0x15c] sm:$0xf]
    %v6193 = vld [vmem:[#allocation10 + $0x160] sm:$0xf]
    %v6194 = vld [vmem:[#allocation10 + $0x164] sm:$0xf]
    %v6195 = vld [vmem:[#allocation10 + $0x168] sm:$0xf]
    %v6196 = vld [vmem:[#allocation10 + $0x16c] sm:$0xf]
    %v6197 = vld [vmem:[#allocation10 + $0x170] sm:$0xf]
    %v6198 = vld [vmem:[#allocation10 + $0x174] sm:$0xf]
    %v6199 = vld [vmem:[#allocation10 + $0x178] sm:$0xf]
    %v6200 = vld [vmem:[#allocation10 + $0x17c] sm:$0xf]
    %v6201 = vld [vmem:[#allocation10 + $0x180] sm:$0xf]
    %v6202 = vld [vmem:[#allocation10 + $0x184] sm:$0xf]
    %v6203 = vld [vmem:[#allocation10 + $0x188] sm:$0xf]
    %v6204 = vld [vmem:[#allocation10 + $0x18c] sm:$0xf]
    %v6205 = vld [vmem:[#allocation10 + $0x190] sm:$0xf]
    %v6206 = vld [vmem:[#allocation10 + $0x194] sm:$0xf]
    %v6207 = vld [vmem:[#allocation10 + $0x198] sm:$0xf]
    %v6208 = vld [vmem:[#allocation10 + $0x19c] sm:$0xf]
    %v6209 = vld [vmem:[#allocation10 + $0x1a0] sm:$0xf]
    %v6210 = vld [vmem:[#allocation10 + $0x1a4] sm:$0xf]
    %v6211 = vld [vmem:[#allocation10 + $0x1a8] sm:$0xf]
    %v6212 = vld [vmem:[#allocation10 + $0x1ac] sm:$0xf]
    %v6213 = vld [vmem:[#allocation10 + $0x1b0] sm:$0xf]
    %v6214 = vld [vmem:[#allocation10 + $0x1b4] sm:$0xf]
    %v6215 = vld [vmem:[#allocation10 + $0x1b8] sm:$0xf]
    %v6216 = vld [vmem:[#allocation10 + $0x1bc] sm:$0xf]
    %v6217 = vld [vmem:[#allocation10 + $0x1c0] sm:$0xf]
    %v6218 = vld [vmem:[#allocation10 + $0x1c4] sm:$0xf]
    %v6219 = vld [vmem:[#allocation10 + $0x1c8] sm:$0xf]
    %v6220 = vld [vmem:[#allocation10 + $0x1cc] sm:$0xf]
    %v6221 = vld [vmem:[#allocation10 + $0x1d0] sm:$0xf]
    %v6222 = vld [vmem:[#allocation10 + $0x1d4] sm:$0xf]
    %v6223 = vld [vmem:[#allocation10 + $0x1d8] sm:$0xf]
    %v6224 = vld [vmem:[#allocation10 + $0x1dc] sm:$0xf]
    %v6225 = vld [vmem:[#allocation10 + $0x1e0] sm:$0xf]
    %v6226 = vld [vmem:[#allocation10 + $0x1e4] sm:$0xf]
    %v6227 = vld [vmem:[#allocation10 + $0x1e8] sm:$0xf]
    %v6228 = vld [vmem:[#allocation10 + $0x1ec] sm:$0xf]
    %v6229 = vld [vmem:[#allocation10 + $0x1f0] sm:$0xf]
    %v6230 = vld [vmem:[#allocation10 + $0x1f4] sm:$0xf]
    %v6231 = vld [vmem:[#allocation10 + $0x1f8] sm:$0xf]
    %v6232 = vld [vmem:[#allocation10 + $0x1fc] sm:$0xf]
    %v6233 = vld [vmem:[#allocation10 + $0x200] sm:$0xf]
    %v6234 = vld [vmem:[#allocation10 + $0x204] sm:$0xf]
    %v6235 = vld [vmem:[#allocation10 + $0x208] sm:$0xf]
    %v6236 = vld [vmem:[#allocation10 + $0x20c] sm:$0xf]
    %v6237 = vld [vmem:[#allocation10 + $0x210] sm:$0xf]
    %v6238 = vld [vmem:[#allocation10 + $0x214] sm:$0xf]
    %v6239 = vld [vmem:[#allocation10 + $0x218] sm:$0xf]
    %v6240 = vld [vmem:[#allocation10 + $0x21c] sm:$0xf]
    %v6241 = vld [vmem:[#allocation10 + $0x220] sm:$0xf]
    %v6242 = vld [vmem:[#allocation10 + $0x224] sm:$0xf]
    %v6243 = vld [vmem:[#allocation10 + $0x228] sm:$0xf]
    %v6244 = vld [vmem:[#allocation10 + $0x22c] sm:$0xf]
    %v6245 = vld [vmem:[#allocation10 + $0x230] sm:$0xf]
    %v6246 = vld [vmem:[#allocation10 + $0x234] sm:$0xf]
    %v6247 = vld [vmem:[#allocation10 + $0x238] sm:$0xf]
    %v6248 = vld [vmem:[#allocation10 + $0x23c] sm:$0xf]
    %v6249 = vld [vmem:[#allocation10 + $0x240] sm:$0xf]
    %v6250 = vld [vmem:[#allocation10 + $0x244] sm:$0xf]
    %v6251 = vld [vmem:[#allocation10 + $0x248] sm:$0xf]
    %v6252 = vld [vmem:[#allocation10 + $0x24c] sm:$0xf]
    %v6253 = vld [vmem:[#allocation10 + $0x250] sm:$0xf]
    %v6254 = vld [vmem:[#allocation10 + $0x254] sm:$0xf]
    %v6255 = vld [vmem:[#allocation10 + $0x258] sm:$0xf]
    %v6256 = vld [vmem:[#allocation10 + $0x25c] sm:$0xf]
    %v6257 = vld [vmem:[#allocation10 + $0x260] sm:$0xf]
    %v6258 = vld [vmem:[#allocation10 + $0x264] sm:$0xf]
    %v6259 = vld [vmem:[#allocation10 + $0x268] sm:$0xf]
    %v6260 = vld [vmem:[#allocation10 + $0x26c] sm:$0xf]
    %v6261 = vld [vmem:[#allocation10 + $0x270] sm:$0xf]
    %v6262 = vld [vmem:[#allocation10 + $0x274] sm:$0xf]
    %v6263 = vld [vmem:[#allocation10 + $0x278] sm:$0xf]
    %v6264 = vld [vmem:[#allocation10 + $0x27c] sm:$0xf]
    %v6265 = vld [vmem:[#allocation10 + $0x280] sm:$0xf]
    %v6266 = vld [vmem:[#allocation10 + $0x284] sm:$0xf]
    %v6267 = vld [vmem:[#allocation10 + $0x288] sm:$0xf]
    %v6268 = vld [vmem:[#allocation10 + $0x28c] sm:$0xf]
    %v6269 = vld [vmem:[#allocation10 + $0x290] sm:$0xf]
    %v6270 = vld [vmem:[#allocation10 + $0x294] sm:$0xf]
    %v6271 = vld [vmem:[#allocation10 + $0x298] sm:$0xf]
    %v6272 = vld [vmem:[#allocation10 + $0x29c] sm:$0xf]
    %v6273 = vld [vmem:[#allocation10 + $0x2a0] sm:$0xf]
    %v6274 = vld [vmem:[#allocation10 + $0x2a4] sm:$0xf]
    %v6275 = vld [vmem:[#allocation10 + $0x2a8] sm:$0xf]
    %v6276 = vld [vmem:[#allocation10 + $0x2ac] sm:$0xf]
    %v6277 = vld [vmem:[#allocation10 + $0x2b0] sm:$0xf]
    %v6278 = vld [vmem:[#allocation10 + $0x2b4] sm:$0xf]
    %v6279 = vld [vmem:[#allocation10 + $0x2b8] sm:$0xf]
    %v6280 = vld [vmem:[#allocation10 + $0x2bc] sm:$0xf]
    %v6281 = vld [vmem:[#allocation10 + $0x2c0] sm:$0xf]
    %v6282 = vld [vmem:[#allocation10 + $0x2c4] sm:$0xf]
    %v6283 = vld [vmem:[#allocation10 + $0x2c8] sm:$0xf]
    %v6284 = vld [vmem:[#allocation10 + $0x2cc] sm:$0xf]
    %v6285 = vld [vmem:[#allocation10 + $0x2d0] sm:$0xf]
    %v6286 = vld [vmem:[#allocation10 + $0x2d4] sm:$0xf]
    %v6287 = vld [vmem:[#allocation10 + $0x2d8] sm:$0xf]
    %v6288 = vld [vmem:[#allocation10 + $0x2dc] sm:$0xf]
    %v6289 = vld [vmem:[#allocation10 + $0x2e0] sm:$0xf]
    %v6290 = vld [vmem:[#allocation10 + $0x2e4] sm:$0xf]
    %v6291 = vld [vmem:[#allocation10 + $0x2e8] sm:$0xf]
    %v6292 = vld [vmem:[#allocation10 + $0x2ec] sm:$0xf]
    %v6293 = vld [vmem:[#allocation10 + $0x2f0] sm:$0xf]
    %v6294 = vld [vmem:[#allocation10 + $0x2f4] sm:$0xf]
    %v6295 = vld [vmem:[#allocation10 + $0x2f8] sm:$0xf]
    %v6296 = vld [vmem:[#allocation10 + $0x2fc] sm:$0xf]
    %v6297 = vld [vmem:[#allocation10 + $0x300] sm:$0xf]
    %v6298 = vld [vmem:[#allocation10 + $0x304] sm:$0xf]
    %v6299 = vld [vmem:[#allocation10 + $0x308] sm:$0xf]
    %v6300 = vld [vmem:[#allocation10 + $0x30c] sm:$0xf]
    %v6301 = vld [vmem:[#allocation11] sm:$0x1]
    %v6303 = vlaneseq
    %v6304 = vshrl.u32 %v6303, 7
    %v6305 = vsub.s32 0, %v6304
    %v6306 = vrot.slane %v6301, %v6305
    %v6504 = vunpack.c.l.b16 %v6105
    %v6505 = vunpack.c.l.b16 %v6106
    %v6506 = vunpack.c.l.b16 %v6107
    %v6507 = vunpack.c.l.b16 %v6108
    %v6508 = vunpack.c.l.b16 %v6109
    %v6509 = vunpack.c.l.b16 %v6110
    %v6510 = vunpack.c.l.b16 %v6111
    %v6511 = vunpack.c.l.b16 %v6112
    %v6512 = vunpack.c.l.b16 %v6113
    %v6513 = vunpack.c.l.b16 %v6114
    %v6514 = vunpack.c.l.b16 %v6115
    %v6515 = vunpack.c.l.b16 %v6116
    %v6516 = vunpack.c.l.b16 %v6117
    %v6517 = vunpack.c.l.b16 %v6118
    %v6518 = vunpack.c.l.b16 %v6119
    %v6519 = vunpack.c.l.b16 %v6120
    %v6520 = vunpack.c.l.b16 %v6121
    %v6521 = vunpack.c.l.b16 %v6122
    %v6522 = vunpack.c.l.b16 %v6123
    %v6523 = vunpack.c.l.b16 %v6124
    %v6524 = vunpack.c.l.b16 %v6125
    %v6525 = vunpack.c.l.b16 %v6126
    %v6526 = vunpack.c.l.b16 %v6127
    %v6527 = vunpack.c.l.b16 %v6128
    %v6528 = vunpack.c.l.b16 %v6129
    %v6529 = vunpack.c.l.b16 %v6130
    %v6530 = vunpack.c.l.b16 %v6131
    %v6531 = vunpack.c.l.b16 %v6132
    %v6532 = vunpack.c.l.b16 %v6133
    %v6533 = vunpack.c.l.b16 %v6134
    %v6534 = vunpack.c.l.b16 %v6135
    %v6535 = vunpack.c.l.b16 %v6136
    %v6536 = vunpack.c.l.b16 %v6137
    %v6537 = vunpack.c.l.b16 %v6138
    %v6538 = vunpack.c.l.b16 %v6139
    %v6539 = vunpack.c.l.b16 %v6140
    %v6540 = vunpack.c.l.b16 %v6141
    %v6541 = vunpack.c.l.b16 %v6142
    %v6542 = vunpack.c.l.b16 %v6143
    %v6543 = vunpack.c.l.b16 %v6144
    %v6544 = vunpack.c.l.b16 %v6145
    %v6545 = vunpack.c.l.b16 %v6146
    %v6546 = vunpack.c.l.b16 %v6147
    %v6547 = vunpack.c.l.b16 %v6148
    %v6548 = vunpack.c.l.b16 %v6149
    %v6549 = vunpack.c.l.b16 %v6150
    %v6550 = vunpack.c.l.b16 %v6151
    %v6551 = vunpack.c.l.b16 %v6152
    %v6552 = vunpack.c.l.b16 %v6153
    %v6553 = vunpack.c.l.b16 %v6154
    %v6554 = vunpack.c.l.b16 %v6155
    %v6555 = vunpack.c.l.b16 %v6156
    %v6556 = vunpack.c.l.b16 %v6157
    %v6557 = vunpack.c.l.b16 %v6158
    %v6558 = vunpack.c.l.b16 %v6159
    %v6559 = vunpack.c.l.b16 %v6160
    %v6560 = vunpack.c.l.b16 %v6161
    %v6561 = vunpack.c.l.b16 %v6162
    %v6562 = vunpack.c.l.b16 %v6163
    %v6563 = vunpack.c.l.b16 %v6164
    %v6564 = vunpack.c.l.b16 %v6165
    %v6565 = vunpack.c.l.b16 %v6166
    %v6566 = vunpack.c.l.b16 %v6167
    %v6567 = vunpack.c.l.b16 %v6168
    %v6568 = vunpack.c.l.b16 %v6169
    %v6569 = vunpack.c.l.b16 %v6170
    %v6570 = vunpack.c.l.b16 %v6171
    %v6571 = vunpack.c.l.b16 %v6172
    %v6572 = vunpack.c.l.b16 %v6173
    %v6573 = vunpack.c.l.b16 %v6174
    %v6574 = vunpack.c.l.b16 %v6175
    %v6575 = vunpack.c.l.b16 %v6176
    %v6576 = vunpack.c.l.b16 %v6177
    %v6577 = vunpack.c.l.b16 %v6178
    %v6578 = vunpack.c.l.b16 %v6179
    %v6579 = vunpack.c.l.b16 %v6180
    %v6580 = vunpack.c.l.b16 %v6181
    %v6581 = vunpack.c.l.b16 %v6182
    %v6582 = vunpack.c.l.b16 %v6183
    %v6583 = vunpack.c.l.b16 %v6184
    %v6584 = vunpack.c.l.b16 %v6185
    %v6585 = vunpack.c.l.b16 %v6186
    %v6586 = vunpack.c.l.b16 %v6187
    %v6587 = vunpack.c.l.b16 %v6188
    %v6588 = vunpack.c.l.b16 %v6189
    %v6589 = vunpack.c.l.b16 %v6190
    %v6590 = vunpack.c.l.b16 %v6191
    %v6591 = vunpack.c.l.b16 %v6192
    %v6592 = vunpack.c.l.b16 %v6193
    %v6593 = vunpack.c.l.b16 %v6194
    %v6594 = vunpack.c.l.b16 %v6195
    %v6595 = vunpack.c.l.b16 %v6196
    %v6596 = vunpack.c.l.b16 %v6197
    %v6597 = vunpack.c.l.b16 %v6198
    %v6598 = vunpack.c.l.b16 %v6199
    %v6599 = vunpack.c.l.b16 %v6200
    %v6600 = vunpack.c.l.b16 %v6201
    %v6601 = vunpack.c.l.b16 %v6202
    %v6602 = vunpack.c.l.b16 %v6203
    %v6603 = vunpack.c.l.b16 %v6204
    %v6604 = vunpack.c.l.b16 %v6205
    %v6605 = vunpack.c.l.b16 %v6206
    %v6606 = vunpack.c.l.b16 %v6207
    %v6607 = vunpack.c.l.b16 %v6208
    %v6608 = vunpack.c.l.b16 %v6209
    %v6609 = vunpack.c.l.b16 %v6210
    %v6610 = vunpack.c.l.b16 %v6211
    %v6611 = vunpack.c.l.b16 %v6212
    %v6612 = vunpack.c.l.b16 %v6213
    %v6613 = vunpack.c.l.b16 %v6214
    %v6614 = vunpack.c.l.b16 %v6215
    %v6615 = vunpack.c.l.b16 %v6216
    %v6616 = vunpack.c.l.b16 %v6217
    %v6617 = vunpack.c.l.b16 %v6218
    %v6618 = vunpack.c.l.b16 %v6219
    %v6619 = vunpack.c.l.b16 %v6220
    %v6620 = vunpack.c.l.b16 %v6221
    %v6621 = vunpack.c.l.b16 %v6222
    %v6622 = vunpack.c.l.b16 %v6223
    %v6623 = vunpack.c.l.b16 %v6224
    %v6624 = vunpack.c.l.b16 %v6225
    %v6625 = vunpack.c.l.b16 %v6226
    %v6626 = vunpack.c.l.b16 %v6227
    %v6627 = vunpack.c.l.b16 %v6228
    %v6628 = vunpack.c.l.b16 %v6229
    %v6629 = vunpack.c.l.b16 %v6230
    %v6630 = vunpack.c.l.b16 %v6231
    %v6631 = vunpack.c.l.b16 %v6232
    %v6632 = vunpack.c.l.b16 %v6233
    %v6633 = vunpack.c.l.b16 %v6234
    %v6634 = vunpack.c.l.b16 %v6235
    %v6635 = vunpack.c.l.b16 %v6236
    %v6636 = vunpack.c.l.b16 %v6237
    %v6637 = vunpack.c.l.b16 %v6238
    %v6638 = vunpack.c.l.b16 %v6239
    %v6639 = vunpack.c.l.b16 %v6240
    %v6640 = vunpack.c.l.b16 %v6241
    %v6641 = vunpack.c.l.b16 %v6242
    %v6642 = vunpack.c.l.b16 %v6243
    %v6643 = vunpack.c.l.b16 %v6244
    %v6644 = vunpack.c.l.b16 %v6245
    %v6645 = vunpack.c.l.b16 %v6246
    %v6646 = vunpack.c.l.b16 %v6247
    %v6647 = vunpack.c.l.b16 %v6248
    %v6648 = vunpack.c.l.b16 %v6249
    %v6649 = vunpack.c.l.b16 %v6250
    %v6650 = vunpack.c.l.b16 %v6251
    %v6651 = vunpack.c.l.b16 %v6252
    %v6652 = vunpack.c.l.b16 %v6253
    %v6653 = vunpack.c.l.b16 %v6254
    %v6654 = vunpack.c.l.b16 %v6255
    %v6655 = vunpack.c.l.b16 %v6256
    %v6656 = vunpack.c.l.b16 %v6257
    %v6657 = vunpack.c.l.b16 %v6258
    %v6658 = vunpack.c.l.b16 %v6259
    %v6659 = vunpack.c.l.b16 %v6260
    %v6660 = vunpack.c.l.b16 %v6261
    %v6661 = vunpack.c.l.b16 %v6262
    %v6662 = vunpack.c.l.b16 %v6263
    %v6663 = vunpack.c.l.b16 %v6264
    %v6664 = vunpack.c.l.b16 %v6265
    %v6665 = vunpack.c.l.b16 %v6266
    %v6666 = vunpack.c.l.b16 %v6267
    %v6667 = vunpack.c.l.b16 %v6268
    %v6668 = vunpack.c.l.b16 %v6269
    %v6669 = vunpack.c.l.b16 %v6270
    %v6670 = vunpack.c.l.b16 %v6271
    %v6671 = vunpack.c.l.b16 %v6272
    %v6672 = vunpack.c.l.b16 %v6273
    %v6673 = vunpack.c.l.b16 %v6274
    %v6674 = vunpack.c.l.b16 %v6275
    %v6675 = vunpack.c.l.b16 %v6276
    %v6676 = vunpack.c.l.b16 %v6277
    %v6677 = vunpack.c.l.b16 %v6278
    %v6678 = vunpack.c.l.b16 %v6279
    %v6679 = vunpack.c.l.b16 %v6280
    %v6680 = vunpack.c.l.b16 %v6281
    %v6681 = vunpack.c.l.b16 %v6282
    %v6682 = vunpack.c.l.b16 %v6283
    %v6683 = vunpack.c.l.b16 %v6284
    %v6684 = vunpack.c.l.b16 %v6285
    %v6685 = vunpack.c.l.b16 %v6286
    %v6686 = vunpack.c.l.b16 %v6287
    %v6687 = vunpack.c.l.b16 %v6288
    %v6688 = vunpack.c.l.b16 %v6289
    %v6689 = vunpack.c.l.b16 %v6290
    %v6690 = vunpack.c.l.b16 %v6291
    %v6691 = vunpack.c.l.b16 %v6292
    %v6692 = vunpack.c.l.b16 %v6293
    %v6693 = vunpack.c.l.b16 %v6294
    %v6694 = vunpack.c.l.b16 %v6295
    %v6695 = vunpack.c.l.b16 %v6296
    %v6696 = vunpack.c.l.b16 %v6297
    %v6697 = vunpack.c.l.b16 %v6298
    %v6698 = vunpack.c.l.b16 %v6299
    %v6699 = vunpack.c.l.b16 %v6300
    %v6700 = vpack.c.b16 %v6505, %v6504
    %v6701 = vpack.c.b16 %v6507, %v6506
    %v6702 = vpack.c.b16 %v6509, %v6508
    %v6703 = vpack.c.b16 %v6511, %v6510
    %v6704 = vpack.c.b16 %v6513, %v6512
    %v6705 = vpack.c.b16 %v6515, %v6514
    %v6706 = vpack.c.b16 %v6517, %v6516
    %v6707 = vpack.c.b16 %v6519, %v6518
    %v6708 = vpack.c.b16 %v6521, %v6520
    %v6709 = vpack.c.b16 %v6523, %v6522
    %v6710 = vpack.c.b16 %v6525, %v6524
    %v6711 = vpack.c.b16 %v6527, %v6526
    %v6712 = vpack.c.b16 %v6529, %v6528
    %v6713 = vpack.c.b16 %v6531, %v6530
    %v6714 = vpack.c.b16 %v6533, %v6532
    %v6715 = vpack.c.b16 %v6535, %v6534
    %v6716 = vpack.c.b16 %v6537, %v6536
    %v6717 = vpack.c.b16 %v6539, %v6538
    %v6718 = vpack.c.b16 %v6541, %v6540
    %v6719 = vpack.c.b16 %v6543, %v6542
    %v6720 = vpack.c.b16 %v6545, %v6544
    %v6721 = vpack.c.b16 %v6547, %v6546
    %v6722 = vpack.c.b16 %v6549, %v6548
    %v6723 = vpack.c.b16 %v6551, %v6550
    %v6724 = vpack.c.b16 %v6553, %v6552
    %v6725 = vpack.c.b16 %v6555, %v6554
    %v6726 = vpack.c.b16 %v6557, %v6556
    %v6727 = vpack.c.b16 %v6559, %v6558
    %v6728 = vpack.c.b16 %v6561, %v6560
    %v6729 = vpack.c.b16 %v6563, %v6562
    %v6730 = vpack.c.b16 %v6565, %v6564
    %v6731 = vpack.c.b16 %v6567, %v6566
    %v6732 = vpack.c.b16 %v6569, %v6568
    %v6733 = vpack.c.b16 %v6571, %v6570
    %v6734 = vpack.c.b16 %v6573, %v6572
    %v6735 = vpack.c.b16 %v6575, %v6574
    %v6736 = vpack.c.b16 %v6577, %v6576
    %v6737 = vpack.c.b16 %v6579, %v6578
    %v6738 = vpack.c.b16 %v6581, %v6580
    %v6739 = vpack.c.b16 %v6583, %v6582
    %v6740 = vpack.c.b16 %v6585, %v6584
    %v6741 = vpack.c.b16 %v6587, %v6586
    %v6742 = vpack.c.b16 %v6589, %v6588
    %v6743 = vpack.c.b16 %v6591, %v6590
    %v6744 = vpack.c.b16 %v6593, %v6592
    %v6745 = vpack.c.b16 %v6595, %v6594
    %v6746 = vpack.c.b16 %v6597, %v6596
    %v6747 = vpack.c.b16 %v6599, %v6598
    %v6748 = vpack.c.b16 %v6601, %v6600
    %v6749 = vpack.c.b16 %v6603, %v6602
    %v6750 = vpack.c.b16 %v6605, %v6604
    %v6751 = vpack.c.b16 %v6607, %v6606
    %v6752 = vpack.c.b16 %v6609, %v6608
    %v6753 = vpack.c.b16 %v6611, %v6610
    %v6754 = vpack.c.b16 %v6613, %v6612
    %v6755 = vpack.c.b16 %v6615, %v6614
    %v6756 = vpack.c.b16 %v6617, %v6616
    %v6757 = vpack.c.b16 %v6619, %v6618
    %v6758 = vpack.c.b16 %v6621, %v6620
    %v6759 = vpack.c.b16 %v6623, %v6622
    %v6760 = vpack.c.b16 %v6625, %v6624
    %v6761 = vpack.c.b16 %v6627, %v6626
    %v6762 = vpack.c.b16 %v6629, %v6628
    %v6763 = vpack.c.b16 %v6631, %v6630
    %v6764 = vpack.c.b16 %v6633, %v6632
    %v6765 = vpack.c.b16 %v6635, %v6634
    %v6766 = vpack.c.b16 %v6637, %v6636
    %v6767 = vpack.c.b16 %v6639, %v6638
    %v6768 = vpack.c.b16 %v6641, %v6640
    %v6769 = vpack.c.b16 %v6643, %v6642
    %v6770 = vpack.c.b16 %v6645, %v6644
    %v6771 = vpack.c.b16 %v6647, %v6646
    %v6772 = vpack.c.b16 %v6649, %v6648
    %v6773 = vpack.c.b16 %v6651, %v6650
    %v6774 = vpack.c.b16 %v6653, %v6652
    %v6775 = vpack.c.b16 %v6655, %v6654
    %v6776 = vpack.c.b16 %v6657, %v6656
    %v6777 = vpack.c.b16 %v6659, %v6658
    %v6778 = vpack.c.b16 %v6661, %v6660
    %v6779 = vpack.c.b16 %v6663, %v6662
    %v6780 = vpack.c.b16 %v6665, %v6664
    %v6781 = vpack.c.b16 %v6667, %v6666
    %v6782 = vpack.c.b16 %v6669, %v6668
    %v6783 = vpack.c.b16 %v6671, %v6670
    %v6784 = vpack.c.b16 %v6673, %v6672
    %v6785 = vpack.c.b16 %v6675, %v6674
    %v6786 = vpack.c.b16 %v6677, %v6676
    %v6787 = vpack.c.b16 %v6679, %v6678
    %v6788 = vpack.c.b16 %v6681, %v6680
    %v6789 = vpack.c.b16 %v6683, %v6682
    %v6790 = vpack.c.b16 %v6685, %v6684
    %v6791 = vpack.c.b16 %v6687, %v6686
    %v6792 = vpack.c.b16 %v6689, %v6688
    %v6793 = vpack.c.b16 %v6691, %v6690
    %v6794 = vpack.c.b16 %v6693, %v6692
    %v6795 = vpack.c.b16 %v6695, %v6694
    %v6796 = vpack.c.b16 %v6697, %v6696
    %v6797 = vpack.c.b16 %v6699, %v6698
    %vm6896 = vcmask 261120
    %v6898 = vsel %vm6896, %v6104, 0
    %6900 = vmatprep.subr.bf16.mxu0 0
    %6901 = vmatpush1.bf16.msra.mxu0 %v6700
    %6902 = vmatprep.subr.bf16.mxu0 0
    %6903 = vmatpush1.bf16.msra.mxu0 %v6701
    %6904 = vmatprep.subr.bf16.mxu0 0
    %6905 = vmatpush1.bf16.msra.mxu0 %v6702
    %6906 = vmatprep.subr.bf16.mxu0 0
    %6907 = vmatpush1.bf16.msra.mxu0 %v6703
    %6908 = vmatprep.subr.bf16.mxu0 0
    %6909 = vmatpush1.bf16.msra.mxu0 %v6704
    %6910 = vmatprep.subr.bf16.mxu0 0
    %6911 = vmatpush1.bf16.msra.mxu0 %v6705
    %6912 = vmatprep.subr.bf16.mxu0 0
    %6913 = vmatpush1.bf16.msra.mxu0 %v6706
    %6914 = vmatprep.subr.bf16.mxu0 0
    %6915 = vmatpush1.bf16.msra.mxu0 %v6707
    %6916 = vmatprep.subr.bf16.mxu0 0
    %6917 = vmatpush1.bf16.msra.mxu0 %v6708
    %6918 = vmatprep.subr.bf16.mxu0 0
    %6919 = vmatpush1.bf16.msra.mxu0 %v6709
    %6920 = vmatprep.subr.bf16.mxu0 0
    %6921 = vmatpush1.bf16.msra.mxu0 %v6710
    %6922 = vmatprep.subr.bf16.mxu0 0
    %6923 = vmatpush1.bf16.msra.mxu0 %v6711
    %6924 = vmatprep.subr.bf16.mxu0 0
    %6925 = vmatpush1.bf16.msra.mxu0 %v6712
    %6926 = vmatprep.subr.bf16.mxu0 0
    %6927 = vmatpush1.bf16.msra.mxu0 %v6713
    %6928 = vmatprep.subr.bf16.mxu0 0
    %6929 = vmatpush1.bf16.msra.mxu0 %v6714
    %6930 = vmatprep.subr.bf16.mxu0 0
    %6931 = vmatpush1.bf16.msra.mxu0 %v6715
    %6932 = vmatprep.mubr.bf16.mxu0 %v6093
    %6933 = vmatmul.mubr.bf16.gmra.mrb[0].mxu0 %v6092
    %v6934 = vpop.f32.mrb[0].mxu0
    %v6935 = vadd.f32 %v6306, %v6934
    %v6936 = vpop.f32.mrb[0].mxu0
    %v6937 = vpop.f32.mrb[0].mxu0
    %v6938 = vpop.f32.mrb[0].mxu0
    %6939 = vdwg.mxu0
    %6940 = vmatprep.subr.bf16.mxu0 0
    %6941 = vmatpush1.bf16.msra.mxu0 %v6716
    %6942 = vmatprep.subr.bf16.mxu0 0
    %6943 = vmatpush1.bf16.msra.mxu0 %v6717
    %6944 = vmatprep.subr.bf16.mxu0 0
    %6945 = vmatpush1.bf16.msra.mxu0 %v6718
    %6946 = vmatprep.subr.bf16.mxu0 0
    %6947 = vmatpush1.bf16.msra.mxu0 %v6719
    %6948 = vmatprep.subr.bf16.mxu0 0
    %6949 = vmatpush1.bf16.msra.mxu0 %v6720
    %6950 = vmatprep.subr.bf16.mxu0 0
    %6951 = vmatpush1.bf16.msra.mxu0 %v6721
    %6952 = vmatprep.subr.bf16.mxu0 0
    %6953 = vmatpush1.bf16.msra.mxu0 %v6722
    %6954 = vmatprep.subr.bf16.mxu0 0
    %6955 = vmatpush1.bf16.msra.mxu0 %v6723
    %6956 = vmatprep.subr.bf16.mxu0 0
    %6957 = vmatpush1.bf16.msra.mxu0 %v6724
    %6958 = vmatprep.subr.bf16.mxu0 0
    %6959 = vmatpush1.bf16.msra.mxu0 %v6725
    %6960 = vmatprep.subr.bf16.mxu0 0
    %6961 = vmatpush1.bf16.msra.mxu0 %v6726
    %6962 = vmatprep.subr.bf16.mxu0 0
    %6963 = vmatpush1.bf16.msra.mxu0 %v6727
    %6964 = vmatprep.subr.bf16.mxu0 0
    %6965 = vmatpush1.bf16.msra.mxu0 %v6728
    %6966 = vmatprep.subr.bf16.mxu0 0
    %6967 = vmatpush1.bf16.msra.mxu0 %v6729
    %6968 = vmatprep.subr.bf16.mxu0 0
    %6969 = vmatpush1.bf16.msra.mxu0 %v6730
    %6970 = vmatprep.subr.bf16.mxu0 0
    %6971 = vmatpush1.bf16.msra.mxu0 %v6731
    %6972 = vmatprep.mubr.bf16.mxu0 %v6095
    %6973 = vmatmul.mubr.bf16.gmra.mrb[0].mxu0 %v6094
    %v6974 = vpop.f32.mrb[0].mxu0
    %v6975 = vadd.f32 %v6935, %v6974
    %v6976 = vpop.f32.mrb[0].mxu0
    %v6977 = vpop.f32.mrb[0].mxu0
    %v6978 = vpop.f32.mrb[0].mxu0
    %6979 = vdwg.mxu0
    %6980 = vmatprep.subr.bf16.mxu0 0
    %6981 = vmatpush1.bf16.msra.mxu0 %v6732
    %6982 = vmatprep.subr.bf16.mxu0 0
    %6983 = vmatpush1.bf16.msra.mxu0 %v6733
    %6984 = vmatprep.subr.bf16.mxu0 0
    %6985 = vmatpush1.bf16.msra.mxu0 %v6734
    %6986 = vmatprep.subr.bf16.mxu0 0
    %6987 = vmatpush1.bf16.msra.mxu0 %v6735
    %6988 = vmatprep.subr.bf16.mxu0 0
    %6989 = vmatpush1.bf16.msra.mxu0 %v6736
    %6990 = vmatprep.subr.bf16.mxu0 0
    %6991 = vmatpush1.bf16.msra.mxu0 %v6737
    %6992 = vmatprep.subr.bf16.mxu0 0
    %6993 = vmatpush1.bf16.msra.mxu0 %v6738
    %6994 = vmatprep.subr.bf16.mxu0 0
    %6995 = vmatpush1.bf16.msra.mxu0 %v6739
    %6996 = vmatprep.subr.bf16.mxu0 0
    %6997 = vmatpush1.bf16.msra.mxu0 %v6740
    %6998 = vmatprep.subr.bf16.mxu0 0
    %6999 = vmatpush1.bf16.msra.mxu0 %v6741
    %7000 = vmatprep.subr.bf16.mxu0 0
    %7001 = vmatpush1.bf16.msra.mxu0 %v6742
    %7002 = vmatprep.subr.bf16.mxu0 0
    %7003 = vmatpush1.bf16.msra.mxu0 %v6743
    %7004 = vmatprep.subr.bf16.mxu0 0
    %7005 = vmatpush1.bf16.msra.mxu0 %v6744
    %7006 = vmatprep.subr.bf16.mxu0 0
    %7007 = vmatpush1.bf16.msra.mxu0 %v6745
    %7008 = vmatprep.subr.bf16.mxu0 0
    %7009 = vmatpush1.bf16.msra.mxu0 %v6746
    %7010 = vmatprep.subr.bf16.mxu0 0
    %7011 = vmatpush1.bf16.msra.mxu0 %v6747
    %7012 = vmatprep.mubr.bf16.mxu0 %v6097
    %7013 = vmatmul.mubr.bf16.gmra.mrb[0].mxu0 %v6096
    %v7014 = vpop.f32.mrb[0].mxu0
    %v7015 = vadd.f32 %v6975, %v7014
    %v7016 = vpop.f32.mrb[0].mxu0
    %v7017 = vpop.f32.mrb[0].mxu0
    %v7018 = vpop.f32.mrb[0].mxu0
    %7019 = vdwg.mxu0
    %7020 = vmatprep.subr.bf16.mxu0 0
    %7021 = vmatpush1.bf16.msra.mxu0 %v6748
    %7022 = vmatprep.subr.bf16.mxu0 0
    %7023 = vmatpush1.bf16.msra.mxu0 %v6749
    %7024 = vmatprep.subr.bf16.mxu0 0
    %7025 = vmatpush1.bf16.msra.mxu0 %v6750
    %7026 = vmatprep.subr.bf16.mxu0 0
    %7027 = vmatpush1.bf16.msra.mxu0 %v6751
    %7028 = vmatprep.subr.bf16.mxu0 0
    %7029 = vmatpush1.bf16.msra.mxu0 %v6752
    %7030 = vmatprep.subr.bf16.mxu0 0
    %7031 = vmatpush1.bf16.msra.mxu0 %v6753
    %7032 = vmatprep.subr.bf16.mxu0 0
    %7033 = vmatpush1.bf16.msra.mxu0 %v6754
    %7034 = vmatprep.subr.bf16.mxu0 0
    %7035 = vmatpush1.bf16.msra.mxu0 %v6755
    %7036 = vmatprep.subr.bf16.mxu0 0
    %7037 = vmatpush1.bf16.msra.mxu0 %v6756
    %7038 = vmatprep.subr.bf16.mxu0 0
    %7039 = vmatpush1.bf16.msra.mxu0 %v6757
    %7040 = vmatprep.subr.bf16.mxu0 0
    %7041 = vmatpush1.bf16.msra.mxu0 %v6758
    %7042 = vmatprep.subr.bf16.mxu0 0
    %7043 = vmatpush1.bf16.msra.mxu0 %v6759
    %7044 = vmatprep.subr.bf16.mxu0 0
    %7045 = vmatpush1.bf16.msra.mxu0 %v6760
    %7046 = vmatprep.subr.bf16.mxu0 0
    %7047 = vmatpush1.bf16.msra.mxu0 %v6761
    %7048 = vmatprep.subr.bf16.mxu0 0
    %7049 = vmatpush1.bf16.msra.mxu0 %v6762
    %7050 = vmatprep.subr.bf16.mxu0 0
    %7051 = vmatpush1.bf16.msra.mxu0 %v6763
    %7052 = vmatprep.mubr.bf16.mxu0 %v6099
    %7053 = vmatmul.mubr.bf16.gmra.mrb[0].mxu0 %v6098
    %v7054 = vpop.f32.mrb[0].mxu0
    %v7055 = vadd.f32 %v7015, %v7054
    %v7056 = vpop.f32.mrb[0].mxu0
    %v7057 = vpop.f32.mrb[0].mxu0
    %v7058 = vpop.f32.mrb[0].mxu0
    %7059 = vdwg.mxu0
    %7060 = vmatprep.subr.bf16.mxu0 0
    %7061 = vmatpush1.bf16.msra.mxu0 %v6764
    %7062 = vmatprep.subr.bf16.mxu0 0
    %7063 = vmatpush1.bf16.msra.mxu0 %v6765
    %7064 = vmatprep.subr.bf16.mxu0 0
    %7065 = vmatpush1.bf16.msra.mxu0 %v6766
    %7066 = vmatprep.subr.bf16.mxu0 0
    %7067 = vmatpush1.bf16.msra.mxu0 %v6767
    %7068 = vmatprep.subr.bf16.mxu0 0
    %7069 = vmatpush1.bf16.msra.mxu0 %v6768
    %7070 = vmatprep.subr.bf16.mxu0 0
    %7071 = vmatpush1.bf16.msra.mxu0 %v6769
    %7072 = vmatprep.subr.bf16.mxu0 0
    %7073 = vmatpush1.bf16.msra.mxu0 %v6770
    %7074 = vmatprep.subr.bf16.mxu0 0
    %7075 = vmatpush1.bf16.msra.mxu0 %v6771
    %7076 = vmatprep.subr.bf16.mxu0 0
    %7077 = vmatpush1.bf16.msra.mxu0 %v6772
    %7078 = vmatprep.subr.bf16.mxu0 0
    %7079 = vmatpush1.bf16.msra.mxu0 %v6773
    %7080 = vmatprep.subr.bf16.mxu0 0
    %7081 = vmatpush1.bf16.msra.mxu0 %v6774
    %7082 = vmatprep.subr.bf16.mxu0 0
    %7083 = vmatpush1.bf16.msra.mxu0 %v6775
    %7084 = vmatprep.subr.bf16.mxu0 0
    %7085 = vmatpush1.bf16.msra.mxu0 %v6776
    %7086 = vmatprep.subr.bf16.mxu0 0
    %7087 = vmatpush1.bf16.msra.mxu0 %v6777
    %7088 = vmatprep.subr.bf16.mxu0 0
    %7089 = vmatpush1.bf16.msra.mxu0 %v6778
    %7090 = vmatprep.subr.bf16.mxu0 0
    %7091 = vmatpush1.bf16.msra.mxu0 %v6779
    %7092 = vmatprep.mubr.bf16.mxu0 %v6101
    %7093 = vmatmul.mubr.bf16.gmra.mrb[0].mxu0 %v6100
    %v7094 = vpop.f32.mrb[0].mxu0
    %v7095 = vadd.f32 %v7055, %v7094
    %v7096 = vpop.f32.mrb[0].mxu0
    %v7097 = vpop.f32.mrb[0].mxu0
    %v7098 = vpop.f32.mrb[0].mxu0
    %7099 = vdwg.mxu0
    %7100 = vmatprep.subr.bf16.mxu0 0
    %7101 = vmatpush1.bf16.msra.mxu0 %v6780
    %7102 = vmatprep.subr.bf16.mxu0 0
    %7103 = vmatpush1.bf16.msra.mxu0 %v6781
    %7104 = vmatprep.subr.bf16.mxu0 0
    %7105 = vmatpush1.bf16.msra.mxu0 %v6782
    %7106 = vmatprep.subr.bf16.mxu0 0
    %7107 = vmatpush1.bf16.msra.mxu0 %v6783
    %7108 = vmatprep.subr.bf16.mxu0 0
    %7109 = vmatpush1.bf16.msra.mxu0 %v6784
    %7110 = vmatprep.subr.bf16.mxu0 0
    %7111 = vmatpush1.bf16.msra.mxu0 %v6785
    %7112 = vmatprep.subr.bf16.mxu0 0
    %7113 = vmatpush1.bf16.msra.mxu0 %v6786
    %7114 = vmatprep.subr.bf16.mxu0 0
    %7115 = vmatpush1.bf16.msra.mxu0 %v6787
    %7116 = vmatprep.subr.bf16.mxu0 0
    %7117 = vmatpush1.bf16.msra.mxu0 %v6788
    %7118 = vmatprep.subr.bf16.mxu0 0
    %7119 = vmatpush1.bf16.msra.mxu0 %v6789
    %7120 = vmatprep.subr.bf16.mxu0 0
    %7121 = vmatpush1.bf16.msra.mxu0 %v6790
    %7122 = vmatprep.subr.bf16.mxu0 0
    %7123 = vmatpush1.bf16.msra.mxu0 %v6791
    %7124 = vmatprep.subr.bf16.mxu0 0
    %7125 = vmatpush1.bf16.msra.mxu0 %v6792
    %7126 = vmatprep.subr.bf16.mxu0 0
    %7127 = vmatpush1.bf16.msra.mxu0 %v6793
    %7128 = vmatprep.subr.bf16.mxu0 0
    %7129 = vmatpush1.bf16.msra.mxu0 %v6794
    %7130 = vmatprep.subr.bf16.mxu0 0
    %7131 = vmatpush1.bf16.msra.mxu0 %v6795
    %7132 = vmatprep.mubr.bf16.mxu0 %v6103
    %7133 = vmatmul.mubr.bf16.gmra.mrb[0].mxu0 %v6102
    %v7134 = vpop.f32.mrb[0].mxu0
    %v7135 = vadd.f32 %v7095, %v7134
    %v7136 = vpop.f32.mrb[0].mxu0
    %v7137 = vpop.f32.mrb[0].mxu0
    %v7138 = vpop.f32.mrb[0].mxu0
    %7139 = vdwg.mxu0
    %7140 = vmatprep.subr.bf16.mxu0 0
    %7141 = vmatpush1.bf16.msra.mxu0 %v6796
    %7142 = vmatprep.subr.bf16.mxu0 0
    %7143 = vmatpush1.bf16.msra.mxu0 %v6797
    %7144 = vmatprep.subr.bf16.mxu0 0
    %7145 = vmatpush1.bf16.msra.mxu0 0
    %7146 = vmatprep.subr.bf16.mxu0 0
    %7147 = vmatpush1.bf16.msra.mxu0 0
    %7148 = vmatprep.subr.bf16.mxu0 0
    %7149 = vmatpush1.bf16.msra.mxu0 0
    %7150 = vmatprep.subr.bf16.mxu0 0
    %7151 = vmatpush1.bf16.msra.mxu0 0
    %7152 = vmatprep.subr.bf16.mxu0 0
    %7153 = vmatpush1.bf16.msra.mxu0 0
    %7154 = vmatprep.subr.bf16.mxu0 0
    %7155 = vmatpush1.bf16.msra.mxu0 0
    %7156 = vmatprep.subr.bf16.mxu0 0
    %7157 = vmatpush1.bf16.msra.mxu0 0
    %7158 = vmatprep.subr.bf16.mxu0 0
    %7159 = vmatpush1.bf16.msra.mxu0 0
    %7160 = vmatprep.subr.bf16.mxu0 0
    %7161 = vmatpush1.bf16.msra.mxu0 0
    %7162 = vmatprep.subr.bf16.mxu0 0
    %7163 = vmatpush1.bf16.msra.mxu0 0
    %7164 = vmatprep.subr.bf16.mxu0 0
    %7165 = vmatpush1.bf16.msra.mxu0 0
    %7166 = vmatprep.subr.bf16.mxu0 0
    %7167 = vmatpush1.bf16.msra.mxu0 0
    %7168 = vmatprep.subr.bf16.mxu0 0
    %7169 = vmatpush1.bf16.msra.mxu0 0
    %7170 = vmatprep.subr.bf16.mxu0 0
    %7171 = vmatpush1.bf16.msra.mxu0 0
    %7172 = vmatprep.mubr.bf16.mxu0 0
    %7173 = vmatmul.mubr.bf16.gmra.mrb[0].mxu0 %v6898
    %v7174 = vpop.f32.mrb[0].mxu0
    %v7175 = vadd.f32 %v7135, %v7174
    %v7176 = vpop.f32.mrb[0].mxu0
    %v7177 = vpop.f32.mrb[0].mxu0
    %v7178 = vpop.f32.mrb[0].mxu0
    %7179 = vdwg.mxu0
    %v7180 = vmax.f32 %v7175, 0.0
    %v7181 = vld [vmem:[#allocation13] sm:$0x1]
    %v7182 = vunpack.c.l.bf16 %v7181
    %v7183 = vlaneseq
    %v7184 = vshrl.u32 %v7183, 7
    %v7185 = vsub.s32 0, %v7184
    %v7186 = vrot.slane %v7182, %v7185
    %v7187 = vmul.f32 %v7180, %v7186
    %7188 = vadd.xlane.f32.xlu0 %v7187
    %v7189 = vpop.xlane.xlu0 %7188
    %v7190 = vld [vmem:[#allocation2] sm:$0x1]
    %v7192 = vlaneseq
    %v7193 = vshrl.u32 %v7192, 7
    %v7194 = vsub.s32 0, %v7193
    %v7195 = vrot.slane %v7190, %v7194
    %v7197 = vadd.f32 %v7189, %v7195
    %vm7198 = vcmask 7168
    %7199 = vst.msk [vmem:[#allocation14] sm:$0xff] %vm7198, %v7197
    // Predicated region
    $region66: #{conv_value_net_forward.1} parent=1 // pred_check
      _
    $region67: #{conv_value_net_forward.1} parent=1 // pred_check_branch
      %7201 = sbr.rel (0) target = $region69
    $region68: #{conv_value_net_forward.1} parent=1 // pred_region
      // Predicated region
      $region70: #{conv_value_net_forward.1} parent=68 // pred_check
        _
      $region71: #{conv_value_net_forward.1} parent=68 // pred_check_branch
        %7203 = sbr.rel (0) target = $region73
      $region72: #{conv_value_net_forward.1} parent=68 // pred_region
        // Predicated region
        $region74: #{conv_value_net_forward.1} parent=72 // pred_check
          _
        $region75: #{conv_value_net_forward.1} parent=72 // pred_check_branch
          %7205 = sbr.rel target = $region77
        $region76: #{conv_value_net_forward.1} parent=72 // pred_region
          // Predicated region
          $region89: #{conv_value_net_forward.1} parent=76 // pred_check
            _
          $region90: #{conv_value_net_forward.1} parent=76 // pred_check_branch
            %7220 = sbr.rel (0) target = $region92
          $region91: #{conv_value_net_forward.1} parent=76 // pred_region
            loop: start=0, step=1, limit=1
            $region93: #{conv_value_net_forward.1} parent=91 // loop_pre_header
              _
            $region94: #{conv_value_net_forward.1} parent=91 // loop_header
              %s7223 = sphi 0, %s7227
              %p7224 = scmp.ge.s32.totalorder %s7223, 1
              %s7228 = sphi [#allocation14], [#allocation14]
              %s7229 = sphi %s9, %s9
            $region95: #{conv_value_net_forward.1} parent=91 // loop_header_branch
              %7226 = sbr.rel (%p7224) target = $region99
            $region96: #{conv_value_net_forward.1} parent=91 // loop_body
              %v7230 = vld [vmem:[%s7228] sm:$0x3]
              %7231 = vst [vmem:[%s7229] sm:$0x3] %v7230
            $region97: #{conv_value_net_forward.1} parent=91 // loop_footer
              %s7227 = sadd.s32 1, %s7223
            $region98: #{conv_value_net_forward.1} parent=91 // loop_footer_branch
              %7222 = sbr.rel target = $region94
            $region99: #{conv_value_net_forward.1} parent=91 // loop_exit
              _
          $region92: #{conv_value_net_forward.1} parent=76 // pred_fallthru
            _
        $region77: #{conv_value_net_forward.1} parent=72 // pred_fallthru
          _
        // Predicated region
        $region78: #{conv_value_net_forward.1} parent=72 // pred_check
          _
        $region79: #{conv_value_net_forward.1} parent=72 // pred_check_branch
          %7207 = sbr.rel (0) target = $region81
        $region80: #{conv_value_net_forward.1} parent=72 // pred_region
          loop: start=0, step=1, limit=1
          $region82: #{conv_value_net_forward.1} parent=80 // loop_pre_header
            _
          $region83: #{conv_value_net_forward.1} parent=80 // loop_header
            %s7210 = sphi 0, %s7214
            %p7211 = scmp.ge.s32.totalorder %s7210, 1
            %s7215 = sphi [#allocation14], [#allocation14]
            %s7216 = sphi %s9, %s9
          $region84: #{conv_value_net_forward.1} parent=80 // loop_header_branch
            %7213 = sbr.rel (%p7211) target = $region88
          $region85: #{conv_value_net_forward.1} parent=80 // loop_body
            %v7217 = vld [vmem:[%s7215] sm:$0x3]
            %7218 = vst [vmem:[%s7216] sm:$0x3] %v7217
          $region86: #{conv_value_net_forward.1} parent=80 // loop_footer
            %s7214 = sadd.s32 1, %s7210
          $region87: #{conv_value_net_forward.1} parent=80 // loop_footer_branch
            %7209 = sbr.rel target = $region83
          $region88: #{conv_value_net_forward.1} parent=80 // loop_exit
            _
        $region81: #{conv_value_net_forward.1} parent=72 // pred_fallthru
          _
      $region73: #{conv_value_net_forward.1} parent=68 // pred_fallthru
        _
      %7232 = vnop
    $region69: #{conv_value_net_forward.1} parent=1 // pred_fallthru
      _
    // Predicated region
    $region100: #{conv_value_net_forward.1} parent=1 // pred_check
      _
    $region101: #{conv_value_net_forward.1} parent=1 // pred_check_branch
      %7234 = sbr.rel (0) target = $region103
    $region102: #{conv_value_net_forward.1} parent=1 // pred_region
      _
    $region103: #{conv_value_net_forward.1} parent=1 // pred_fallthru
      _
    %7235 = vsyncpa [#allocation4], 1
    %7236 = vsyncpa [#allocation6], 1
    %7237 = vsyncpa [#allocation9], 1
    %7238 = vsyncpa [#allocation12], 1

</llo_original>
